<compile_context>
chip_gen: v5e
topology: v5e:2x2
jax: 0.10.0
libtpu: 0.0.40
codegen_flags: <defaults>
</compile_context>

<pallas_src>
import jax
import jax.numpy as jnp
from jax.experimental import pallas as pl
from jax.experimental.pallas import tpu as pltpu

# ------------------------- synthetic BART config -------------------------
VOCAB = 128
D_MODEL = 32
N_HEADS = 4
HEAD_DIM = D_MODEL // N_HEADS
D_FF = 64
N_ENC_LAYERS = 2
N_DEC_LAYERS = 2
MAX_POS = 64
PAD_TOKEN_ID = 1
DECODER_START_TOKEN_ID = 2          # BART uses eos (=2) as decoder start
LN_EPS = 1e-5
NEG_INF = -1e9
IGNORE_INDEX = -100                 # torch CrossEntropyLoss default ignore_index

# ----------------------- packed-slab index helpers -----------------------
_LN_ENC_EMB = 0
_LN_DEC_EMB = 1


def _ln_enc(l, i):                       # i: 0=post-self-attn, 1=post-ffn
    return 2 + 2 * l + i


def _ln_dec(l, i):                       # i: 0=post-self, 1=post-cross, 2=post-ffn
    return 2 + 2 * N_ENC_LAYERS + 3 * l + i


_NUM_LN = 2 + 2 * N_ENC_LAYERS + 3 * N_DEC_LAYERS


def _qkv_enc(l):        return l                                   # fused QKV slab
def _qkv_dec(l):        return N_ENC_LAYERS + l
def _dd_enc_out(l):     return l                                   # (D, D) slab
def _dd_dec_self_out(l):return N_ENC_LAYERS + l
def _dd_cross_out(l):   return N_ENC_LAYERS + N_DEC_LAYERS + l
def _dd_cross_q(l):     return N_ENC_LAYERS + 2 * N_DEC_LAYERS + l
_NUM_DD = N_ENC_LAYERS + 3 * N_DEC_LAYERS
def _fc_enc(l):         return l                                   # FFN slabs
def _fc_dec(l):         return N_ENC_LAYERS + l


# --------------------------- in-kernel helpers ---------------------------
def _bf16(x):
    return x.astype(jnp.bfloat16)


def _mm(a, b):
    # MXU matmul: bf16 operands, f32 accumulation.
    return jnp.dot(_bf16(a), _bf16(b), preferred_element_type=jnp.float32)


def _mm_nt(a, b):
    # a @ b.T without materializing a transposed value.
    return jax.lax.dot_general(_bf16(a), _bf16(b), (((1,), (1,)), ((), ())),
                               preferred_element_type=jnp.float32)


def _layer_norm(x, g, b):
    # single pass: E[x] and E[x^2] -> var = E[x^2] - mu^2
    mu = jnp.mean(x, axis=-1, keepdims=True)
    ex2 = jnp.mean(x * x, axis=-1, keepdims=True)
    var = ex2 - mu * mu
    return (x - mu) * jax.lax.rsqrt(var + LN_EPS) * g + b


def _gelu(x):
    # TODO(synk): HF BART uses exact (erf) GELU; tanh approximation kept for
    # robust Mosaic lowering.
    return jax.nn.gelu(x, approximate=True)


def _head(x, h):
    return x[:, h * HEAD_DIM:(h + 1) * HEAD_DIM]


def _mha_core(q, k, v, bias, w_o, b_o):
    """Multi-head attention on projected slabs.

    q: (Mq, D)   k, v: (Mk, D)   (head columns packed along lanes)
    bias: (1, Mk) or (Mq, Mk) additive;  w_o: (D, D);  b_o: (1, D)
    Per-head score slabs are stacked along sublanes so the softmax
    (max / exp / sum / normalize) runs once on an (H*Mq, Mk) slab.
    """
    mq = q.shape[0]
    scale = HEAD_DIM ** -0.5
    s = jnp.concatenate(
        [_mm_nt(_head(q, h), _head(k, h)) * scale + bias for h in range(N_HEADS)],
        axis=0)                                              # (H*Mq, Mk)
    s = s - jnp.max(s, axis=-1, keepdims=True)
    p = jnp.exp(s)
    p = p / jnp.sum(p, axis=-1, keepdims=True)               # exact normalize
    ctx = jnp.concatenate(
        [_mm(p[h * mq:(h + 1) * mq, :], _head(v, h)) for h in range(N_HEADS)],
        axis=-1)                                             # (Mq, D)
    return _mm(ctx, w_o) + b_o                               # one fused out-proj


# ------------------------------ fused kernel ------------------------------
def _bart_loss_kernel(enc_emb_ref, dec_emb_ref, src_mask_ref, tgt_mask_ref, tgt_ref,
                      ln_g_ref, ln_b_ref, qkv_w_ref, qkv_b_ref,
                      dd_w_ref, dd_b_ref, ckv_w_ref, ckv_b_ref,
                      fc1_w_ref, fc1_b_ref, fc2_w_ref, fc2_b_ref,
                      lm_w_ref, lm_b_ref, loss_ref):
    t_tgt = dec_emb_ref.shape[1]
    D = D_MODEL

    def ln(x, idx):
        return _layer_norm(x, ln_g_ref[idx], ln_b_ref[idx])

    # -------- additive attention biases built in-kernel from (1, T) masks --------
    enc_key_bias = jnp.where(src_mask_ref[0] > 0.5, 0.0, NEG_INF)     # (1, Ts)
    dec_key_bias = jnp.where(tgt_mask_ref[0] > 0.5, 0.0, NEG_INF)     # (1, Tt)
    rows = jax.lax.broadcasted_iota(jnp.int32, (t_tgt, t_tgt), 0)
    cols = jax.lax.broadcasted_iota(jnp.int32, (t_tgt, t_tgt), 1)
    dec_self_bias = jnp.where(cols <= rows, 0.0, NEG_INF) + dec_key_bias  # (Tt, Tt)

    # ------------------------------ encoder ------------------------------
    x = ln(enc_emb_ref[0], _LN_ENC_EMB)                               # (Ts, D)
    for l in range(N_ENC_LAYERS):
        qkv = _mm(x, qkv_w_ref[_qkv_enc(l)]) + qkv_b_ref[_qkv_enc(l)]  # (Ts, 3D)
        a = _mha_core(qkv[:, :D], qkv[:, D:2 * D], qkv[:, 2 * D:],
                      enc_key_bias,
                      dd_w_ref[_dd_enc_out(l)], dd_b_ref[_dd_enc_out(l)])
        x = ln(x + a, _ln_enc(l, 0))
        ff = _gelu(_mm(x, fc1_w_ref[_fc_enc(l)]) + fc1_b_ref[_fc_enc(l)])
        ff = _mm(ff, fc2_w_ref[_fc_enc(l)]) + fc2_b_ref[_fc_enc(l)]
        x = ln(x + ff, _ln_enc(l, 1))
    enc_out = x

    # ------------------------------ decoder ------------------------------
    y = ln(dec_emb_ref[0], _LN_DEC_EMB)                               # (Tt, D)
    for l in range(N_DEC_LAYERS):
        qkv = _mm(y, qkv_w_ref[_qkv_dec(l)]) + qkv_b_ref[_qkv_dec(l)]
        a = _mha_core(qkv[:, :D], qkv[:, D:2 * D], qkv[:, 2 * D:],
                      dec_self_bias,
                      dd_w_ref[_dd_dec_self_out(l)], dd_b_ref[_dd_dec_self_out(l)])
        y = ln(y + a, _ln_dec(l, 0))

        q = _mm(y, dd_w_ref[_dd_cross_q(l)]) + dd_b_ref[_dd_cross_q(l)]   # (Tt, D)
        kv = _mm(enc_out, ckv_w_ref[l]) + ckv_b_ref[l]                    # (Ts, 2D)
        c = _mha_core(q, kv[:, :D], kv[:, D:], enc_key_bias,
                      dd_w_ref[_dd_cross_out(l)], dd_b_ref[_dd_cross_out(l)])
        y = ln(y + c, _ln_dec(l, 1))

        ff = _gelu(_mm(y, fc1_w_ref[_fc_dec(l)]) + fc1_b_ref[_fc_dec(l)])
        ff = _mm(ff, fc2_w_ref[_fc_dec(l)]) + fc2_b_ref[_fc_dec(l)]
        y = ln(y + ff, _ln_dec(l, 2))

    # ----- tied LM head (contract (V, D) emb on its last axis) + sum-CE -----
    logits = _mm_nt(y, lm_w_ref[...]) + lm_b_ref[...]          # (Tt, V), lane-dense V=128
    tgt = tgt_ref[0]                                           # (Tt, 1) int32
    m = jnp.max(logits, axis=-1, keepdims=True)
    lse = m + jnp.log(jnp.sum(jnp.exp(logits - m), axis=-1, keepdims=True))
    col = jax.lax.broadcasted_iota(jnp.int32, logits.shape, 1)
    picked = jnp.sum(jnp.where(col == tgt, logits, 0.0), axis=-1, keepdims=True)
    valid = (tgt != IGNORE_INDEX).astype(jnp.float32)          # torch ignore_index=-100
    loss_ref[...] = jnp.sum((lse - picked) * valid).reshape(1, 1, 1)


# ------------------------------ plain-JAX glue ------------------------------
def shift_tokens_right(input_ids, pad_token_id, decoder_start_token_id):
    shifted = jnp.zeros_like(input_ids)
    shifted = shifted.at[:, 1:].set(input_ids[:, :-1])
    shifted = shifted.at[:, 0].set(decoder_start_token_id)
    return jnp.where(shifted == -100, pad_token_id, shifted)


def bart_generation_loss(params, input_ids, attn_mask, lf_tgt_actions, tgt_mask):
    B, t_src = input_ids.shape
    t_tgt = lf_tgt_actions.shape[1]
    dec_ids = shift_tokens_right(lf_tgt_actions, PAD_TOKEN_ID, DECODER_START_TOKEN_ID)

    # embedding gathers + learned positional embeddings (BART offset of 2)
    enc_emb = params["shared_emb"][input_ids] + params["enc_pos_emb"][jnp.arange(t_src) + 2][None]
    dec_emb = params["shared_emb"][dec_ids] + params["dec_pos_emb"][jnp.arange(t_tgt) + 2][None]
    src_mask = attn_mask.astype(jnp.float32).reshape(B, 1, t_src)
    tgt_mask_f = tgt_mask.astype(jnp.float32).reshape(B, 1, t_tgt)
    tgt = lf_tgt_actions.astype(jnp.int32).reshape(B, t_tgt, 1)
    lm_w = params["shared_emb"].astype(jnp.bfloat16)           # tied head, no transpose
    lm_b = params["final_logits_bias"]

    data_specs = [
        pl.BlockSpec((1, t_src, D_MODEL), lambda b: (b, 0, 0)),
        pl.BlockSpec((1, t_tgt, D_MODEL), lambda b: (b, 0, 0)),
        pl.BlockSpec((1, 1, t_src), lambda b: (b, 0, 0)),
        pl.BlockSpec((1, 1, t_tgt), lambda b: (b, 0, 0)),
        pl.BlockSpec((1, t_tgt, 1), lambda b: (b, 0, 0)),
    ]
    weights = (params["ln_g"], params["ln_b"],
               params["qkv_w"], params["qkv_b"],
               params["dd_w"], params["dd_b"],
               params["ckv_w"], params["ckv_b"],
               params["fc1_w"], params["fc1_b"],
               params["fc2_w"], params["fc2_b"],
               lm_w, lm_b)
    # whole-slab VMEM-resident weights, constant across the batch grid
    weight_specs = [pl.BlockSpec(w.shape, lambda b, n=w.ndim: (0,) * n) for w in weights]

    per_example = pl.pallas_call(
        _bart_loss_kernel,
        out_shape=jax.ShapeDtypeStruct((B, 1, 1), jnp.float32),
        grid=(B,),
        in_specs=data_specs + weight_specs,
        out_specs=pl.BlockSpec((1, 1, 1), lambda b: (b, 0, 0)),
        compiler_params=pltpu.CompilerParams(
            dimension_semantics=("parallel",),          # 2nd TC on v7x
            vmem_limit_bytes=32 * 1024 * 1024),
    )(enc_emb, dec_emb, src_mask, tgt_mask_f, tgt, *weights)
    return jnp.sum(per_example)


# ------------------------------ parameter init ------------------------------
def init_params(key):
    ks = jax.random.split(key, 10)

    def nrm(k, shape, dtype=jnp.float32):
        return (0.02 * jax.random.normal(k, shape, jnp.float32)).astype(dtype)

    Le, Ld, D, F, V = N_ENC_LAYERS, N_DEC_LAYERS, D_MODEL, D_FF, VOCAB
    return dict(
        shared_emb=nrm(ks[0], (V, D)),
        enc_pos_emb=nrm(ks[1], (MAX_POS + 2, D)),
        dec_pos_emb=nrm(ks[2], (MAX_POS + 2, D)),
        final_logits_bias=jnp.zeros((1, V), jnp.float32),
        # all LayerNorm params packed: [enc_emb, dec_emb, enc(l):ln1,ln2, dec(l):ln1,ln2,ln3]
        ln_g=jnp.ones((_NUM_LN, 1, D), jnp.float32),
        ln_b=jnp.zeros((_NUM_LN, 1, D), jnp.float32),
        # fused [Wq|Wk|Wv] per self-attention block: enc layers then dec layers
        qkv_w=nrm(ks[3], (Le + Ld, D, 3 * D), jnp.bfloat16),
        qkv_b=jnp.zeros((Le + Ld, 1, 3 * D), jnp.float32),
        # all (D, D) matrices: [enc self out | dec self out | dec cross out | dec cross q]
        dd_w=nrm(ks[4], (_NUM_DD, D, D), jnp.bfloat16),
        dd_b=jnp.zeros((_NUM_DD, 1, D), jnp.float32),
        # cross-attention fused [Wk|Wv] per decoder layer
        ckv_w=nrm(ks[5], (Ld, D, 2 * D), jnp.bfloat16),
        ckv_b=jnp.zeros((Ld, 1, 2 * D), jnp.float32),
        # FFN: enc layers then dec layers
        fc1_w=nrm(ks[6], (Le + Ld, D, F), jnp.bfloat16),
        fc1_b=jnp.zeros((Le + Ld, 1, F), jnp.float32),
        fc2_w=nrm(ks[7], (Le + Ld, F, D), jnp.bfloat16),
        fc2_b=jnp.zeros((Le + Ld, 1, D), jnp.float32),
    )


# ------------------------------------ main ------------------------------------
if __name__ == "__main__":
    key = jax.random.PRNGKey(0)
    pkey, k1, k2 = jax.random.split(key, 3)
    params = init_params(pkey)

    B, T_SRC, T_TGT = 2, 8, 8
    input_ids = jax.random.randint(k1, (B, T_SRC), 3, VOCAB, dtype=jnp.int32)
    lf_tgt_actions = jax.random.randint(k2, (B, T_TGT), 3, VOCAB, dtype=jnp.int32)

    # second sample has some padding at the tail
    attn_mask = jnp.ones((B, T_SRC), jnp.int32).at[1, -2:].set(0)
    input_ids = input_ids.at[1, -2:].set(PAD_TOKEN_ID)
    tgt_mask = jnp.ones((B, T_TGT), jnp.int32).at[1, -1:].set(0)
    lf_tgt_actions = lf_tgt_actions.at[1, -1:].set(PAD_TOKEN_ID)

    loss_fn = jax.jit(bart_generation_loss)
    loss = loss_fn(params, input_ids, attn_mask, lf_tgt_actions, tgt_mask)
    jax.block_until_ready(loss)
    assert loss.shape == () and jnp.isfinite(loss)
    print("KERNEL_OK")
</pallas_src>

<mosaic_0001>
module attributes {stable_mosaic.version = 11 : i64} {
  func.func @_bart_loss_kernel(%arg0: i32, %arg1: memref<1x8x32xf32, #tpu.memory_space<vmem>>, %arg2: memref<1x8x32xf32, #tpu.memory_space<vmem>>, %arg3: memref<1x1x8xf32, #tpu.memory_space<vmem>>, %arg4: memref<1x1x8xf32, #tpu.memory_space<vmem>>, %arg5: memref<1x8x1xi32, #tpu.memory_space<vmem>>, %arg6: memref<12x1x32xf32, #tpu.memory_space<vmem>>, %arg7: memref<12x1x32xf32, #tpu.memory_space<vmem>>, %arg8: memref<4x32x96xbf16, #tpu.memory_space<vmem>>, %arg9: memref<4x1x96xf32, #tpu.memory_space<vmem>>, %arg10: memref<8x32x32xbf16, #tpu.memory_space<vmem>>, %arg11: memref<8x1x32xf32, #tpu.memory_space<vmem>>, %arg12: memref<2x32x64xbf16, #tpu.memory_space<vmem>>, %arg13: memref<2x1x64xf32, #tpu.memory_space<vmem>>, %arg14: memref<4x32x64xbf16, #tpu.memory_space<vmem>>, %arg15: memref<4x1x64xf32, #tpu.memory_space<vmem>>, %arg16: memref<4x64x32xbf16, #tpu.memory_space<vmem>>, %arg17: memref<4x1x32xf32, #tpu.memory_space<vmem>>, %arg18: memref<128x32xbf16, #tpu.memory_space<vmem>>, %arg19: memref<1x128xf32, #tpu.memory_space<vmem>>, %arg20: memref<1x1x1xf32, #tpu.memory_space<vmem>>) attributes {dimension_semantics = [#tpu.dimension_semantics<parallel>], iteration_bounds = array<i64: 2>, scalar_prefetch = 0 : i64, scratch_operands = 0 : i64, tpu.core_type = #tpu.core_type<tc>, window_params = [{transform_indices = @transform_0, window_bounds = array<i64: 1, 8, 32>}, {transform_indices = @transform_1, window_bounds = array<i64: 1, 8, 32>}, {transform_indices = @transform_2, window_bounds = array<i64: 1, 1, 8>}, {transform_indices = @transform_3, window_bounds = array<i64: 1, 1, 8>}, {transform_indices = @transform_4, window_bounds = array<i64: 1, 8, 1>}, {pipeline_mode = #tpu.pipeline_mode<synchronous>, transform_indices = @transform_5, window_bounds = array<i64: 12, 1, 32>}, {pipeline_mode = #tpu.pipeline_mode<synchronous>, transform_indices = @transform_6, window_bounds = array<i64: 12, 1, 32>}, {pipeline_mode = #tpu.pipeline_mode<synchronous>, transform_indices = @transform_7, window_bounds = array<i64: 4, 32, 96>}, {pipeline_mode = #tpu.pipeline_mode<synchronous>, transform_indices = @transform_8, window_bounds = array<i64: 4, 1, 96>}, {pipeline_mode = #tpu.pipeline_mode<synchronous>, transform_indices = @transform_9, window_bounds = array<i64: 8, 32, 32>}, {pipeline_mode = #tpu.pipeline_mode<synchronous>, transform_indices = @transform_10, window_bounds = array<i64: 8, 1, 32>}, {pipeline_mode = #tpu.pipeline_mode<synchronous>, transform_indices = @transform_11, window_bounds = array<i64: 2, 32, 64>}, {pipeline_mode = #tpu.pipeline_mode<synchronous>, transform_indices = @transform_12, window_bounds = array<i64: 2, 1, 64>}, {pipeline_mode = #tpu.pipeline_mode<synchronous>, transform_indices = @transform_13, window_bounds = array<i64: 4, 32, 64>}, {pipeline_mode = #tpu.pipeline_mode<synchronous>, transform_indices = @transform_14, window_bounds = array<i64: 4, 1, 64>}, {pipeline_mode = #tpu.pipeline_mode<synchronous>, transform_indices = @transform_15, window_bounds = array<i64: 4, 64, 32>}, {pipeline_mode = #tpu.pipeline_mode<synchronous>, transform_indices = @transform_16, window_bounds = array<i64: 4, 1, 32>}, {pipeline_mode = #tpu.pipeline_mode<synchronous>, transform_indices = @transform_17, window_bounds = array<i64: 128, 32>}, {pipeline_mode = #tpu.pipeline_mode<synchronous>, transform_indices = @transform_18, window_bounds = array<i64: 1, 128>}, {transform_indices = @transform_19, window_bounds = array<i64: 1, 1, 1>}]} {
    %c0 = arith.constant 0 : index
    %c0_0 = arith.constant 0 : index
    %c0_1 = arith.constant 0 : index
    %0 = vector.load %arg3[%c0, %c0_0, %c0_1] : memref<1x1x8xf32, #tpu.memory_space<vmem>>, vector<1x1x8xf32>
    %1 = vector.shape_cast %0 : vector<1x1x8xf32> to vector<1x8xf32>
    %cst = arith.constant 5.000000e-01 : f32
    %2 = vector.broadcast %cst : f32 to vector<1x8xf32>
    %3 = arith.cmpf ogt, %1, %2 : vector<1x8xf32>
    %cst_2 = arith.constant 0.000000e+00 : f32
    %cst_3 = arith.constant -1.000000e+09 : f32
    %4 = vector.broadcast %cst_2 : f32 to vector<1x8xf32>
    %5 = vector.broadcast %cst_3 : f32 to vector<1x8xf32>
    %6 = arith.select %3, %4, %5 : vector<1x8xi1>, vector<1x8xf32>
    %c0_4 = arith.constant 0 : index
    %c0_5 = arith.constant 0 : index
    %c0_6 = arith.constant 0 : index
    %7 = vector.load %arg4[%c0_4, %c0_5, %c0_6] : memref<1x1x8xf32, #tpu.memory_space<vmem>>, vector<1x1x8xf32>
    %8 = vector.shape_cast %7 : vector<1x1x8xf32> to vector<1x8xf32>
    %cst_7 = arith.constant 5.000000e-01 : f32
    %9 = vector.broadcast %cst_7 : f32 to vector<1x8xf32>
    %10 = arith.cmpf ogt, %8, %9 : vector<1x8xf32>
    %cst_8 = arith.constant 0.000000e+00 : f32
    %cst_9 = arith.constant -1.000000e+09 : f32
    %11 = vector.broadcast %cst_8 : f32 to vector<1x8xf32>
    %12 = vector.broadcast %cst_9 : f32 to vector<1x8xf32>
    %13 = arith.select %10, %11, %12 : vector<1x8xi1>, vector<1x8xf32>
    %14 = tpu.iota {dimensions = array<i32: 0>} : vector<8x8xi32>
    %15 = tpu.iota {dimensions = array<i32: 1>} : vector<8x8xi32>
    %16 = arith.cmpi sle, %15, %14 : vector<8x8xi32>
    %cst_10 = arith.constant 0.000000e+00 : f32
    %cst_11 = arith.constant -1.000000e+09 : f32
    %17 = vector.broadcast %cst_10 : f32 to vector<8x8xf32>
    %18 = vector.broadcast %cst_11 : f32 to vector<8x8xf32>
    %19 = arith.select %16, %17, %18 : vector<8x8xi1>, vector<8x8xf32>
    %20 = vector.broadcast %13 : vector<1x8xf32> to vector<8x8xf32>
    %21 = arith.addf %19, %20 : vector<8x8xf32>
    %c0_12 = arith.constant 0 : index
    %c0_13 = arith.constant 0 : index
    %c0_14 = arith.constant 0 : index
    %22 = vector.load %arg1[%c0_12, %c0_13, %c0_14] : memref<1x8x32xf32, #tpu.memory_space<vmem>>, vector<1x8x32xf32>
    %23 = vector.shape_cast %22 : vector<1x8x32xf32> to vector<8x32xf32>
    %c0_15 = arith.constant 0 : index
    %c0_16 = arith.constant 0 : index
    %c0_17 = arith.constant 0 : index
    %24 = vector.load %arg6[%c0_15, %c0_16, %c0_17] : memref<12x1x32xf32, #tpu.memory_space<vmem>>, vector<1x1x32xf32>
    %25 = vector.shape_cast %24 : vector<1x1x32xf32> to vector<1x32xf32>
    %c0_18 = arith.constant 0 : index
    %c0_19 = arith.constant 0 : index
    %c0_20 = arith.constant 0 : index
    %26 = vector.load %arg7[%c0_18, %c0_19, %c0_20] : memref<12x1x32xf32, #tpu.memory_space<vmem>>, vector<1x1x32xf32>
    %27 = vector.shape_cast %26 : vector<1x1x32xf32> to vector<1x32xf32>
    %cst_21 = arith.constant dense<0.000000e+00> : vector<8xf32>
    %28 = vector.multi_reduction <add>, %23, %cst_21 [1] : vector<8x32xf32> to vector<8xf32>
    %29 = vector.shape_cast %28 : vector<8xf32> to vector<8x1xf32>
    %cst_22 = arith.constant 3.200000e+01 : f32
    %30 = vector.broadcast %cst_22 : f32 to vector<8x1xf32>
    %31 = arith.divf %29, %30 : vector<8x1xf32>
    %32 = arith.mulf %23, %23 : vector<8x32xf32>
    %cst_23 = arith.constant dense<0.000000e+00> : vector<8xf32>
    %33 = vector.multi_reduction <add>, %32, %cst_23 [1] : vector<8x32xf32> to vector<8xf32>
    %34 = vector.shape_cast %33 : vector<8xf32> to vector<8x1xf32>
    %cst_24 = arith.constant 3.200000e+01 : f32
    %35 = vector.broadcast %cst_24 : f32 to vector<8x1xf32>
    %36 = arith.divf %34, %35 : vector<8x1xf32>
    %37 = arith.mulf %31, %31 : vector<8x1xf32>
    %38 = arith.subf %36, %37 : vector<8x1xf32>
    %39 = vector.broadcast %31 : vector<8x1xf32> to vector<8x32xf32>
    %40 = arith.subf %23, %39 : vector<8x32xf32>
    %cst_25 = arith.constant 9.99999974E-6 : f32
    %41 = vector.broadcast %cst_25 : f32 to vector<8x1xf32>
    %42 = arith.addf %38, %41 : vector<8x1xf32>
    %43 = math.rsqrt %42 : vector<8x1xf32>
    %44 = vector.broadcast %43 : vector<8x1xf32> to vector<8x32xf32>
    %45 = arith.mulf %40, %44 : vector<8x32xf32>
    %46 = vector.broadcast %25 : vector<1x32xf32> to vector<8x32xf32>
    %47 = arith.mulf %45, %46 : vector<8x32xf32>
    %48 = vector.broadcast %27 : vector<1x32xf32> to vector<8x32xf32>
    %49 = arith.addf %47, %48 : vector<8x32xf32>
    %c0_26 = arith.constant 0 : index
    %c0_27 = arith.constant 0 : index
    %c0_28 = arith.constant 0 : index
    %50 = vector.load %arg8[%c0_26, %c0_27, %c0_28] : memref<4x32x96xbf16, #tpu.memory_space<vmem>>, vector<1x32x96xbf16>
    %51 = vector.shape_cast %50 : vector<1x32x96xbf16> to vector<32x96xbf16>
    %52 = arith.truncf %49 : vector<8x32xf32> to vector<8x32xbf16>
    %cst_29 = arith.constant dense<0.000000e+00> : vector<8x96xf32>
    %53 = tpu.matmul %52, %51, %cst_29 {dimension_numbers = #tpu.dot_dimension_numbers<[1], [0], [0], [1], [0, 0, 1, 1], [], []>} : vector<8x32xbf16>, vector<32x96xbf16>, vector<8x96xf32> -> vector<8x96xf32>
    %c0_30 = arith.constant 0 : index
    %c0_31 = arith.constant 0 : index
    %c0_32 = arith.constant 0 : index
    %54 = vector.load %arg9[%c0_30, %c0_31, %c0_32] : memref<4x1x96xf32, #tpu.memory_space<vmem>>, vector<1x1x96xf32>
    %55 = vector.shape_cast %54 : vector<1x1x96xf32> to vector<1x96xf32>
    %56 = vector.broadcast %55 : vector<1x96xf32> to vector<8x96xf32>
    %57 = arith.addf %53, %56 : vector<8x96xf32>
    %58 = vector.extract_strided_slice %57 {offsets = [0, 0], sizes = [8, 32], strides = [1, 1]} : vector<8x96xf32> to vector<8x32xf32>
    %59 = vector.extract_strided_slice %57 {offsets = [0, 32], sizes = [8, 32], strides = [1, 1]} : vector<8x96xf32> to vector<8x32xf32>
    %60 = vector.extract_strided_slice %57 {offsets = [0, 64], sizes = [8, 32], strides = [1, 1]} : vector<8x96xf32> to vector<8x32xf32>
    %c0_33 = arith.constant 0 : index
    %c0_34 = arith.constant 0 : index
    %c0_35 = arith.constant 0 : index
    %61 = vector.load %arg10[%c0_33, %c0_34, %c0_35] : memref<8x32x32xbf16, #tpu.memory_space<vmem>>, vector<1x32x32xbf16>
    %62 = vector.shape_cast %61 : vector<1x32x32xbf16> to vector<32x32xbf16>
    %c0_36 = arith.constant 0 : index
    %c0_37 = arith.constant 0 : index
    %c0_38 = arith.constant 0 : index
    %63 = vector.load %arg11[%c0_36, %c0_37, %c0_38] : memref<8x1x32xf32, #tpu.memory_space<vmem>>, vector<1x1x32xf32>
    %64 = vector.shape_cast %63 : vector<1x1x32xf32> to vector<1x32xf32>
    %65 = vector.extract_strided_slice %58 {offsets = [0, 0], sizes = [8, 8], strides = [1, 1]} : vector<8x32xf32> to vector<8x8xf32>
    %66 = vector.extract_strided_slice %59 {offsets = [0, 0], sizes = [8, 8], strides = [1, 1]} : vector<8x32xf32> to vector<8x8xf32>
    %67 = arith.truncf %65 : vector<8x8xf32> to vector<8x8xbf16>
    %68 = arith.truncf %66 : vector<8x8xf32> to vector<8x8xbf16>
    %cst_39 = arith.constant dense<0.000000e+00> : vector<8x8xf32>
    %69 = tpu.matmul %67, %68, %cst_39 {dimension_numbers = #tpu.dot_dimension_numbers<[1], [1], [0], [0], [0, 0, 1, 0], [], []>} : vector<8x8xbf16>, vector<8x8xbf16>, vector<8x8xf32> -> vector<8x8xf32>
    %cst_40 = arith.constant 0.353553385 : f32
    %70 = vector.broadcast %cst_40 : f32 to vector<8x8xf32>
    %71 = arith.mulf %69, %70 : vector<8x8xf32>
    %72 = vector.broadcast %6 : vector<1x8xf32> to vector<8x8xf32>
    %73 = arith.addf %71, %72 : vector<8x8xf32>
    %74 = vector.extract_strided_slice %58 {offsets = [0, 8], sizes = [8, 8], strides = [1, 1]} : vector<8x32xf32> to vector<8x8xf32>
    %75 = vector.extract_strided_slice %59 {offsets = [0, 8], sizes = [8, 8], strides = [1, 1]} : vector<8x32xf32> to vector<8x8xf32>
    %76 = arith.truncf %74 : vector<8x8xf32> to vector<8x8xbf16>
    %77 = arith.truncf %75 : vector<8x8xf32> to vector<8x8xbf16>
    %cst_41 = arith.constant dense<0.000000e+00> : vector<8x8xf32>
    %78 = tpu.matmul %76, %77, %cst_41 {dimension_numbers = #tpu.dot_dimension_numbers<[1], [1], [0], [0], [0, 0, 1, 0], [], []>} : vector<8x8xbf16>, vector<8x8xbf16>, vector<8x8xf32> -> vector<8x8xf32>
    %cst_42 = arith.constant 0.353553385 : f32
    %79 = vector.broadcast %cst_42 : f32 to vector<8x8xf32>
    %80 = arith.mulf %78, %79 : vector<8x8xf32>
    %81 = vector.broadcast %6 : vector<1x8xf32> to vector<8x8xf32>
    %82 = arith.addf %80, %81 : vector<8x8xf32>
    %83 = vector.extract_strided_slice %58 {offsets = [0, 16], sizes = [8, 8], strides = [1, 1]} : vector<8x32xf32> to vector<8x8xf32>
    %84 = vector.extract_strided_slice %59 {offsets = [0, 16], sizes = [8, 8], strides = [1, 1]} : vector<8x32xf32> to vector<8x8xf32>
    %85 = arith.truncf %83 : vector<8x8xf32> to vector<8x8xbf16>
    %86 = arith.truncf %84 : vector<8x8xf32> to vector<8x8xbf16>
    %cst_43 = arith.constant dense<0.000000e+00> : vector<8x8xf32>
    %87 = tpu.matmul %85, %86, %cst_43 {dimension_numbers = #tpu.dot_dimension_numbers<[1], [1], [0], [0], [0, 0, 1, 0], [], []>} : vector<8x8xbf16>, vector<8x8xbf16>, vector<8x8xf32> -> vector<8x8xf32>
    %cst_44 = arith.constant 0.353553385 : f32
    %88 = vector.broadcast %cst_44 : f32 to vector<8x8xf32>
    %89 = arith.mulf %87, %88 : vector<8x8xf32>
    %90 = vector.broadcast %6 : vector<1x8xf32> to vector<8x8xf32>
    %91 = arith.addf %89, %90 : vector<8x8xf32>
    %92 = vector.extract_strided_slice %58 {offsets = [0, 24], sizes = [8, 8], strides = [1, 1]} : vector<8x32xf32> to vector<8x8xf32>
    %93 = vector.extract_strided_slice %59 {offsets = [0, 24], sizes = [8, 8], strides = [1, 1]} : vector<8x32xf32> to vector<8x8xf32>
    %94 = arith.truncf %92 : vector<8x8xf32> to vector<8x8xbf16>
    %95 = arith.truncf %93 : vector<8x8xf32> to vector<8x8xbf16>
    %cst_45 = arith.constant dense<0.000000e+00> : vector<8x8xf32>
    %96 = tpu.matmul %94, %95, %cst_45 {dimension_numbers = #tpu.dot_dimension_numbers<[1], [1], [0], [0], [0, 0, 1, 0], [], []>} : vector<8x8xbf16>, vector<8x8xbf16>, vector<8x8xf32> -> vector<8x8xf32>
    %cst_46 = arith.constant 0.353553385 : f32
    %97 = vector.broadcast %cst_46 : f32 to vector<8x8xf32>
    %98 = arith.mulf %96, %97 : vector<8x8xf32>
    %99 = vector.broadcast %6 : vector<1x8xf32> to vector<8x8xf32>
    %100 = arith.addf %98, %99 : vector<8x8xf32>
    %101 = tpu.concatenate %73, %82, %91, %100 in 0 : vector<8x8xf32>, vector<8x8xf32>, vector<8x8xf32>, vector<8x8xf32> -> vector<32x8xf32>
    %cst_47 = arith.constant dense<0xFF800000> : vector<32xf32>
    %102 = vector.multi_reduction <maximumf>, %101, %cst_47 [1] : vector<32x8xf32> to vector<32xf32>
    %103 = vector.shape_cast %102 : vector<32xf32> to vector<32x1xf32>
    %104 = vector.broadcast %103 : vector<32x1xf32> to vector<32x8xf32>
    %105 = arith.subf %101, %104 : vector<32x8xf32>
    %106 = math.exp %105 : vector<32x8xf32>
    %cst_48 = arith.constant dense<0.000000e+00> : vector<32xf32>
    %107 = vector.multi_reduction <add>, %106, %cst_48 [1] : vector<32x8xf32> to vector<32xf32>
    %108 = vector.shape_cast %107 : vector<32xf32> to vector<32x1xf32>
    %109 = vector.broadcast %108 : vector<32x1xf32> to vector<32x8xf32>
    %110 = arith.divf %106, %109 : vector<32x8xf32>
    %111 = vector.extract_strided_slice %110 {offsets = [0, 0], sizes = [8, 8], strides = [1, 1]} : vector<32x8xf32> to vector<8x8xf32>
    %112 = vector.extract_strided_slice %60 {offsets = [0, 0], sizes = [8, 8], strides = [1, 1]} : vector<8x32xf32> to vector<8x8xf32>
    %113 = arith.truncf %111 : vector<8x8xf32> to vector<8x8xbf16>
    %114 = arith.truncf %112 : vector<8x8xf32> to vector<8x8xbf16>
    %cst_49 = arith.constant dense<0.000000e+00> : vector<8x8xf32>
    %115 = tpu.matmul %113, %114, %cst_49 {dimension_numbers = #tpu.dot_dimension_numbers<[1], [0], [0], [1], [0, 0, 1, 1], [], []>} : vector<8x8xbf16>, vector<8x8xbf16>, vector<8x8xf32> -> vector<8x8xf32>
    %116 = vector.extract_strided_slice %110 {offsets = [8, 0], sizes = [8, 8], strides = [1, 1]} : vector<32x8xf32> to vector<8x8xf32>
    %117 = vector.extract_strided_slice %60 {offsets = [0, 8], sizes = [8, 8], strides = [1, 1]} : vector<8x32xf32> to vector<8x8xf32>
    %118 = arith.truncf %116 : vector<8x8xf32> to vector<8x8xbf16>
    %119 = arith.truncf %117 : vector<8x8xf32> to vector<8x8xbf16>
    %cst_50 = arith.constant dense<0.000000e+00> : vector<8x8xf32>
    %120 = tpu.matmul %118, %119, %cst_50 {dimension_numbers = #tpu.dot_dimension_numbers<[1], [0], [0], [1], [0, 0, 1, 1], [], []>} : vector<8x8xbf16>, vector<8x8xbf16>, vector<8x8xf32> -> vector<8x8xf32>
    %121 = vector.extract_strided_slice %110 {offsets = [16, 0], sizes = [8, 8], strides = [1, 1]} : vector<32x8xf32> to vector<8x8xf32>
    %122 = vector.extract_strided_slice %60 {offsets = [0, 16], sizes = [8, 8], strides = [1, 1]} : vector<8x32xf32> to vector<8x8xf32>
    %123 = arith.truncf %121 : vector<8x8xf32> to vector<8x8xbf16>
    %124 = arith.truncf %122 : vector<8x8xf32> to vector<8x8xbf16>
    %cst_51 = arith.constant dense<0.000000e+00> : vector<8x8xf32>
    %125 = tpu.matmul %123, %124, %cst_51 {dimension_numbers = #tpu.dot_dimension_numbers<[1], [0], [0], [1], [0, 0, 1, 1], [], []>} : vector<8x8xbf16>, vector<8x8xbf16>, vector<8x8xf32> -> vector<8x8xf32>
    %126 = vector.extract_strided_slice %110 {offsets = [24, 0], sizes = [8, 8], strides = [1, 1]} : vector<32x8xf32> to vector<8x8xf32>
    %127 = vector.extract_strided_slice %60 {offsets = [0, 24], sizes = [8, 8], strides = [1, 1]} : vector<8x32xf32> to vector<8x8xf32>
    %128 = arith.truncf %126 : vector<8x8xf32> to vector<8x8xbf16>
    %129 = arith.truncf %127 : vector<8x8xf32> to vector<8x8xbf16>
    %cst_52 = arith.constant dense<0.000000e+00> : vector<8x8xf32>
    %130 = tpu.matmul %128, %129, %cst_52 {dimension_numbers = #tpu.dot_dimension_numbers<[1], [0], [0], [1], [0, 0, 1, 1], [], []>} : vector<8x8xbf16>, vector<8x8xbf16>, vector<8x8xf32> -> vector<8x8xf32>
    %131 = tpu.concatenate %115, %120, %125, %130 in 1 : vector<8x8xf32>, vector<8x8xf32>, vector<8x8xf32>, vector<8x8xf32> -> vector<8x32xf32>
    %132 = arith.truncf %131 : vector<8x32xf32> to vector<8x32xbf16>
    %cst_53 = arith.constant dense<0.000000e+00> : vector<8x32xf32>
    %133 = tpu.matmul %132, %62, %cst_53 {dimension_numbers = #tpu.dot_dimension_numbers<[1], [0], [0], [1], [0, 0, 1, 1], [], []>} : vector<8x32xbf16>, vector<32x32xbf16>, vector<8x32xf32> -> vector<8x32xf32>
    %134 = vector.broadcast %64 : vector<1x32xf32> to vector<8x32xf32>
    %135 = arith.addf %133, %134 : vector<8x32xf32>
    %136 = arith.addf %49, %135 : vector<8x32xf32>
    %c2 = arith.constant 2 : index
    %c0_54 = arith.constant 0 : index
    %c0_55 = arith.constant 0 : index
    %137 = vector.load %arg6[%c2, %c0_54, %c0_55] : memref<12x1x32xf32, #tpu.memory_space<vmem>>, vector<1x1x32xf32>
    %138 = vector.shape_cast %137 : vector<1x1x32xf32> to vector<1x32xf32>
    %c2_56 = arith.constant 2 : index
    %c0_57 = arith.constant 0 : index
    %c0_58 = arith.constant 0 : index
    %139 = vector.load %arg7[%c2_56, %c0_57, %c0_58] : memref<12x1x32xf32, #tpu.memory_space<vmem>>, vector<1x1x32xf32>
    %140 = vector.shape_cast %139 : vector<1x1x32xf32> to vector<1x32xf32>
    %cst_59 = arith.constant dense<0.000000e+00> : vector<8xf32>
    %141 = vector.multi_reduction <add>, %136, %cst_59 [1] : vector<8x32xf32> to vector<8xf32>
    %142 = vector.shape_cast %141 : vector<8xf32> to vector<8x1xf32>
    %cst_60 = arith.constant 3.200000e+01 : f32
    %143 = vector.broadcast %cst_60 : f32 to vector<8x1xf32>
    %144 = arith.divf %142, %143 : vector<8x1xf32>
    %145 = arith.mulf %136, %136 : vector<8x32xf32>
    %cst_61 = arith.constant dense<0.000000e+00> : vector<8xf32>
    %146 = vector.multi_reduction <add>, %145, %cst_61 [1] : vector<8x32xf32> to vector<8xf32>
    %147 = vector.shape_cast %146 : vector<8xf32> to vector<8x1xf32>
    %cst_62 = arith.constant 3.200000e+01 : f32
    %148 = vector.broadcast %cst_62 : f32 to vector<8x1xf32>
    %149 = arith.divf %147, %148 : vector<8x1xf32>
    %150 = arith.mulf %144, %144 : vector<8x1xf32>
    %151 = arith.subf %149, %150 : vector<8x1xf32>
    %152 = vector.broadcast %144 : vector<8x1xf32> to vector<8x32xf32>
    %153 = arith.subf %136, %152 : vector<8x32xf32>
    %cst_63 = arith.constant 9.99999974E-6 : f32
    %154 = vector.broadcast %cst_63 : f32 to vector<8x1xf32>
    %155 = arith.addf %151, %154 : vector<8x1xf32>
    %156 = math.rsqrt %155 : vector<8x1xf32>
    %157 = vector.broadcast %156 : vector<8x1xf32> to vector<8x32xf32>
    %158 = arith.mulf %153, %157 : vector<8x32xf32>
    %159 = vector.broadcast %138 : vector<1x32xf32> to vector<8x32xf32>
    %160 = arith.mulf %158, %159 : vector<8x32xf32>
    %161 = vector.broadcast %140 : vector<1x32xf32> to vector<8x32xf32>
    %162 = arith.addf %160, %161 : vector<8x32xf32>
    %c0_64 = arith.constant 0 : index
    %c0_65 = arith.constant 0 : index
    %c0_66 = arith.constant 0 : index
    %163 = vector.load %arg14[%c0_64, %c0_65, %c0_66] : memref<4x32x64xbf16, #tpu.memory_space<vmem>>, vector<1x32x64xbf16>
    %164 = vector.shape_cast %163 : vector<1x32x64xbf16> to vector<32x64xbf16>
    %165 = arith.truncf %162 : vector<8x32xf32> to vector<8x32xbf16>
    %cst_67 = arith.constant dense<0.000000e+00> : vector<8x64xf32>
    %166 = tpu.matmul %165, %164, %cst_67 {dimension_numbers = #tpu.dot_dimension_numbers<[1], [0], [0], [1], [0, 0, 1, 1], [], []>} : vector<8x32xbf16>, vector<32x64xbf16>, vector<8x64xf32> -> vector<8x64xf32>
    %c0_68 = arith.constant 0 : index
    %c0_69 = arith.constant 0 : index
    %c0_70 = arith.constant 0 : index
    %167 = vector.load %arg15[%c0_68, %c0_69, %c0_70] : memref<4x1x64xf32, #tpu.memory_space<vmem>>, vector<1x1x64xf32>
    %168 = vector.shape_cast %167 : vector<1x1x64xf32> to vector<1x64xf32>
    %169 = vector.broadcast %168 : vector<1x64xf32> to vector<8x64xf32>
    %170 = arith.addf %166, %169 : vector<8x64xf32>
    %171 = arith.mulf %170, %170 : vector<8x64xf32>
    %172 = arith.mulf %170, %171 : vector<8x64xf32>
    %cst_71 = arith.constant 4.471500e-02 : f32
    %173 = vector.broadcast %cst_71 : f32 to vector<8x64xf32>
    %174 = arith.mulf %173, %172 : vector<8x64xf32>
    %175 = arith.addf %170, %174 : vector<8x64xf32>
    %cst_72 = arith.constant 0.797884583 : f32
    %176 = vector.broadcast %cst_72 : f32 to vector<8x64xf32>
    %177 = arith.mulf %176, %175 : vector<8x64xf32>
    %178 = math.tanh %177 : vector<8x64xf32>
    %cst_73 = arith.constant 1.000000e+00 : f32
    %179 = vector.broadcast %cst_73 : f32 to vector<8x64xf32>
    %180 = arith.addf %179, %178 : vector<8x64xf32>
    %cst_74 = arith.constant 5.000000e-01 : f32
    %181 = vector.broadcast %cst_74 : f32 to vector<8x64xf32>
    %182 = arith.mulf %181, %180 : vector<8x64xf32>
    %183 = arith.mulf %170, %182 : vector<8x64xf32>
    %c0_75 = arith.constant 0 : index
    %c0_76 = arith.constant 0 : index
    %c0_77 = arith.constant 0 : index
    %184 = vector.load %arg16[%c0_75, %c0_76, %c0_77] : memref<4x64x32xbf16, #tpu.memory_space<vmem>>, vector<1x64x32xbf16>
    %185 = vector.shape_cast %184 : vector<1x64x32xbf16> to vector<64x32xbf16>
    %186 = arith.truncf %183 : vector<8x64xf32> to vector<8x64xbf16>
    %cst_78 = arith.constant dense<0.000000e+00> : vector<8x32xf32>
    %187 = tpu.matmul %186, %185, %cst_78 {dimension_numbers = #tpu.dot_dimension_numbers<[1], [0], [0], [1], [0, 0, 1, 1], [], []>} : vector<8x64xbf16>, vector<64x32xbf16>, vector<8x32xf32> -> vector<8x32xf32>
    %c0_79 = arith.constant 0 : index
    %c0_80 = arith.constant 0 : index
    %c0_81 = arith.constant 0 : index
    %188 = vector.load %arg17[%c0_79, %c0_80, %c0_81] : memref<4x1x32xf32, #tpu.memory_space<vmem>>, vector<1x1x32xf32>
    %189 = vector.shape_cast %188 : vector<1x1x32xf32> to vector<1x32xf32>
    %190 = vector.broadcast %189 : vector<1x32xf32> to vector<8x32xf32>
    %191 = arith.addf %187, %190 : vector<8x32xf32>
    %192 = arith.addf %162, %191 : vector<8x32xf32>
    %c3 = arith.constant 3 : index
    %c0_82 = arith.constant 0 : index
    %c0_83 = arith.constant 0 : index
    %193 = vector.load %arg6[%c3, %c0_82, %c0_83] : memref<12x1x32xf32, #tpu.memory_space<vmem>>, vector<1x1x32xf32>
    %194 = vector.shape_cast %193 : vector<1x1x32xf32> to vector<1x32xf32>
    %c3_84 = arith.constant 3 : index
    %c0_85 = arith.constant 0 : index
    %c0_86 = arith.constant 0 : index
    %195 = vector.load %arg7[%c3_84, %c0_85, %c0_86] : memref<12x1x32xf32, #tpu.memory_space<vmem>>, vector<1x1x32xf32>
    %196 = vector.shape_cast %195 : vector<1x1x32xf32> to vector<1x32xf32>
    %cst_87 = arith.constant dense<0.000000e+00> : vector<8xf32>
    %197 = vector.multi_reduction <add>, %192, %cst_87 [1] : vector<8x32xf32> to vector<8xf32>
    %198 = vector.shape_cast %197 : vector<8xf32> to vector<8x1xf32>
    %cst_88 = arith.constant 3.200000e+01 : f32
    %199 = vector.broadcast %cst_88 : f32 to vector<8x1xf32>
    %200 = arith.divf %198, %199 : vector<8x1xf32>
    %201 = arith.mulf %192, %192 : vector<8x32xf32>
    %cst_89 = arith.constant dense<0.000000e+00> : vector<8xf32>
    %202 = vector.multi_reduction <add>, %201, %cst_89 [1] : vector<8x32xf32> to vector<8xf32>
    %203 = vector.shape_cast %202 : vector<8xf32> to vector<8x1xf32>
    %cst_90 = arith.constant 3.200000e+01 : f32
    %204 = vector.broadcast %cst_90 : f32 to vector<8x1xf32>
    %205 = arith.divf %203, %204 : vector<8x1xf32>
    %206 = arith.mulf %200, %200 : vector<8x1xf32>
    %207 = arith.subf %205, %206 : vector<8x1xf32>
    %208 = vector.broadcast %200 : vector<8x1xf32> to vector<8x32xf32>
    %209 = arith.subf %192, %208 : vector<8x32xf32>
    %cst_91 = arith.constant 9.99999974E-6 : f32
    %210 = vector.broadcast %cst_91 : f32 to vector<8x1xf32>
    %211 = arith.addf %207, %210 : vector<8x1xf32>
    %212 = math.rsqrt %211 : vector<8x1xf32>
    %213 = vector.broadcast %212 : vector<8x1xf32> to vector<8x32xf32>
    %214 = arith.mulf %209, %213 : vector<8x32xf32>
    %215 = vector.broadcast %194 : vector<1x32xf32> to vector<8x32xf32>
    %216 = arith.mulf %214, %215 : vector<8x32xf32>
    %217 = vector.broadcast %196 : vector<1x32xf32> to vector<8x32xf32>
    %218 = arith.addf %216, %217 : vector<8x32xf32>
    %c1 = arith.constant 1 : index
    %c0_92 = arith.constant 0 : index
    %c0_93 = arith.constant 0 : index
    %219 = vector.load %arg8[%c1, %c0_92, %c0_93] : memref<4x32x96xbf16, #tpu.memory_space<vmem>>, vector<1x32x96xbf16>
    %220 = vector.shape_cast %219 : vector<1x32x96xbf16> to vector<32x96xbf16>
    %221 = arith.truncf %218 : vector<8x32xf32> to vector<8x32xbf16>
    %cst_94 = arith.constant dense<0.000000e+00> : vector<8x96xf32>
    %222 = tpu.matmul %221, %220, %cst_94 {dimension_numbers = #tpu.dot_dimension_numbers<[1], [0], [0], [1], [0, 0, 1, 1], [], []>} : vector<8x32xbf16>, vector<32x96xbf16>, vector<8x96xf32> -> vector<8x96xf32>
    %c1_95 = arith.constant 1 : index
    %c0_96 = arith.constant 0 : index
    %c0_97 = arith.constant 0 : index
    %223 = vector.load %arg9[%c1_95, %c0_96, %c0_97] : memref<4x1x96xf32, #tpu.memory_space<vmem>>, vector<1x1x96xf32>
    %224 = vector.shape_cast %223 : vector<1x1x96xf32> to vector<1x96xf32>
    %225 = vector.broadcast %224 : vector<1x96xf32> to vector<8x96xf32>
    %226 = arith.addf %222, %225 : vector<8x96xf32>
    %227 = vector.extract_strided_slice %226 {offsets = [0, 0], sizes = [8, 32], strides = [1, 1]} : vector<8x96xf32> to vector<8x32xf32>
    %228 = vector.extract_strided_slice %226 {offsets = [0, 32], sizes = [8, 32], strides = [1, 1]} : vector<8x96xf32> to vector<8x32xf32>
    %229 = vector.extract_strided_slice %226 {offsets = [0, 64], sizes = [8, 32], strides = [1, 1]} : vector<8x96xf32> to vector<8x32xf32>
    %c1_98 = arith.constant 1 : index
    %c0_99 = arith.constant 0 : index
    %c0_100 = arith.constant 0 : index
    %230 = vector.load %arg10[%c1_98, %c0_99, %c0_100] : memref<8x32x32xbf16, #tpu.memory_space<vmem>>, vector<1x32x32xbf16>
    %231 = vector.shape_cast %230 : vector<1x32x32xbf16> to vector<32x32xbf16>
    %c1_101 = arith.constant 1 : index
    %c0_102 = arith.constant 0 : index
    %c0_103 = arith.constant 0 : index
    %232 = vector.load %arg11[%c1_101, %c0_102, %c0_103] : memref<8x1x32xf32, #tpu.memory_space<vmem>>, vector<1x1x32xf32>
    %233 = vector.shape_cast %232 : vector<1x1x32xf32> to vector<1x32xf32>
    %234 = vector.extract_strided_slice %227 {offsets = [0, 0], sizes = [8, 8], strides = [1, 1]} : vector<8x32xf32> to vector<8x8xf32>
    %235 = vector.extract_strided_slice %228 {offsets = [0, 0], sizes = [8, 8], strides = [1, 1]} : vector<8x32xf32> to vector<8x8xf32>
    %236 = arith.truncf %234 : vector<8x8xf32> to vector<8x8xbf16>
    %237 = arith.truncf %235 : vector<8x8xf32> to vector<8x8xbf16>
    %cst_104 = arith.constant dense<0.000000e+00> : vector<8x8xf32>
    %238 = tpu.matmul %236, %237, %cst_104 {dimension_numbers = #tpu.dot_dimension_numbers<[1], [1], [0], [0], [0, 0, 1, 0], [], []>} : vector<8x8xbf16>, vector<8x8xbf16>, vector<8x8xf32> -> vector<8x8xf32>
    %cst_105 = arith.constant 0.353553385 : f32
    %239 = vector.broadcast %cst_105 : f32 to vector<8x8xf32>
    %240 = arith.mulf %238, %239 : vector<8x8xf32>
    %241 = vector.broadcast %6 : vector<1x8xf32> to vector<8x8xf32>
    %242 = arith.addf %240, %241 : vector<8x8xf32>
    %243 = vector.extract_strided_slice %227 {offsets = [0, 8], sizes = [8, 8], strides = [1, 1]} : vector<8x32xf32> to vector<8x8xf32>
    %244 = vector.extract_strided_slice %228 {offsets = [0, 8], sizes = [8, 8], strides = [1, 1]} : vector<8x32xf32> to vector<8x8xf32>
    %245 = arith.truncf %243 : vector<8x8xf32> to vector<8x8xbf16>
    %246 = arith.truncf %244 : vector<8x8xf32> to vector<8x8xbf16>
    %cst_106 = arith.constant dense<0.000000e+00> : vector<8x8xf32>
    %247 = tpu.matmul %245, %246, %cst_106 {dimension_numbers = #tpu.dot_dimension_numbers<[1], [1], [0], [0], [0, 0, 1, 0], [], []>} : vector<8x8xbf16>, vector<8x8xbf16>, vector<8x8xf32> -> vector<8x8xf32>
    %cst_107 = arith.constant 0.353553385 : f32
    %248 = vector.broadcast %cst_107 : f32 to vector<8x8xf32>
    %249 = arith.mulf %247, %248 : vector<8x8xf32>
    %250 = vector.broadcast %6 : vector<1x8xf32> to vector<8x8xf32>
    %251 = arith.addf %249, %250 : vector<8x8xf32>
    %252 = vector.extract_strided_slice %227 {offsets = [0, 16], sizes = [8, 8], strides = [1, 1]} : vector<8x32xf32> to vector<8x8xf32>
    %253 = vector.extract_strided_slice %228 {offsets = [0, 16], sizes = [8, 8], strides = [1, 1]} : vector<8x32xf32> to vector<8x8xf32>
    %254 = arith.truncf %252 : vector<8x8xf32> to vector<8x8xbf16>
    %255 = arith.truncf %253 : vector<8x8xf32> to vector<8x8xbf16>
    %cst_108 = arith.constant dense<0.000000e+00> : vector<8x8xf32>
    %256 = tpu.matmul %254, %255, %cst_108 {dimension_numbers = #tpu.dot_dimension_numbers<[1], [1], [0], [0], [0, 0, 1, 0], [], []>} : vector<8x8xbf16>, vector<8x8xbf16>, vector<8x8xf32> -> vector<8x8xf32>
    %cst_109 = arith.constant 0.353553385 : f32
    %257 = vector.broadcast %cst_109 : f32 to vector<8x8xf32>
    %258 = arith.mulf %256, %257 : vector<8x8xf32>
    %259 = vector.broadcast %6 : vector<1x8xf32> to vector<8x8xf32>
    %260 = arith.addf %258, %259 : vector<8x8xf32>
    %261 = vector.extract_strided_slice %227 {offsets = [0, 24], sizes = [8, 8], strides = [1, 1]} : vector<8x32xf32> to vector<8x8xf32>
    %262 = vector.extract_strided_slice %228 {offsets = [0, 24], sizes = [8, 8], strides = [1, 1]} : vector<8x32xf32> to vector<8x8xf32>
    %263 = arith.truncf %261 : vector<8x8xf32> to vector<8x8xbf16>
    %264 = arith.truncf %262 : vector<8x8xf32> to vector<8x8xbf16>
    %cst_110 = arith.constant dense<0.000000e+00> : vector<8x8xf32>
    %265 = tpu.matmul %263, %264, %cst_110 {dimension_numbers = #tpu.dot_dimension_numbers<[1], [1], [0], [0], [0, 0, 1, 0], [], []>} : vector<8x8xbf16>, vector<8x8xbf16>, vector<8x8xf32> -> vector<8x8xf32>
    %cst_111 = arith.constant 0.353553385 : f32
    %266 = vector.broadcast %cst_111 : f32 to vector<8x8xf32>
    %267 = arith.mulf %265, %266 : vector<8x8xf32>
    %268 = vector.broadcast %6 : vector<1x8xf32> to vector<8x8xf32>
    %269 = arith.addf %267, %268 : vector<8x8xf32>
    %270 = tpu.concatenate %242, %251, %260, %269 in 0 : vector<8x8xf32>, vector<8x8xf32>, vector<8x8xf32>, vector<8x8xf32> -> vector<32x8xf32>
    %cst_112 = arith.constant dense<0xFF800000> : vector<32xf32>
    %271 = vector.multi_reduction <maximumf>, %270, %cst_112 [1] : vector<32x8xf32> to vector<32xf32>
    %272 = vector.shape_cast %271 : vector<32xf32> to vector<32x1xf32>
    %273 = vector.broadcast %272 : vector<32x1xf32> to vector<32x8xf32>
    %274 = arith.subf %270, %273 : vector<32x8xf32>
    %275 = math.exp %274 : vector<32x8xf32>
    %cst_113 = arith.constant dense<0.000000e+00> : vector<32xf32>
    %276 = vector.multi_reduction <add>, %275, %cst_113 [1] : vector<32x8xf32> to vector<32xf32>
    %277 = vector.shape_cast %276 : vector<32xf32> to vector<32x1xf32>
    %278 = vector.broadcast %277 : vector<32x1xf32> to vector<32x8xf32>
    %279 = arith.divf %275, %278 : vector<32x8xf32>
    %280 = vector.extract_strided_slice %279 {offsets = [0, 0], sizes = [8, 8], strides = [1, 1]} : vector<32x8xf32> to vector<8x8xf32>
    %281 = vector.extract_strided_slice %229 {offsets = [0, 0], sizes = [8, 8], strides = [1, 1]} : vector<8x32xf32> to vector<8x8xf32>
    %282 = arith.truncf %280 : vector<8x8xf32> to vector<8x8xbf16>
    %283 = arith.truncf %281 : vector<8x8xf32> to vector<8x8xbf16>
    %cst_114 = arith.constant dense<0.000000e+00> : vector<8x8xf32>
    %284 = tpu.matmul %282, %283, %cst_114 {dimension_numbers = #tpu.dot_dimension_numbers<[1], [0], [0], [1], [0, 0, 1, 1], [], []>} : vector<8x8xbf16>, vector<8x8xbf16>, vector<8x8xf32> -> vector<8x8xf32>
    %285 = vector.extract_strided_slice %279 {offsets = [8, 0], sizes = [8, 8], strides = [1, 1]} : vector<32x8xf32> to vector<8x8xf32>
    %286 = vector.extract_strided_slice %229 {offsets = [0, 8], sizes = [8, 8], strides = [1, 1]} : vector<8x32xf32> to vector<8x8xf32>
    %287 = arith.truncf %285 : vector<8x8xf32> to vector<8x8xbf16>
    %288 = arith.truncf %286 : vector<8x8xf32> to vector<8x8xbf16>
    %cst_115 = arith.constant dense<0.000000e+00> : vector<8x8xf32>
    %289 = tpu.matmul %287, %288, %cst_115 {dimension_numbers = #tpu.dot_dimension_numbers<[1], [0], [0], [1], [0, 0, 1, 1], [], []>} : vector<8x8xbf16>, vector<8x8xbf16>, vector<8x8xf32> -> vector<8x8xf32>
    %290 = vector.extract_strided_slice %279 {offsets = [16, 0], sizes = [8, 8], strides = [1, 1]} : vector<32x8xf32> to vector<8x8xf32>
    %291 = vector.extract_strided_slice %229 {offsets = [0, 16], sizes = [8, 8], strides = [1, 1]} : vector<8x32xf32> to vector<8x8xf32>
    %292 = arith.truncf %290 : vector<8x8xf32> to vector<8x8xbf16>
    %293 = arith.truncf %291 : vector<8x8xf32> to vector<8x8xbf16>
    %cst_116 = arith.constant dense<0.000000e+00> : vector<8x8xf32>
    %294 = tpu.matmul %292, %293, %cst_116 {dimension_numbers = #tpu.dot_dimension_numbers<[1], [0], [0], [1], [0, 0, 1, 1], [], []>} : vector<8x8xbf16>, vector<8x8xbf16>, vector<8x8xf32> -> vector<8x8xf32>
    %295 = vector.extract_strided_slice %279 {offsets = [24, 0], sizes = [8, 8], strides = [1, 1]} : vector<32x8xf32> to vector<8x8xf32>
    %296 = vector.extract_strided_slice %229 {offsets = [0, 24], sizes = [8, 8], strides = [1, 1]} : vector<8x32xf32> to vector<8x8xf32>
    %297 = arith.truncf %295 : vector<8x8xf32> to vector<8x8xbf16>
    %298 = arith.truncf %296 : vector<8x8xf32> to vector<8x8xbf16>
    %cst_117 = arith.constant dense<0.000000e+00> : vector<8x8xf32>
    %299 = tpu.matmul %297, %298, %cst_117 {dimension_numbers = #tpu.dot_dimension_numbers<[1], [0], [0], [1], [0, 0, 1, 1], [], []>} : vector<8x8xbf16>, vector<8x8xbf16>, vector<8x8xf32> -> vector<8x8xf32>
    %300 = tpu.concatenate %284, %289, %294, %299 in 1 : vector<8x8xf32>, vector<8x8xf32>, vector<8x8xf32>, vector<8x8xf32> -> vector<8x32xf32>
    %301 = arith.truncf %300 : vector<8x32xf32> to vector<8x32xbf16>
    %cst_118 = arith.constant dense<0.000000e+00> : vector<8x32xf32>
    %302 = tpu.matmul %301, %231, %cst_118 {dimension_numbers = #tpu.dot_dimension_numbers<[1], [0], [0], [1], [0, 0, 1, 1], [], []>} : vector<8x32xbf16>, vector<32x32xbf16>, vector<8x32xf32> -> vector<8x32xf32>
    %303 = vector.broadcast %233 : vector<1x32xf32> to vector<8x32xf32>
    %304 = arith.addf %302, %303 : vector<8x32xf32>
    %305 = arith.addf %218, %304 : vector<8x32xf32>
    %c4 = arith.constant 4 : index
    %c0_119 = arith.constant 0 : index
    %c0_120 = arith.constant 0 : index
    %306 = vector.load %arg6[%c4, %c0_119, %c0_120] : memref<12x1x32xf32, #tpu.memory_space<vmem>>, vector<1x1x32xf32>
    %307 = vector.shape_cast %306 : vector<1x1x32xf32> to vector<1x32xf32>
    %c4_121 = arith.constant 4 : index
    %c0_122 = arith.constant 0 : index
    %c0_123 = arith.constant 0 : index
    %308 = vector.load %arg7[%c4_121, %c0_122, %c0_123] : memref<12x1x32xf32, #tpu.memory_space<vmem>>, vector<1x1x32xf32>
    %309 = vector.shape_cast %308 : vector<1x1x32xf32> to vector<1x32xf32>
    %cst_124 = arith.constant dense<0.000000e+00> : vector<8xf32>
    %310 = vector.multi_reduction <add>, %305, %cst_124 [1] : vector<8x32xf32> to vector<8xf32>
    %311 = vector.shape_cast %310 : vector<8xf32> to vector<8x1xf32>
    %cst_125 = arith.constant 3.200000e+01 : f32
    %312 = vector.broadcast %cst_125 : f32 to vector<8x1xf32>
    %313 = arith.divf %311, %312 : vector<8x1xf32>
    %314 = arith.mulf %305, %305 : vector<8x32xf32>
    %cst_126 = arith.constant dense<0.000000e+00> : vector<8xf32>
    %315 = vector.multi_reduction <add>, %314, %cst_126 [1] : vector<8x32xf32> to vector<8xf32>
    %316 = vector.shape_cast %315 : vector<8xf32> to vector<8x1xf32>
    %cst_127 = arith.constant 3.200000e+01 : f32
    %317 = vector.broadcast %cst_127 : f32 to vector<8x1xf32>
    %318 = arith.divf %316, %317 : vector<8x1xf32>
    %319 = arith.mulf %313, %313 : vector<8x1xf32>
    %320 = arith.subf %318, %319 : vector<8x1xf32>
    %321 = vector.broadcast %313 : vector<8x1xf32> to vector<8x32xf32>
    %322 = arith.subf %305, %321 : vector<8x32xf32>
    %cst_128 = arith.constant 9.99999974E-6 : f32
    %323 = vector.broadcast %cst_128 : f32 to vector<8x1xf32>
    %324 = arith.addf %320, %323 : vector<8x1xf32>
    %325 = math.rsqrt %324 : vector<8x1xf32>
    %326 = vector.broadcast %325 : vector<8x1xf32> to vector<8x32xf32>
    %327 = arith.mulf %322, %326 : vector<8x32xf32>
    %328 = vector.broadcast %307 : vector<1x32xf32> to vector<8x32xf32>
    %329 = arith.mulf %327, %328 : vector<8x32xf32>
    %330 = vector.broadcast %309 : vector<1x32xf32> to vector<8x32xf32>
    %331 = arith.addf %329, %330 : vector<8x32xf32>
    %c1_129 = arith.constant 1 : index
    %c0_130 = arith.constant 0 : index
    %c0_131 = arith.constant 0 : index
    %332 = vector.load %arg14[%c1_129, %c0_130, %c0_131] : memref<4x32x64xbf16, #tpu.memory_space<vmem>>, vector<1x32x64xbf16>
    %333 = vector.shape_cast %332 : vector<1x32x64xbf16> to vector<32x64xbf16>
    %334 = arith.truncf %331 : vector<8x32xf32> to vector<8x32xbf16>
    %cst_132 = arith.constant dense<0.000000e+00> : vector<8x64xf32>
    %335 = tpu.matmul %334, %333, %cst_132 {dimension_numbers = #tpu.dot_dimension_numbers<[1], [0], [0], [1], [0, 0, 1, 1], [], []>} : vector<8x32xbf16>, vector<32x64xbf16>, vector<8x64xf32> -> vector<8x64xf32>
    %c1_133 = arith.constant 1 : index
    %c0_134 = arith.constant 0 : index
    %c0_135 = arith.constant 0 : index
    %336 = vector.load %arg15[%c1_133, %c0_134, %c0_135] : memref<4x1x64xf32, #tpu.memory_space<vmem>>, vector<1x1x64xf32>
    %337 = vector.shape_cast %336 : vector<1x1x64xf32> to vector<1x64xf32>
    %338 = vector.broadcast %337 : vector<1x64xf32> to vector<8x64xf32>
    %339 = arith.addf %335, %338 : vector<8x64xf32>
    %340 = arith.mulf %339, %339 : vector<8x64xf32>
    %341 = arith.mulf %339, %340 : vector<8x64xf32>
    %cst_136 = arith.constant 4.471500e-02 : f32
    %342 = vector.broadcast %cst_136 : f32 to vector<8x64xf32>
    %343 = arith.mulf %342, %341 : vector<8x64xf32>
    %344 = arith.addf %339, %343 : vector<8x64xf32>
    %cst_137 = arith.constant 0.797884583 : f32
    %345 = vector.broadcast %cst_137 : f32 to vector<8x64xf32>
    %346 = arith.mulf %345, %344 : vector<8x64xf32>
    %347 = math.tanh %346 : vector<8x64xf32>
    %cst_138 = arith.constant 1.000000e+00 : f32
    %348 = vector.broadcast %cst_138 : f32 to vector<8x64xf32>
    %349 = arith.addf %348, %347 : vector<8x64xf32>
    %cst_139 = arith.constant 5.000000e-01 : f32
    %350 = vector.broadcast %cst_139 : f32 to vector<8x64xf32>
    %351 = arith.mulf %350, %349 : vector<8x64xf32>
    %352 = arith.mulf %339, %351 : vector<8x64xf32>
    %c1_140 = arith.constant 1 : index
    %c0_141 = arith.constant 0 : index
    %c0_142 = arith.constant 0 : index
    %353 = vector.load %arg16[%c1_140, %c0_141, %c0_142] : memref<4x64x32xbf16, #tpu.memory_space<vmem>>, vector<1x64x32xbf16>
    %354 = vector.shape_cast %353 : vector<1x64x32xbf16> to vector<64x32xbf16>
    %355 = arith.truncf %352 : vector<8x64xf32> to vector<8x64xbf16>
    %cst_143 = arith.constant dense<0.000000e+00> : vector<8x32xf32>
    %356 = tpu.matmul %355, %354, %cst_143 {dimension_numbers = #tpu.dot_dimension_numbers<[1], [0], [0], [1], [0, 0, 1, 1], [], []>} : vector<8x64xbf16>, vector<64x32xbf16>, vector<8x32xf32> -> vector<8x32xf32>
    %c1_144 = arith.constant 1 : index
    %c0_145 = arith.constant 0 : index
    %c0_146 = arith.constant 0 : index
    %357 = vector.load %arg17[%c1_144, %c0_145, %c0_146] : memref<4x1x32xf32, #tpu.memory_space<vmem>>, vector<1x1x32xf32>
    %358 = vector.shape_cast %357 : vector<1x1x32xf32> to vector<1x32xf32>
    %359 = vector.broadcast %358 : vector<1x32xf32> to vector<8x32xf32>
    %360 = arith.addf %356, %359 : vector<8x32xf32>
    %361 = arith.addf %331, %360 : vector<8x32xf32>
    %c5 = arith.constant 5 : index
    %c0_147 = arith.constant 0 : index
    %c0_148 = arith.constant 0 : index
    %362 = vector.load %arg6[%c5, %c0_147, %c0_148] : memref<12x1x32xf32, #tpu.memory_space<vmem>>, vector<1x1x32xf32>
    %363 = vector.shape_cast %362 : vector<1x1x32xf32> to vector<1x32xf32>
    %c5_149 = arith.constant 5 : index
    %c0_150 = arith.constant 0 : index
    %c0_151 = arith.constant 0 : index
    %364 = vector.load %arg7[%c5_149, %c0_150, %c0_151] : memref<12x1x32xf32, #tpu.memory_space<vmem>>, vector<1x1x32xf32>
    %365 = vector.shape_cast %364 : vector<1x1x32xf32> to vector<1x32xf32>
    %cst_152 = arith.constant dense<0.000000e+00> : vector<8xf32>
    %366 = vector.multi_reduction <add>, %361, %cst_152 [1] : vector<8x32xf32> to vector<8xf32>
    %367 = vector.shape_cast %366 : vector<8xf32> to vector<8x1xf32>
    %cst_153 = arith.constant 3.200000e+01 : f32
    %368 = vector.broadcast %cst_153 : f32 to vector<8x1xf32>
    %369 = arith.divf %367, %368 : vector<8x1xf32>
    %370 = arith.mulf %361, %361 : vector<8x32xf32>
    %cst_154 = arith.constant dense<0.000000e+00> : vector<8xf32>
    %371 = vector.multi_reduction <add>, %370, %cst_154 [1] : vector<8x32xf32> to vector<8xf32>
    %372 = vector.shape_cast %371 : vector<8xf32> to vector<8x1xf32>
    %cst_155 = arith.constant 3.200000e+01 : f32
    %373 = vector.broadcast %cst_155 : f32 to vector<8x1xf32>
    %374 = arith.divf %372, %373 : vector<8x1xf32>
    %375 = arith.mulf %369, %369 : vector<8x1xf32>
    %376 = arith.subf %374, %375 : vector<8x1xf32>
    %377 = vector.broadcast %369 : vector<8x1xf32> to vector<8x32xf32>
    %378 = arith.subf %361, %377 : vector<8x32xf32>
    %cst_156 = arith.constant 9.99999974E-6 : f32
    %379 = vector.broadcast %cst_156 : f32 to vector<8x1xf32>
    %380 = arith.addf %376, %379 : vector<8x1xf32>
    %381 = math.rsqrt %380 : vector<8x1xf32>
    %382 = vector.broadcast %381 : vector<8x1xf32> to vector<8x32xf32>
    %383 = arith.mulf %378, %382 : vector<8x32xf32>
    %384 = vector.broadcast %363 : vector<1x32xf32> to vector<8x32xf32>
    %385 = arith.mulf %383, %384 : vector<8x32xf32>
    %386 = vector.broadcast %365 : vector<1x32xf32> to vector<8x32xf32>
    %387 = arith.addf %385, %386 : vector<8x32xf32>
    %c0_157 = arith.constant 0 : index
    %c0_158 = arith.constant 0 : index
    %c0_159 = arith.constant 0 : index
    %388 = vector.load %arg2[%c0_157, %c0_158, %c0_159] : memref<1x8x32xf32, #tpu.memory_space<vmem>>, vector<1x8x32xf32>
    %389 = vector.shape_cast %388 : vector<1x8x32xf32> to vector<8x32xf32>
    %c1_160 = arith.constant 1 : index
    %c0_161 = arith.constant 0 : index
    %c0_162 = arith.constant 0 : index
    %390 = vector.load %arg6[%c1_160, %c0_161, %c0_162] : memref<12x1x32xf32, #tpu.memory_space<vmem>>, vector<1x1x32xf32>
    %391 = vector.shape_cast %390 : vector<1x1x32xf32> to vector<1x32xf32>
    %c1_163 = arith.constant 1 : index
    %c0_164 = arith.constant 0 : index
    %c0_165 = arith.constant 0 : index
    %392 = vector.load %arg7[%c1_163, %c0_164, %c0_165] : memref<12x1x32xf32, #tpu.memory_space<vmem>>, vector<1x1x32xf32>
    %393 = vector.shape_cast %392 : vector<1x1x32xf32> to vector<1x32xf32>
    %cst_166 = arith.constant dense<0.000000e+00> : vector<8xf32>
    %394 = vector.multi_reduction <add>, %389, %cst_166 [1] : vector<8x32xf32> to vector<8xf32>
    %395 = vector.shape_cast %394 : vector<8xf32> to vector<8x1xf32>
    %cst_167 = arith.constant 3.200000e+01 : f32
    %396 = vector.broadcast %cst_167 : f32 to vector<8x1xf32>
    %397 = arith.divf %395, %396 : vector<8x1xf32>
    %398 = arith.mulf %389, %389 : vector<8x32xf32>
    %cst_168 = arith.constant dense<0.000000e+00> : vector<8xf32>
    %399 = vector.multi_reduction <add>, %398, %cst_168 [1] : vector<8x32xf32> to vector<8xf32>
    %400 = vector.shape_cast %399 : vector<8xf32> to vector<8x1xf32>
    %cst_169 = arith.constant 3.200000e+01 : f32
    %401 = vector.broadcast %cst_169 : f32 to vector<8x1xf32>
    %402 = arith.divf %400, %401 : vector<8x1xf32>
    %403 = arith.mulf %397, %397 : vector<8x1xf32>
    %404 = arith.subf %402, %403 : vector<8x1xf32>
    %405 = vector.broadcast %397 : vector<8x1xf32> to vector<8x32xf32>
    %406 = arith.subf %389, %405 : vector<8x32xf32>
    %cst_170 = arith.constant 9.99999974E-6 : f32
    %407 = vector.broadcast %cst_170 : f32 to vector<8x1xf32>
    %408 = arith.addf %404, %407 : vector<8x1xf32>
    %409 = math.rsqrt %408 : vector<8x1xf32>
    %410 = vector.broadcast %409 : vector<8x1xf32> to vector<8x32xf32>
    %411 = arith.mulf %406, %410 : vector<8x32xf32>
    %412 = vector.broadcast %391 : vector<1x32xf32> to vector<8x32xf32>
    %413 = arith.mulf %411, %412 : vector<8x32xf32>
    %414 = vector.broadcast %393 : vector<1x32xf32> to vector<8x32xf32>
    %415 = arith.addf %413, %414 : vector<8x32xf32>
    %c2_171 = arith.constant 2 : index
    %c0_172 = arith.constant 0 : index
    %c0_173 = arith.constant 0 : index
    %416 = vector.load %arg8[%c2_171, %c0_172, %c0_173] : memref<4x32x96xbf16, #tpu.memory_space<vmem>>, vector<1x32x96xbf16>
    %417 = vector.shape_cast %416 : vector<1x32x96xbf16> to vector<32x96xbf16>
    %418 = arith.truncf %415 : vector<8x32xf32> to vector<8x32xbf16>
    %cst_174 = arith.constant dense<0.000000e+00> : vector<8x96xf32>
    %419 = tpu.matmul %418, %417, %cst_174 {dimension_numbers = #tpu.dot_dimension_numbers<[1], [0], [0], [1], [0, 0, 1, 1], [], []>} : vector<8x32xbf16>, vector<32x96xbf16>, vector<8x96xf32> -> vector<8x96xf32>
    %c2_175 = arith.constant 2 : index
    %c0_176 = arith.constant 0 : index
    %c0_177 = arith.constant 0 : index
    %420 = vector.load %arg9[%c2_175, %c0_176, %c0_177] : memref<4x1x96xf32, #tpu.memory_space<vmem>>, vector<1x1x96xf32>
    %421 = vector.shape_cast %420 : vector<1x1x96xf32> to vector<1x96xf32>
    %422 = vector.broadcast %421 : vector<1x96xf32> to vector<8x96xf32>
    %423 = arith.addf %419, %422 : vector<8x96xf32>
    %424 = vector.extract_strided_slice %423 {offsets = [0, 0], sizes = [8, 32], strides = [1, 1]} : vector<8x96xf32> to vector<8x32xf32>
    %425 = vector.extract_strided_slice %423 {offsets = [0, 32], sizes = [8, 32], strides = [1, 1]} : vector<8x96xf32> to vector<8x32xf32>
    %426 = vector.extract_strided_slice %423 {offsets = [0, 64], sizes = [8, 32], strides = [1, 1]} : vector<8x96xf32> to vector<8x32xf32>
    %c2_178 = arith.constant 2 : index
    %c0_179 = arith.constant 0 : index
    %c0_180 = arith.constant 0 : index
    %427 = vector.load %arg10[%c2_178, %c0_179, %c0_180] : memref<8x32x32xbf16, #tpu.memory_space<vmem>>, vector<1x32x32xbf16>
    %428 = vector.shape_cast %427 : vector<1x32x32xbf16> to vector<32x32xbf16>
    %c2_181 = arith.constant 2 : index
    %c0_182 = arith.constant 0 : index
    %c0_183 = arith.constant 0 : index
    %429 = vector.load %arg11[%c2_181, %c0_182, %c0_183] : memref<8x1x32xf32, #tpu.memory_space<vmem>>, vector<1x1x32xf32>
    %430 = vector.shape_cast %429 : vector<1x1x32xf32> to vector<1x32xf32>
    %431 = vector.extract_strided_slice %424 {offsets = [0, 0], sizes = [8, 8], strides = [1, 1]} : vector<8x32xf32> to vector<8x8xf32>
    %432 = vector.extract_strided_slice %425 {offsets = [0, 0], sizes = [8, 8], strides = [1, 1]} : vector<8x32xf32> to vector<8x8xf32>
    %433 = arith.truncf %431 : vector<8x8xf32> to vector<8x8xbf16>
    %434 = arith.truncf %432 : vector<8x8xf32> to vector<8x8xbf16>
    %cst_184 = arith.constant dense<0.000000e+00> : vector<8x8xf32>
    %435 = tpu.matmul %433, %434, %cst_184 {dimension_numbers = #tpu.dot_dimension_numbers<[1], [1], [0], [0], [0, 0, 1, 0], [], []>} : vector<8x8xbf16>, vector<8x8xbf16>, vector<8x8xf32> -> vector<8x8xf32>
    %cst_185 = arith.constant 0.353553385 : f32
    %436 = vector.broadcast %cst_185 : f32 to vector<8x8xf32>
    %437 = arith.mulf %435, %436 : vector<8x8xf32>
    %438 = arith.addf %437, %21 : vector<8x8xf32>
    %439 = vector.extract_strided_slice %424 {offsets = [0, 8], sizes = [8, 8], strides = [1, 1]} : vector<8x32xf32> to vector<8x8xf32>
    %440 = vector.extract_strided_slice %425 {offsets = [0, 8], sizes = [8, 8], strides = [1, 1]} : vector<8x32xf32> to vector<8x8xf32>
    %441 = arith.truncf %439 : vector<8x8xf32> to vector<8x8xbf16>
    %442 = arith.truncf %440 : vector<8x8xf32> to vector<8x8xbf16>
    %cst_186 = arith.constant dense<0.000000e+00> : vector<8x8xf32>
    %443 = tpu.matmul %441, %442, %cst_186 {dimension_numbers = #tpu.dot_dimension_numbers<[1], [1], [0], [0], [0, 0, 1, 0], [], []>} : vector<8x8xbf16>, vector<8x8xbf16>, vector<8x8xf32> -> vector<8x8xf32>
    %cst_187 = arith.constant 0.353553385 : f32
    %444 = vector.broadcast %cst_187 : f32 to vector<8x8xf32>
    %445 = arith.mulf %443, %444 : vector<8x8xf32>
    %446 = arith.addf %445, %21 : vector<8x8xf32>
    %447 = vector.extract_strided_slice %424 {offsets = [0, 16], sizes = [8, 8], strides = [1, 1]} : vector<8x32xf32> to vector<8x8xf32>
    %448 = vector.extract_strided_slice %425 {offsets = [0, 16], sizes = [8, 8], strides = [1, 1]} : vector<8x32xf32> to vector<8x8xf32>
    %449 = arith.truncf %447 : vector<8x8xf32> to vector<8x8xbf16>
    %450 = arith.truncf %448 : vector<8x8xf32> to vector<8x8xbf16>
    %cst_188 = arith.constant dense<0.000000e+00> : vector<8x8xf32>
    %451 = tpu.matmul %449, %450, %cst_188 {dimension_numbers = #tpu.dot_dimension_numbers<[1], [1], [0], [0], [0, 0, 1, 0], [], []>} : vector<8x8xbf16>, vector<8x8xbf16>, vector<8x8xf32> -> vector<8x8xf32>
    %cst_189 = arith.constant 0.353553385 : f32
    %452 = vector.broadcast %cst_189 : f32 to vector<8x8xf32>
    %453 = arith.mulf %451, %452 : vector<8x8xf32>
    %454 = arith.addf %453, %21 : vector<8x8xf32>
    %455 = vector.extract_strided_slice %424 {offsets = [0, 24], sizes = [8, 8], strides = [1, 1]} : vector<8x32xf32> to vector<8x8xf32>
    %456 = vector.extract_strided_slice %425 {offsets = [0, 24], sizes = [8, 8], strides = [1, 1]} : vector<8x32xf32> to vector<8x8xf32>
    %457 = arith.truncf %455 : vector<8x8xf32> to vector<8x8xbf16>
    %458 = arith.truncf %456 : vector<8x8xf32> to vector<8x8xbf16>
    %cst_190 = arith.constant dense<0.000000e+00> : vector<8x8xf32>
    %459 = tpu.matmul %457, %458, %cst_190 {dimension_numbers = #tpu.dot_dimension_numbers<[1], [1], [0], [0], [0, 0, 1, 0], [], []>} : vector<8x8xbf16>, vector<8x8xbf16>, vector<8x8xf32> -> vector<8x8xf32>
    %cst_191 = arith.constant 0.353553385 : f32
    %460 = vector.broadcast %cst_191 : f32 to vector<8x8xf32>
    %461 = arith.mulf %459, %460 : vector<8x8xf32>
    %462 = arith.addf %461, %21 : vector<8x8xf32>
    %463 = tpu.concatenate %438, %446, %454, %462 in 0 : vector<8x8xf32>, vector<8x8xf32>, vector<8x8xf32>, vector<8x8xf32> -> vector<32x8xf32>
    %cst_192 = arith.constant dense<0xFF800000> : vector<32xf32>
    %464 = vector.multi_reduction <maximumf>, %463, %cst_192 [1] : vector<32x8xf32> to vector<32xf32>
    %465 = vector.shape_cast %464 : vector<32xf32> to vector<32x1xf32>
    %466 = vector.broadcast %465 : vector<32x1xf32> to vector<32x8xf32>
    %467 = arith.subf %463, %466 : vector<32x8xf32>
    %468 = math.exp %467 : vector<32x8xf32>
    %cst_193 = arith.constant dense<0.000000e+00> : vector<32xf32>
    %469 = vector.multi_reduction <add>, %468, %cst_193 [1] : vector<32x8xf32> to vector<32xf32>
    %470 = vector.shape_cast %469 : vector<32xf32> to vector<32x1xf32>
    %471 = vector.broadcast %470 : vector<32x1xf32> to vector<32x8xf32>
    %472 = arith.divf %468, %471 : vector<32x8xf32>
    %473 = vector.extract_strided_slice %472 {offsets = [0, 0], sizes = [8, 8], strides = [1, 1]} : vector<32x8xf32> to vector<8x8xf32>
    %474 = vector.extract_strided_slice %426 {offsets = [0, 0], sizes = [8, 8], strides = [1, 1]} : vector<8x32xf32> to vector<8x8xf32>
    %475 = arith.truncf %473 : vector<8x8xf32> to vector<8x8xbf16>
    %476 = arith.truncf %474 : vector<8x8xf32> to vector<8x8xbf16>
    %cst_194 = arith.constant dense<0.000000e+00> : vector<8x8xf32>
    %477 = tpu.matmul %475, %476, %cst_194 {dimension_numbers = #tpu.dot_dimension_numbers<[1], [0], [0], [1], [0, 0, 1, 1], [], []>} : vector<8x8xbf16>, vector<8x8xbf16>, vector<8x8xf32> -> vector<8x8xf32>
    %478 = vector.extract_strided_slice %472 {offsets = [8, 0], sizes = [8, 8], strides = [1, 1]} : vector<32x8xf32> to vector<8x8xf32>
    %479 = vector.extract_strided_slice %426 {offsets = [0, 8], sizes = [8, 8], strides = [1, 1]} : vector<8x32xf32> to vector<8x8xf32>
    %480 = arith.truncf %478 : vector<8x8xf32> to vector<8x8xbf16>
    %481 = arith.truncf %479 : vector<8x8xf32> to vector<8x8xbf16>
    %cst_195 = arith.constant dense<0.000000e+00> : vector<8x8xf32>
    %482 = tpu.matmul %480, %481, %cst_195 {dimension_numbers = #tpu.dot_dimension_numbers<[1], [0], [0], [1], [0, 0, 1, 1], [], []>} : vector<8x8xbf16>, vector<8x8xbf16>, vector<8x8xf32> -> vector<8x8xf32>
    %483 = vector.extract_strided_slice %472 {offsets = [16, 0], sizes = [8, 8], strides = [1, 1]} : vector<32x8xf32> to vector<8x8xf32>
    %484 = vector.extract_strided_slice %426 {offsets = [0, 16], sizes = [8, 8], strides = [1, 1]} : vector<8x32xf32> to vector<8x8xf32>
    %485 = arith.truncf %483 : vector<8x8xf32> to vector<8x8xbf16>
    %486 = arith.truncf %484 : vector<8x8xf32> to vector<8x8xbf16>
    %cst_196 = arith.constant dense<0.000000e+00> : vector<8x8xf32>
    %487 = tpu.matmul %485, %486, %cst_196 {dimension_numbers = #tpu.dot_dimension_numbers<[1], [0], [0], [1], [0, 0, 1, 1], [], []>} : vector<8x8xbf16>, vector<8x8xbf16>, vector<8x8xf32> -> vector<8x8xf32>
    %488 = vector.extract_strided_slice %472 {offsets = [24, 0], sizes = [8, 8], strides = [1, 1]} : vector<32x8xf32> to vector<8x8xf32>
    %489 = vector.extract_strided_slice %426 {offsets = [0, 24], sizes = [8, 8], strides = [1, 1]} : vector<8x32xf32> to vector<8x8xf32>
    %490 = arith.truncf %488 : vector<8x8xf32> to vector<8x8xbf16>
    %491 = arith.truncf %489 : vector<8x8xf32> to vector<8x8xbf16>
    %cst_197 = arith.constant dense<0.000000e+00> : vector<8x8xf32>
    %492 = tpu.matmul %490, %491, %cst_197 {dimension_numbers = #tpu.dot_dimension_numbers<[1], [0], [0], [1], [0, 0, 1, 1], [], []>} : vector<8x8xbf16>, vector<8x8xbf16>, vector<8x8xf32> -> vector<8x8xf32>
    %493 = tpu.concatenate %477, %482, %487, %492 in 1 : vector<8x8xf32>, vector<8x8xf32>, vector<8x8xf32>, vector<8x8xf32> -> vector<8x32xf32>
    %494 = arith.truncf %493 : vector<8x32xf32> to vector<8x32xbf16>
    %cst_198 = arith.constant dense<0.000000e+00> : vector<8x32xf32>
    %495 = tpu.matmul %494, %428, %cst_198 {dimension_numbers = #tpu.dot_dimension_numbers<[1], [0], [0], [1], [0, 0, 1, 1], [], []>} : vector<8x32xbf16>, vector<32x32xbf16>, vector<8x32xf32> -> vector<8x32xf32>
    %496 = vector.broadcast %430 : vector<1x32xf32> to vector<8x32xf32>
    %497 = arith.addf %495, %496 : vector<8x32xf32>
    %498 = arith.addf %415, %497 : vector<8x32xf32>
    %c6 = arith.constant 6 : index
    %c0_199 = arith.constant 0 : index
    %c0_200 = arith.constant 0 : index
    %499 = vector.load %arg6[%c6, %c0_199, %c0_200] : memref<12x1x32xf32, #tpu.memory_space<vmem>>, vector<1x1x32xf32>
    %500 = vector.shape_cast %499 : vector<1x1x32xf32> to vector<1x32xf32>
    %c6_201 = arith.constant 6 : index
    %c0_202 = arith.constant 0 : index
    %c0_203 = arith.constant 0 : index
    %501 = vector.load %arg7[%c6_201, %c0_202, %c0_203] : memref<12x1x32xf32, #tpu.memory_space<vmem>>, vector<1x1x32xf32>
    %502 = vector.shape_cast %501 : vector<1x1x32xf32> to vector<1x32xf32>
    %cst_204 = arith.constant dense<0.000000e+00> : vector<8xf32>
    %503 = vector.multi_reduction <add>, %498, %cst_204 [1] : vector<8x32xf32> to vector<8xf32>
    %504 = vector.shape_cast %503 : vector<8xf32> to vector<8x1xf32>
    %cst_205 = arith.constant 3.200000e+01 : f32
    %505 = vector.broadcast %cst_205 : f32 to vector<8x1xf32>
    %506 = arith.divf %504, %505 : vector<8x1xf32>
    %507 = arith.mulf %498, %498 : vector<8x32xf32>
    %cst_206 = arith.constant dense<0.000000e+00> : vector<8xf32>
    %508 = vector.multi_reduction <add>, %507, %cst_206 [1] : vector<8x32xf32> to vector<8xf32>
    %509 = vector.shape_cast %508 : vector<8xf32> to vector<8x1xf32>
    %cst_207 = arith.constant 3.200000e+01 : f32
    %510 = vector.broadcast %cst_207 : f32 to vector<8x1xf32>
    %511 = arith.divf %509, %510 : vector<8x1xf32>
    %512 = arith.mulf %506, %506 : vector<8x1xf32>
    %513 = arith.subf %511, %512 : vector<8x1xf32>
    %514 = vector.broadcast %506 : vector<8x1xf32> to vector<8x32xf32>
    %515 = arith.subf %498, %514 : vector<8x32xf32>
    %cst_208 = arith.constant 9.99999974E-6 : f32
    %516 = vector.broadcast %cst_208 : f32 to vector<8x1xf32>
    %517 = arith.addf %513, %516 : vector<8x1xf32>
    %518 = math.rsqrt %517 : vector<8x1xf32>
    %519 = vector.broadcast %518 : vector<8x1xf32> to vector<8x32xf32>
    %520 = arith.mulf %515, %519 : vector<8x32xf32>
    %521 = vector.broadcast %500 : vector<1x32xf32> to vector<8x32xf32>
    %522 = arith.mulf %520, %521 : vector<8x32xf32>
    %523 = vector.broadcast %502 : vector<1x32xf32> to vector<8x32xf32>
    %524 = arith.addf %522, %523 : vector<8x32xf32>
    %c6_209 = arith.constant 6 : index
    %c0_210 = arith.constant 0 : index
    %c0_211 = arith.constant 0 : index
    %525 = vector.load %arg10[%c6_209, %c0_210, %c0_211] : memref<8x32x32xbf16, #tpu.memory_space<vmem>>, vector<1x32x32xbf16>
    %526 = vector.shape_cast %525 : vector<1x32x32xbf16> to vector<32x32xbf16>
    %527 = arith.truncf %524 : vector<8x32xf32> to vector<8x32xbf16>
    %cst_212 = arith.constant dense<0.000000e+00> : vector<8x32xf32>
    %528 = tpu.matmul %527, %526, %cst_212 {dimension_numbers = #tpu.dot_dimension_numbers<[1], [0], [0], [1], [0, 0, 1, 1], [], []>} : vector<8x32xbf16>, vector<32x32xbf16>, vector<8x32xf32> -> vector<8x32xf32>
    %c6_213 = arith.constant 6 : index
    %c0_214 = arith.constant 0 : index
    %c0_215 = arith.constant 0 : index
    %529 = vector.load %arg11[%c6_213, %c0_214, %c0_215] : memref<8x1x32xf32, #tpu.memory_space<vmem>>, vector<1x1x32xf32>
    %530 = vector.shape_cast %529 : vector<1x1x32xf32> to vector<1x32xf32>
    %531 = vector.broadcast %530 : vector<1x32xf32> to vector<8x32xf32>
    %532 = arith.addf %528, %531 : vector<8x32xf32>
    %c0_216 = arith.constant 0 : index
    %c0_217 = arith.constant 0 : index
    %c0_218 = arith.constant 0 : index
    %533 = vector.load %arg12[%c0_216, %c0_217, %c0_218] : memref<2x32x64xbf16, #tpu.memory_space<vmem>>, vector<1x32x64xbf16>
    %534 = vector.shape_cast %533 : vector<1x32x64xbf16> to vector<32x64xbf16>
    %535 = arith.truncf %387 : vector<8x32xf32> to vector<8x32xbf16>
    %cst_219 = arith.constant dense<0.000000e+00> : vector<8x64xf32>
    %536 = tpu.matmul %535, %534, %cst_219 {dimension_numbers = #tpu.dot_dimension_numbers<[1], [0], [0], [1], [0, 0, 1, 1], [], []>} : vector<8x32xbf16>, vector<32x64xbf16>, vector<8x64xf32> -> vector<8x64xf32>
    %c0_220 = arith.constant 0 : index
    %c0_221 = arith.constant 0 : index
    %c0_222 = arith.constant 0 : index
    %537 = vector.load %arg13[%c0_220, %c0_221, %c0_222] : memref<2x1x64xf32, #tpu.memory_space<vmem>>, vector<1x1x64xf32>
    %538 = vector.shape_cast %537 : vector<1x1x64xf32> to vector<1x64xf32>
    %539 = vector.broadcast %538 : vector<1x64xf32> to vector<8x64xf32>
    %540 = arith.addf %536, %539 : vector<8x64xf32>
    %541 = vector.extract_strided_slice %540 {offsets = [0, 0], sizes = [8, 32], strides = [1, 1]} : vector<8x64xf32> to vector<8x32xf32>
    %542 = vector.extract_strided_slice %540 {offsets = [0, 32], sizes = [8, 32], strides = [1, 1]} : vector<8x64xf32> to vector<8x32xf32>
    %c4_223 = arith.constant 4 : index
    %c0_224 = arith.constant 0 : index
    %c0_225 = arith.constant 0 : index
    %543 = vector.load %arg10[%c4_223, %c0_224, %c0_225] : memref<8x32x32xbf16, #tpu.memory_space<vmem>>, vector<1x32x32xbf16>
    %544 = vector.shape_cast %543 : vector<1x32x32xbf16> to vector<32x32xbf16>
    %c4_226 = arith.constant 4 : index
    %c0_227 = arith.constant 0 : index
    %c0_228 = arith.constant 0 : index
    %545 = vector.load %arg11[%c4_226, %c0_227, %c0_228] : memref<8x1x32xf32, #tpu.memory_space<vmem>>, vector<1x1x32xf32>
    %546 = vector.shape_cast %545 : vector<1x1x32xf32> to vector<1x32xf32>
    %547 = vector.extract_strided_slice %532 {offsets = [0, 0], sizes = [8, 8], strides = [1, 1]} : vector<8x32xf32> to vector<8x8xf32>
    %548 = vector.extract_strided_slice %541 {offsets = [0, 0], sizes = [8, 8], strides = [1, 1]} : vector<8x32xf32> to vector<8x8xf32>
    %549 = arith.truncf %547 : vector<8x8xf32> to vector<8x8xbf16>
    %550 = arith.truncf %548 : vector<8x8xf32> to vector<8x8xbf16>
    %cst_229 = arith.constant dense<0.000000e+00> : vector<8x8xf32>
    %551 = tpu.matmul %549, %550, %cst_229 {dimension_numbers = #tpu.dot_dimension_numbers<[1], [1], [0], [0], [0, 0, 1, 0], [], []>} : vector<8x8xbf16>, vector<8x8xbf16>, vector<8x8xf32> -> vector<8x8xf32>
    %cst_230 = arith.constant 0.353553385 : f32
    %552 = vector.broadcast %cst_230 : f32 to vector<8x8xf32>
    %553 = arith.mulf %551, %552 : vector<8x8xf32>
    %554 = vector.broadcast %6 : vector<1x8xf32> to vector<8x8xf32>
    %555 = arith.addf %553, %554 : vector<8x8xf32>
    %556 = vector.extract_strided_slice %532 {offsets = [0, 8], sizes = [8, 8], strides = [1, 1]} : vector<8x32xf32> to vector<8x8xf32>
    %557 = vector.extract_strided_slice %541 {offsets = [0, 8], sizes = [8, 8], strides = [1, 1]} : vector<8x32xf32> to vector<8x8xf32>
    %558 = arith.truncf %556 : vector<8x8xf32> to vector<8x8xbf16>
    %559 = arith.truncf %557 : vector<8x8xf32> to vector<8x8xbf16>
    %cst_231 = arith.constant dense<0.000000e+00> : vector<8x8xf32>
    %560 = tpu.matmul %558, %559, %cst_231 {dimension_numbers = #tpu.dot_dimension_numbers<[1], [1], [0], [0], [0, 0, 1, 0], [], []>} : vector<8x8xbf16>, vector<8x8xbf16>, vector<8x8xf32> -> vector<8x8xf32>
    %cst_232 = arith.constant 0.353553385 : f32
    %561 = vector.broadcast %cst_232 : f32 to vector<8x8xf32>
    %562 = arith.mulf %560, %561 : vector<8x8xf32>
    %563 = vector.broadcast %6 : vector<1x8xf32> to vector<8x8xf32>
    %564 = arith.addf %562, %563 : vector<8x8xf32>
    %565 = vector.extract_strided_slice %532 {offsets = [0, 16], sizes = [8, 8], strides = [1, 1]} : vector<8x32xf32> to vector<8x8xf32>
    %566 = vector.extract_strided_slice %541 {offsets = [0, 16], sizes = [8, 8], strides = [1, 1]} : vector<8x32xf32> to vector<8x8xf32>
    %567 = arith.truncf %565 : vector<8x8xf32> to vector<8x8xbf16>
    %568 = arith.truncf %566 : vector<8x8xf32> to vector<8x8xbf16>
    %cst_233 = arith.constant dense<0.000000e+00> : vector<8x8xf32>
    %569 = tpu.matmul %567, %568, %cst_233 {dimension_numbers = #tpu.dot_dimension_numbers<[1], [1], [0], [0], [0, 0, 1, 0], [], []>} : vector<8x8xbf16>, vector<8x8xbf16>, vector<8x8xf32> -> vector<8x8xf32>
    %cst_234 = arith.constant 0.353553385 : f32
    %570 = vector.broadcast %cst_234 : f32 to vector<8x8xf32>
    %571 = arith.mulf %569, %570 : vector<8x8xf32>
    %572 = vector.broadcast %6 : vector<1x8xf32> to vector<8x8xf32>
    %573 = arith.addf %571, %572 : vector<8x8xf32>
    %574 = vector.extract_strided_slice %532 {offsets = [0, 24], sizes = [8, 8], strides = [1, 1]} : vector<8x32xf32> to vector<8x8xf32>
    %575 = vector.extract_strided_slice %541 {offsets = [0, 24], sizes = [8, 8], strides = [1, 1]} : vector<8x32xf32> to vector<8x8xf32>
    %576 = arith.truncf %574 : vector<8x8xf32> to vector<8x8xbf16>
    %577 = arith.truncf %575 : vector<8x8xf32> to vector<8x8xbf16>
    %cst_235 = arith.constant dense<0.000000e+00> : vector<8x8xf32>
    %578 = tpu.matmul %576, %577, %cst_235 {dimension_numbers = #tpu.dot_dimension_numbers<[1], [1], [0], [0], [0, 0, 1, 0], [], []>} : vector<8x8xbf16>, vector<8x8xbf16>, vector<8x8xf32> -> vector<8x8xf32>
    %cst_236 = arith.constant 0.353553385 : f32
    %579 = vector.broadcast %cst_236 : f32 to vector<8x8xf32>
    %580 = arith.mulf %578, %579 : vector<8x8xf32>
    %581 = vector.broadcast %6 : vector<1x8xf32> to vector<8x8xf32>
    %582 = arith.addf %580, %581 : vector<8x8xf32>
    %583 = tpu.concatenate %555, %564, %573, %582 in 0 : vector<8x8xf32>, vector<8x8xf32>, vector<8x8xf32>, vector<8x8xf32> -> vector<32x8xf32>
    %cst_237 = arith.constant dense<0xFF800000> : vector<32xf32>
    %584 = vector.multi_reduction <maximumf>, %583, %cst_237 [1] : vector<32x8xf32> to vector<32xf32>
    %585 = vector.shape_cast %584 : vector<32xf32> to vector<32x1xf32>
    %586 = vector.broadcast %585 : vector<32x1xf32> to vector<32x8xf32>
    %587 = arith.subf %583, %586 : vector<32x8xf32>
    %588 = math.exp %587 : vector<32x8xf32>
    %cst_238 = arith.constant dense<0.000000e+00> : vector<32xf32>
    %589 = vector.multi_reduction <add>, %588, %cst_238 [1] : vector<32x8xf32> to vector<32xf32>
    %590 = vector.shape_cast %589 : vector<32xf32> to vector<32x1xf32>
    %591 = vector.broadcast %590 : vector<32x1xf32> to vector<32x8xf32>
    %592 = arith.divf %588, %591 : vector<32x8xf32>
    %593 = vector.extract_strided_slice %592 {offsets = [0, 0], sizes = [8, 8], strides = [1, 1]} : vector<32x8xf32> to vector<8x8xf32>
    %594 = vector.extract_strided_slice %542 {offsets = [0, 0], sizes = [8, 8], strides = [1, 1]} : vector<8x32xf32> to vector<8x8xf32>
    %595 = arith.truncf %593 : vector<8x8xf32> to vector<8x8xbf16>
    %596 = arith.truncf %594 : vector<8x8xf32> to vector<8x8xbf16>
    %cst_239 = arith.constant dense<0.000000e+00> : vector<8x8xf32>
    %597 = tpu.matmul %595, %596, %cst_239 {dimension_numbers = #tpu.dot_dimension_numbers<[1], [0], [0], [1], [0, 0, 1, 1], [], []>} : vector<8x8xbf16>, vector<8x8xbf16>, vector<8x8xf32> -> vector<8x8xf32>
    %598 = vector.extract_strided_slice %592 {offsets = [8, 0], sizes = [8, 8], strides = [1, 1]} : vector<32x8xf32> to vector<8x8xf32>
    %599 = vector.extract_strided_slice %542 {offsets = [0, 8], sizes = [8, 8], strides = [1, 1]} : vector<8x32xf32> to vector<8x8xf32>
    %600 = arith.truncf %598 : vector<8x8xf32> to vector<8x8xbf16>
    %601 = arith.truncf %599 : vector<8x8xf32> to vector<8x8xbf16>
    %cst_240 = arith.constant dense<0.000000e+00> : vector<8x8xf32>
    %602 = tpu.matmul %600, %601, %cst_240 {dimension_numbers = #tpu.dot_dimension_numbers<[1], [0], [0], [1], [0, 0, 1, 1], [], []>} : vector<8x8xbf16>, vector<8x8xbf16>, vector<8x8xf32> -> vector<8x8xf32>
    %603 = vector.extract_strided_slice %592 {offsets = [16, 0], sizes = [8, 8], strides = [1, 1]} : vector<32x8xf32> to vector<8x8xf32>
    %604 = vector.extract_strided_slice %542 {offsets = [0, 16], sizes = [8, 8], strides = [1, 1]} : vector<8x32xf32> to vector<8x8xf32>
    %605 = arith.truncf %603 : vector<8x8xf32> to vector<8x8xbf16>
    %606 = arith.truncf %604 : vector<8x8xf32> to vector<8x8xbf16>
    %cst_241 = arith.constant dense<0.000000e+00> : vector<8x8xf32>
    %607 = tpu.matmul %605, %606, %cst_241 {dimension_numbers = #tpu.dot_dimension_numbers<[1], [0], [0], [1], [0, 0, 1, 1], [], []>} : vector<8x8xbf16>, vector<8x8xbf16>, vector<8x8xf32> -> vector<8x8xf32>
    %608 = vector.extract_strided_slice %592 {offsets = [24, 0], sizes = [8, 8], strides = [1, 1]} : vector<32x8xf32> to vector<8x8xf32>
    %609 = vector.extract_strided_slice %542 {offsets = [0, 24], sizes = [8, 8], strides = [1, 1]} : vector<8x32xf32> to vector<8x8xf32>
    %610 = arith.truncf %608 : vector<8x8xf32> to vector<8x8xbf16>
    %611 = arith.truncf %609 : vector<8x8xf32> to vector<8x8xbf16>
    %cst_242 = arith.constant dense<0.000000e+00> : vector<8x8xf32>
    %612 = tpu.matmul %610, %611, %cst_242 {dimension_numbers = #tpu.dot_dimension_numbers<[1], [0], [0], [1], [0, 0, 1, 1], [], []>} : vector<8x8xbf16>, vector<8x8xbf16>, vector<8x8xf32> -> vector<8x8xf32>
    %613 = tpu.concatenate %597, %602, %607, %612 in 1 : vector<8x8xf32>, vector<8x8xf32>, vector<8x8xf32>, vector<8x8xf32> -> vector<8x32xf32>
    %614 = arith.truncf %613 : vector<8x32xf32> to vector<8x32xbf16>
    %cst_243 = arith.constant dense<0.000000e+00> : vector<8x32xf32>
    %615 = tpu.matmul %614, %544, %cst_243 {dimension_numbers = #tpu.dot_dimension_numbers<[1], [0], [0], [1], [0, 0, 1, 1], [], []>} : vector<8x32xbf16>, vector<32x32xbf16>, vector<8x32xf32> -> vector<8x32xf32>
    %616 = vector.broadcast %546 : vector<1x32xf32> to vector<8x32xf32>
    %617 = arith.addf %615, %616 : vector<8x32xf32>
    %618 = arith.addf %524, %617 : vector<8x32xf32>
    %c7 = arith.constant 7 : index
    %c0_244 = arith.constant 0 : index
    %c0_245 = arith.constant 0 : index
    %619 = vector.load %arg6[%c7, %c0_244, %c0_245] : memref<12x1x32xf32, #tpu.memory_space<vmem>>, vector<1x1x32xf32>
    %620 = vector.shape_cast %619 : vector<1x1x32xf32> to vector<1x32xf32>
    %c7_246 = arith.constant 7 : index
    %c0_247 = arith.constant 0 : index
    %c0_248 = arith.constant 0 : index
    %621 = vector.load %arg7[%c7_246, %c0_247, %c0_248] : memref<12x1x32xf32, #tpu.memory_space<vmem>>, vector<1x1x32xf32>
    %622 = vector.shape_cast %621 : vector<1x1x32xf32> to vector<1x32xf32>
    %cst_249 = arith.constant dense<0.000000e+00> : vector<8xf32>
    %623 = vector.multi_reduction <add>, %618, %cst_249 [1] : vector<8x32xf32> to vector<8xf32>
    %624 = vector.shape_cast %623 : vector<8xf32> to vector<8x1xf32>
    %cst_250 = arith.constant 3.200000e+01 : f32
    %625 = vector.broadcast %cst_250 : f32 to vector<8x1xf32>
    %626 = arith.divf %624, %625 : vector<8x1xf32>
    %627 = arith.mulf %618, %618 : vector<8x32xf32>
    %cst_251 = arith.constant dense<0.000000e+00> : vector<8xf32>
    %628 = vector.multi_reduction <add>, %627, %cst_251 [1] : vector<8x32xf32> to vector<8xf32>
    %629 = vector.shape_cast %628 : vector<8xf32> to vector<8x1xf32>
    %cst_252 = arith.constant 3.200000e+01 : f32
    %630 = vector.broadcast %cst_252 : f32 to vector<8x1xf32>
    %631 = arith.divf %629, %630 : vector<8x1xf32>
    %632 = arith.mulf %626, %626 : vector<8x1xf32>
    %633 = arith.subf %631, %632 : vector<8x1xf32>
    %634 = vector.broadcast %626 : vector<8x1xf32> to vector<8x32xf32>
    %635 = arith.subf %618, %634 : vector<8x32xf32>
    %cst_253 = arith.constant 9.99999974E-6 : f32
    %636 = vector.broadcast %cst_253 : f32 to vector<8x1xf32>
    %637 = arith.addf %633, %636 : vector<8x1xf32>
    %638 = math.rsqrt %637 : vector<8x1xf32>
    %639 = vector.broadcast %638 : vector<8x1xf32> to vector<8x32xf32>
    %640 = arith.mulf %635, %639 : vector<8x32xf32>
    %641 = vector.broadcast %620 : vector<1x32xf32> to vector<8x32xf32>
    %642 = arith.mulf %640, %641 : vector<8x32xf32>
    %643 = vector.broadcast %622 : vector<1x32xf32> to vector<8x32xf32>
    %644 = arith.addf %642, %643 : vector<8x32xf32>
    %c2_254 = arith.constant 2 : index
    %c0_255 = arith.constant 0 : index
    %c0_256 = arith.constant 0 : index
    %645 = vector.load %arg14[%c2_254, %c0_255, %c0_256] : memref<4x32x64xbf16, #tpu.memory_space<vmem>>, vector<1x32x64xbf16>
    %646 = vector.shape_cast %645 : vector<1x32x64xbf16> to vector<32x64xbf16>
    %647 = arith.truncf %644 : vector<8x32xf32> to vector<8x32xbf16>
    %cst_257 = arith.constant dense<0.000000e+00> : vector<8x64xf32>
    %648 = tpu.matmul %647, %646, %cst_257 {dimension_numbers = #tpu.dot_dimension_numbers<[1], [0], [0], [1], [0, 0, 1, 1], [], []>} : vector<8x32xbf16>, vector<32x64xbf16>, vector<8x64xf32> -> vector<8x64xf32>
    %c2_258 = arith.constant 2 : index
    %c0_259 = arith.constant 0 : index
    %c0_260 = arith.constant 0 : index
    %649 = vector.load %arg15[%c2_258, %c0_259, %c0_260] : memref<4x1x64xf32, #tpu.memory_space<vmem>>, vector<1x1x64xf32>
    %650 = vector.shape_cast %649 : vector<1x1x64xf32> to vector<1x64xf32>
    %651 = vector.broadcast %650 : vector<1x64xf32> to vector<8x64xf32>
    %652 = arith.addf %648, %651 : vector<8x64xf32>
    %653 = arith.mulf %652, %652 : vector<8x64xf32>
    %654 = arith.mulf %652, %653 : vector<8x64xf32>
    %cst_261 = arith.constant 4.471500e-02 : f32
    %655 = vector.broadcast %cst_261 : f32 to vector<8x64xf32>
    %656 = arith.mulf %655, %654 : vector<8x64xf32>
    %657 = arith.addf %652, %656 : vector<8x64xf32>
    %cst_262 = arith.constant 0.797884583 : f32
    %658 = vector.broadcast %cst_262 : f32 to vector<8x64xf32>
    %659 = arith.mulf %658, %657 : vector<8x64xf32>
    %660 = math.tanh %659 : vector<8x64xf32>
    %cst_263 = arith.constant 1.000000e+00 : f32
    %661 = vector.broadcast %cst_263 : f32 to vector<8x64xf32>
    %662 = arith.addf %661, %660 : vector<8x64xf32>
    %cst_264 = arith.constant 5.000000e-01 : f32
    %663 = vector.broadcast %cst_264 : f32 to vector<8x64xf32>
    %664 = arith.mulf %663, %662 : vector<8x64xf32>
    %665 = arith.mulf %652, %664 : vector<8x64xf32>
    %c2_265 = arith.constant 2 : index
    %c0_266 = arith.constant 0 : index
    %c0_267 = arith.constant 0 : index
    %666 = vector.load %arg16[%c2_265, %c0_266, %c0_267] : memref<4x64x32xbf16, #tpu.memory_space<vmem>>, vector<1x64x32xbf16>
    %667 = vector.shape_cast %666 : vector<1x64x32xbf16> to vector<64x32xbf16>
    %668 = arith.truncf %665 : vector<8x64xf32> to vector<8x64xbf16>
    %cst_268 = arith.constant dense<0.000000e+00> : vector<8x32xf32>
    %669 = tpu.matmul %668, %667, %cst_268 {dimension_numbers = #tpu.dot_dimension_numbers<[1], [0], [0], [1], [0, 0, 1, 1], [], []>} : vector<8x64xbf16>, vector<64x32xbf16>, vector<8x32xf32> -> vector<8x32xf32>
    %c2_269 = arith.constant 2 : index
    %c0_270 = arith.constant 0 : index
    %c0_271 = arith.constant 0 : index
    %670 = vector.load %arg17[%c2_269, %c0_270, %c0_271] : memref<4x1x32xf32, #tpu.memory_space<vmem>>, vector<1x1x32xf32>
    %671 = vector.shape_cast %670 : vector<1x1x32xf32> to vector<1x32xf32>
    %672 = vector.broadcast %671 : vector<1x32xf32> to vector<8x32xf32>
    %673 = arith.addf %669, %672 : vector<8x32xf32>
    %674 = arith.addf %644, %673 : vector<8x32xf32>
    %c8 = arith.constant 8 : index
    %c0_272 = arith.constant 0 : index
    %c0_273 = arith.constant 0 : index
    %675 = vector.load %arg6[%c8, %c0_272, %c0_273] : memref<12x1x32xf32, #tpu.memory_space<vmem>>, vector<1x1x32xf32>
    %676 = vector.shape_cast %675 : vector<1x1x32xf32> to vector<1x32xf32>
    %c8_274 = arith.constant 8 : index
    %c0_275 = arith.constant 0 : index
    %c0_276 = arith.constant 0 : index
    %677 = vector.load %arg7[%c8_274, %c0_275, %c0_276] : memref<12x1x32xf32, #tpu.memory_space<vmem>>, vector<1x1x32xf32>
    %678 = vector.shape_cast %677 : vector<1x1x32xf32> to vector<1x32xf32>
    %cst_277 = arith.constant dense<0.000000e+00> : vector<8xf32>
    %679 = vector.multi_reduction <add>, %674, %cst_277 [1] : vector<8x32xf32> to vector<8xf32>
    %680 = vector.shape_cast %679 : vector<8xf32> to vector<8x1xf32>
    %cst_278 = arith.constant 3.200000e+01 : f32
    %681 = vector.broadcast %cst_278 : f32 to vector<8x1xf32>
    %682 = arith.divf %680, %681 : vector<8x1xf32>
    %683 = arith.mulf %674, %674 : vector<8x32xf32>
    %cst_279 = arith.constant dense<0.000000e+00> : vector<8xf32>
    %684 = vector.multi_reduction <add>, %683, %cst_279 [1] : vector<8x32xf32> to vector<8xf32>
    %685 = vector.shape_cast %684 : vector<8xf32> to vector<8x1xf32>
    %cst_280 = arith.constant 3.200000e+01 : f32
    %686 = vector.broadcast %cst_280 : f32 to vector<8x1xf32>
    %687 = arith.divf %685, %686 : vector<8x1xf32>
    %688 = arith.mulf %682, %682 : vector<8x1xf32>
    %689 = arith.subf %687, %688 : vector<8x1xf32>
    %690 = vector.broadcast %682 : vector<8x1xf32> to vector<8x32xf32>
    %691 = arith.subf %674, %690 : vector<8x32xf32>
    %cst_281 = arith.constant 9.99999974E-6 : f32
    %692 = vector.broadcast %cst_281 : f32 to vector<8x1xf32>
    %693 = arith.addf %689, %692 : vector<8x1xf32>
    %694 = math.rsqrt %693 : vector<8x1xf32>
    %695 = vector.broadcast %694 : vector<8x1xf32> to vector<8x32xf32>
    %696 = arith.mulf %691, %695 : vector<8x32xf32>
    %697 = vector.broadcast %676 : vector<1x32xf32> to vector<8x32xf32>
    %698 = arith.mulf %696, %697 : vector<8x32xf32>
    %699 = vector.broadcast %678 : vector<1x32xf32> to vector<8x32xf32>
    %700 = arith.addf %698, %699 : vector<8x32xf32>
    %c3_282 = arith.constant 3 : index
    %c0_283 = arith.constant 0 : index
    %c0_284 = arith.constant 0 : index
    %701 = vector.load %arg8[%c3_282, %c0_283, %c0_284] : memref<4x32x96xbf16, #tpu.memory_space<vmem>>, vector<1x32x96xbf16>
    %702 = vector.shape_cast %701 : vector<1x32x96xbf16> to vector<32x96xbf16>
    %703 = arith.truncf %700 : vector<8x32xf32> to vector<8x32xbf16>
    %cst_285 = arith.constant dense<0.000000e+00> : vector<8x96xf32>
    %704 = tpu.matmul %703, %702, %cst_285 {dimension_numbers = #tpu.dot_dimension_numbers<[1], [0], [0], [1], [0, 0, 1, 1], [], []>} : vector<8x32xbf16>, vector<32x96xbf16>, vector<8x96xf32> -> vector<8x96xf32>
    %c3_286 = arith.constant 3 : index
    %c0_287 = arith.constant 0 : index
    %c0_288 = arith.constant 0 : index
    %705 = vector.load %arg9[%c3_286, %c0_287, %c0_288] : memref<4x1x96xf32, #tpu.memory_space<vmem>>, vector<1x1x96xf32>
    %706 = vector.shape_cast %705 : vector<1x1x96xf32> to vector<1x96xf32>
    %707 = vector.broadcast %706 : vector<1x96xf32> to vector<8x96xf32>
    %708 = arith.addf %704, %707 : vector<8x96xf32>
    %709 = vector.extract_strided_slice %708 {offsets = [0, 0], sizes = [8, 32], strides = [1, 1]} : vector<8x96xf32> to vector<8x32xf32>
    %710 = vector.extract_strided_slice %708 {offsets = [0, 32], sizes = [8, 32], strides = [1, 1]} : vector<8x96xf32> to vector<8x32xf32>
    %711 = vector.extract_strided_slice %708 {offsets = [0, 64], sizes = [8, 32], strides = [1, 1]} : vector<8x96xf32> to vector<8x32xf32>
    %c3_289 = arith.constant 3 : index
    %c0_290 = arith.constant 0 : index
    %c0_291 = arith.constant 0 : index
    %712 = vector.load %arg10[%c3_289, %c0_290, %c0_291] : memref<8x32x32xbf16, #tpu.memory_space<vmem>>, vector<1x32x32xbf16>
    %713 = vector.shape_cast %712 : vector<1x32x32xbf16> to vector<32x32xbf16>
    %c3_292 = arith.constant 3 : index
    %c0_293 = arith.constant 0 : index
    %c0_294 = arith.constant 0 : index
    %714 = vector.load %arg11[%c3_292, %c0_293, %c0_294] : memref<8x1x32xf32, #tpu.memory_space<vmem>>, vector<1x1x32xf32>
    %715 = vector.shape_cast %714 : vector<1x1x32xf32> to vector<1x32xf32>
    %716 = vector.extract_strided_slice %709 {offsets = [0, 0], sizes = [8, 8], strides = [1, 1]} : vector<8x32xf32> to vector<8x8xf32>
    %717 = vector.extract_strided_slice %710 {offsets = [0, 0], sizes = [8, 8], strides = [1, 1]} : vector<8x32xf32> to vector<8x8xf32>
    %718 = arith.truncf %716 : vector<8x8xf32> to vector<8x8xbf16>
    %719 = arith.truncf %717 : vector<8x8xf32> to vector<8x8xbf16>
    %cst_295 = arith.constant dense<0.000000e+00> : vector<8x8xf32>
    %720 = tpu.matmul %718, %719, %cst_295 {dimension_numbers = #tpu.dot_dimension_numbers<[1], [1], [0], [0], [0, 0, 1, 0], [], []>} : vector<8x8xbf16>, vector<8x8xbf16>, vector<8x8xf32> -> vector<8x8xf32>
    %cst_296 = arith.constant 0.353553385 : f32
    %721 = vector.broadcast %cst_296 : f32 to vector<8x8xf32>
    %722 = arith.mulf %720, %721 : vector<8x8xf32>
    %723 = arith.addf %722, %21 : vector<8x8xf32>
    %724 = vector.extract_strided_slice %709 {offsets = [0, 8], sizes = [8, 8], strides = [1, 1]} : vector<8x32xf32> to vector<8x8xf32>
    %725 = vector.extract_strided_slice %710 {offsets = [0, 8], sizes = [8, 8], strides = [1, 1]} : vector<8x32xf32> to vector<8x8xf32>
    %726 = arith.truncf %724 : vector<8x8xf32> to vector<8x8xbf16>
    %727 = arith.truncf %725 : vector<8x8xf32> to vector<8x8xbf16>
    %cst_297 = arith.constant dense<0.000000e+00> : vector<8x8xf32>
    %728 = tpu.matmul %726, %727, %cst_297 {dimension_numbers = #tpu.dot_dimension_numbers<[1], [1], [0], [0], [0, 0, 1, 0], [], []>} : vector<8x8xbf16>, vector<8x8xbf16>, vector<8x8xf32> -> vector<8x8xf32>
    %cst_298 = arith.constant 0.353553385 : f32
    %729 = vector.broadcast %cst_298 : f32 to vector<8x8xf32>
    %730 = arith.mulf %728, %729 : vector<8x8xf32>
    %731 = arith.addf %730, %21 : vector<8x8xf32>
    %732 = vector.extract_strided_slice %709 {offsets = [0, 16], sizes = [8, 8], strides = [1, 1]} : vector<8x32xf32> to vector<8x8xf32>
    %733 = vector.extract_strided_slice %710 {offsets = [0, 16], sizes = [8, 8], strides = [1, 1]} : vector<8x32xf32> to vector<8x8xf32>
    %734 = arith.truncf %732 : vector<8x8xf32> to vector<8x8xbf16>
    %735 = arith.truncf %733 : vector<8x8xf32> to vector<8x8xbf16>
    %cst_299 = arith.constant dense<0.000000e+00> : vector<8x8xf32>
    %736 = tpu.matmul %734, %735, %cst_299 {dimension_numbers = #tpu.dot_dimension_numbers<[1], [1], [0], [0], [0, 0, 1, 0], [], []>} : vector<8x8xbf16>, vector<8x8xbf16>, vector<8x8xf32> -> vector<8x8xf32>
    %cst_300 = arith.constant 0.353553385 : f32
    %737 = vector.broadcast %cst_300 : f32 to vector<8x8xf32>
    %738 = arith.mulf %736, %737 : vector<8x8xf32>
    %739 = arith.addf %738, %21 : vector<8x8xf32>
    %740 = vector.extract_strided_slice %709 {offsets = [0, 24], sizes = [8, 8], strides = [1, 1]} : vector<8x32xf32> to vector<8x8xf32>
    %741 = vector.extract_strided_slice %710 {offsets = [0, 24], sizes = [8, 8], strides = [1, 1]} : vector<8x32xf32> to vector<8x8xf32>
    %742 = arith.truncf %740 : vector<8x8xf32> to vector<8x8xbf16>
    %743 = arith.truncf %741 : vector<8x8xf32> to vector<8x8xbf16>
    %cst_301 = arith.constant dense<0.000000e+00> : vector<8x8xf32>
    %744 = tpu.matmul %742, %743, %cst_301 {dimension_numbers = #tpu.dot_dimension_numbers<[1], [1], [0], [0], [0, 0, 1, 0], [], []>} : vector<8x8xbf16>, vector<8x8xbf16>, vector<8x8xf32> -> vector<8x8xf32>
    %cst_302 = arith.constant 0.353553385 : f32
    %745 = vector.broadcast %cst_302 : f32 to vector<8x8xf32>
    %746 = arith.mulf %744, %745 : vector<8x8xf32>
    %747 = arith.addf %746, %21 : vector<8x8xf32>
    %748 = tpu.concatenate %723, %731, %739, %747 in 0 : vector<8x8xf32>, vector<8x8xf32>, vector<8x8xf32>, vector<8x8xf32> -> vector<32x8xf32>
    %cst_303 = arith.constant dense<0xFF800000> : vector<32xf32>
    %749 = vector.multi_reduction <maximumf>, %748, %cst_303 [1] : vector<32x8xf32> to vector<32xf32>
    %750 = vector.shape_cast %749 : vector<32xf32> to vector<32x1xf32>
    %751 = vector.broadcast %750 : vector<32x1xf32> to vector<32x8xf32>
    %752 = arith.subf %748, %751 : vector<32x8xf32>
    %753 = math.exp %752 : vector<32x8xf32>
    %cst_304 = arith.constant dense<0.000000e+00> : vector<32xf32>
    %754 = vector.multi_reduction <add>, %753, %cst_304 [1] : vector<32x8xf32> to vector<32xf32>
    %755 = vector.shape_cast %754 : vector<32xf32> to vector<32x1xf32>
    %756 = vector.broadcast %755 : vector<32x1xf32> to vector<32x8xf32>
    %757 = arith.divf %753, %756 : vector<32x8xf32>
    %758 = vector.extract_strided_slice %757 {offsets = [0, 0], sizes = [8, 8], strides = [1, 1]} : vector<32x8xf32> to vector<8x8xf32>
    %759 = vector.extract_strided_slice %711 {offsets = [0, 0], sizes = [8, 8], strides = [1, 1]} : vector<8x32xf32> to vector<8x8xf32>
    %760 = arith.truncf %758 : vector<8x8xf32> to vector<8x8xbf16>
    %761 = arith.truncf %759 : vector<8x8xf32> to vector<8x8xbf16>
    %cst_305 = arith.constant dense<0.000000e+00> : vector<8x8xf32>
    %762 = tpu.matmul %760, %761, %cst_305 {dimension_numbers = #tpu.dot_dimension_numbers<[1], [0], [0], [1], [0, 0, 1, 1], [], []>} : vector<8x8xbf16>, vector<8x8xbf16>, vector<8x8xf32> -> vector<8x8xf32>
    %763 = vector.extract_strided_slice %757 {offsets = [8, 0], sizes = [8, 8], strides = [1, 1]} : vector<32x8xf32> to vector<8x8xf32>
    %764 = vector.extract_strided_slice %711 {offsets = [0, 8], sizes = [8, 8], strides = [1, 1]} : vector<8x32xf32> to vector<8x8xf32>
    %765 = arith.truncf %763 : vector<8x8xf32> to vector<8x8xbf16>
    %766 = arith.truncf %764 : vector<8x8xf32> to vector<8x8xbf16>
    %cst_306 = arith.constant dense<0.000000e+00> : vector<8x8xf32>
    %767 = tpu.matmul %765, %766, %cst_306 {dimension_numbers = #tpu.dot_dimension_numbers<[1], [0], [0], [1], [0, 0, 1, 1], [], []>} : vector<8x8xbf16>, vector<8x8xbf16>, vector<8x8xf32> -> vector<8x8xf32>
    %768 = vector.extract_strided_slice %757 {offsets = [16, 0], sizes = [8, 8], strides = [1, 1]} : vector<32x8xf32> to vector<8x8xf32>
    %769 = vector.extract_strided_slice %711 {offsets = [0, 16], sizes = [8, 8], strides = [1, 1]} : vector<8x32xf32> to vector<8x8xf32>
    %770 = arith.truncf %768 : vector<8x8xf32> to vector<8x8xbf16>
    %771 = arith.truncf %769 : vector<8x8xf32> to vector<8x8xbf16>
    %cst_307 = arith.constant dense<0.000000e+00> : vector<8x8xf32>
    %772 = tpu.matmul %770, %771, %cst_307 {dimension_numbers = #tpu.dot_dimension_numbers<[1], [0], [0], [1], [0, 0, 1, 1], [], []>} : vector<8x8xbf16>, vector<8x8xbf16>, vector<8x8xf32> -> vector<8x8xf32>
    %773 = vector.extract_strided_slice %757 {offsets = [24, 0], sizes = [8, 8], strides = [1, 1]} : vector<32x8xf32> to vector<8x8xf32>
    %774 = vector.extract_strided_slice %711 {offsets = [0, 24], sizes = [8, 8], strides = [1, 1]} : vector<8x32xf32> to vector<8x8xf32>
    %775 = arith.truncf %773 : vector<8x8xf32> to vector<8x8xbf16>
    %776 = arith.truncf %774 : vector<8x8xf32> to vector<8x8xbf16>
    %cst_308 = arith.constant dense<0.000000e+00> : vector<8x8xf32>
    %777 = tpu.matmul %775, %776, %cst_308 {dimension_numbers = #tpu.dot_dimension_numbers<[1], [0], [0], [1], [0, 0, 1, 1], [], []>} : vector<8x8xbf16>, vector<8x8xbf16>, vector<8x8xf32> -> vector<8x8xf32>
    %778 = tpu.concatenate %762, %767, %772, %777 in 1 : vector<8x8xf32>, vector<8x8xf32>, vector<8x8xf32>, vector<8x8xf32> -> vector<8x32xf32>
    %779 = arith.truncf %778 : vector<8x32xf32> to vector<8x32xbf16>
    %cst_309 = arith.constant dense<0.000000e+00> : vector<8x32xf32>
    %780 = tpu.matmul %779, %713, %cst_309 {dimension_numbers = #tpu.dot_dimension_numbers<[1], [0], [0], [1], [0, 0, 1, 1], [], []>} : vector<8x32xbf16>, vector<32x32xbf16>, vector<8x32xf32> -> vector<8x32xf32>
    %781 = vector.broadcast %715 : vector<1x32xf32> to vector<8x32xf32>
    %782 = arith.addf %780, %781 : vector<8x32xf32>
    %783 = arith.addf %700, %782 : vector<8x32xf32>
    %c9 = arith.constant 9 : index
    %c0_310 = arith.constant 0 : index
    %c0_311 = arith.constant 0 : index
    %784 = vector.load %arg6[%c9, %c0_310, %c0_311] : memref<12x1x32xf32, #tpu.memory_space<vmem>>, vector<1x1x32xf32>
    %785 = vector.shape_cast %784 : vector<1x1x32xf32> to vector<1x32xf32>
    %c9_312 = arith.constant 9 : index
    %c0_313 = arith.constant 0 : index
    %c0_314 = arith.constant 0 : index
    %786 = vector.load %arg7[%c9_312, %c0_313, %c0_314] : memref<12x1x32xf32, #tpu.memory_space<vmem>>, vector<1x1x32xf32>
    %787 = vector.shape_cast %786 : vector<1x1x32xf32> to vector<1x32xf32>
    %cst_315 = arith.constant dense<0.000000e+00> : vector<8xf32>
    %788 = vector.multi_reduction <add>, %783, %cst_315 [1] : vector<8x32xf32> to vector<8xf32>
    %789 = vector.shape_cast %788 : vector<8xf32> to vector<8x1xf32>
    %cst_316 = arith.constant 3.200000e+01 : f32
    %790 = vector.broadcast %cst_316 : f32 to vector<8x1xf32>
    %791 = arith.divf %789, %790 : vector<8x1xf32>
    %792 = arith.mulf %783, %783 : vector<8x32xf32>
    %cst_317 = arith.constant dense<0.000000e+00> : vector<8xf32>
    %793 = vector.multi_reduction <add>, %792, %cst_317 [1] : vector<8x32xf32> to vector<8xf32>
    %794 = vector.shape_cast %793 : vector<8xf32> to vector<8x1xf32>
    %cst_318 = arith.constant 3.200000e+01 : f32
    %795 = vector.broadcast %cst_318 : f32 to vector<8x1xf32>
    %796 = arith.divf %794, %795 : vector<8x1xf32>
    %797 = arith.mulf %791, %791 : vector<8x1xf32>
    %798 = arith.subf %796, %797 : vector<8x1xf32>
    %799 = vector.broadcast %791 : vector<8x1xf32> to vector<8x32xf32>
    %800 = arith.subf %783, %799 : vector<8x32xf32>
    %cst_319 = arith.constant 9.99999974E-6 : f32
    %801 = vector.broadcast %cst_319 : f32 to vector<8x1xf32>
    %802 = arith.addf %798, %801 : vector<8x1xf32>
    %803 = math.rsqrt %802 : vector<8x1xf32>
    %804 = vector.broadcast %803 : vector<8x1xf32> to vector<8x32xf32>
    %805 = arith.mulf %800, %804 : vector<8x32xf32>
    %806 = vector.broadcast %785 : vector<1x32xf32> to vector<8x32xf32>
    %807 = arith.mulf %805, %806 : vector<8x32xf32>
    %808 = vector.broadcast %787 : vector<1x32xf32> to vector<8x32xf32>
    %809 = arith.addf %807, %808 : vector<8x32xf32>
    %c7_320 = arith.constant 7 : index
    %c0_321 = arith.constant 0 : index
    %c0_322 = arith.constant 0 : index
    %810 = vector.load %arg10[%c7_320, %c0_321, %c0_322] : memref<8x32x32xbf16, #tpu.memory_space<vmem>>, vector<1x32x32xbf16>
    %811 = vector.shape_cast %810 : vector<1x32x32xbf16> to vector<32x32xbf16>
    %812 = arith.truncf %809 : vector<8x32xf32> to vector<8x32xbf16>
    %cst_323 = arith.constant dense<0.000000e+00> : vector<8x32xf32>
    %813 = tpu.matmul %812, %811, %cst_323 {dimension_numbers = #tpu.dot_dimension_numbers<[1], [0], [0], [1], [0, 0, 1, 1], [], []>} : vector<8x32xbf16>, vector<32x32xbf16>, vector<8x32xf32> -> vector<8x32xf32>
    %c7_324 = arith.constant 7 : index
    %c0_325 = arith.constant 0 : index
    %c0_326 = arith.constant 0 : index
    %814 = vector.load %arg11[%c7_324, %c0_325, %c0_326] : memref<8x1x32xf32, #tpu.memory_space<vmem>>, vector<1x1x32xf32>
    %815 = vector.shape_cast %814 : vector<1x1x32xf32> to vector<1x32xf32>
    %816 = vector.broadcast %815 : vector<1x32xf32> to vector<8x32xf32>
    %817 = arith.addf %813, %816 : vector<8x32xf32>
    %c1_327 = arith.constant 1 : index
    %c0_328 = arith.constant 0 : index
    %c0_329 = arith.constant 0 : index
    %818 = vector.load %arg12[%c1_327, %c0_328, %c0_329] : memref<2x32x64xbf16, #tpu.memory_space<vmem>>, vector<1x32x64xbf16>
    %819 = vector.shape_cast %818 : vector<1x32x64xbf16> to vector<32x64xbf16>
    %820 = arith.truncf %387 : vector<8x32xf32> to vector<8x32xbf16>
    %cst_330 = arith.constant dense<0.000000e+00> : vector<8x64xf32>
    %821 = tpu.matmul %820, %819, %cst_330 {dimension_numbers = #tpu.dot_dimension_numbers<[1], [0], [0], [1], [0, 0, 1, 1], [], []>} : vector<8x32xbf16>, vector<32x64xbf16>, vector<8x64xf32> -> vector<8x64xf32>
    %c1_331 = arith.constant 1 : index
    %c0_332 = arith.constant 0 : index
    %c0_333 = arith.constant 0 : index
    %822 = vector.load %arg13[%c1_331, %c0_332, %c0_333] : memref<2x1x64xf32, #tpu.memory_space<vmem>>, vector<1x1x64xf32>
    %823 = vector.shape_cast %822 : vector<1x1x64xf32> to vector<1x64xf32>
    %824 = vector.broadcast %823 : vector<1x64xf32> to vector<8x64xf32>
    %825 = arith.addf %821, %824 : vector<8x64xf32>
    %826 = vector.extract_strided_slice %825 {offsets = [0, 0], sizes = [8, 32], strides = [1, 1]} : vector<8x64xf32> to vector<8x32xf32>
    %827 = vector.extract_strided_slice %825 {offsets = [0, 32], sizes = [8, 32], strides = [1, 1]} : vector<8x64xf32> to vector<8x32xf32>
    %c5_334 = arith.constant 5 : index
    %c0_335 = arith.constant 0 : index
    %c0_336 = arith.constant 0 : index
    %828 = vector.load %arg10[%c5_334, %c0_335, %c0_336] : memref<8x32x32xbf16, #tpu.memory_space<vmem>>, vector<1x32x32xbf16>
    %829 = vector.shape_cast %828 : vector<1x32x32xbf16> to vector<32x32xbf16>
    %c5_337 = arith.constant 5 : index
    %c0_338 = arith.constant 0 : index
    %c0_339 = arith.constant 0 : index
    %830 = vector.load %arg11[%c5_337, %c0_338, %c0_339] : memref<8x1x32xf32, #tpu.memory_space<vmem>>, vector<1x1x32xf32>
    %831 = vector.shape_cast %830 : vector<1x1x32xf32> to vector<1x32xf32>
    %832 = vector.extract_strided_slice %817 {offsets = [0, 0], sizes = [8, 8], strides = [1, 1]} : vector<8x32xf32> to vector<8x8xf32>
    %833 = vector.extract_strided_slice %826 {offsets = [0, 0], sizes = [8, 8], strides = [1, 1]} : vector<8x32xf32> to vector<8x8xf32>
    %834 = arith.truncf %832 : vector<8x8xf32> to vector<8x8xbf16>
    %835 = arith.truncf %833 : vector<8x8xf32> to vector<8x8xbf16>
    %cst_340 = arith.constant dense<0.000000e+00> : vector<8x8xf32>
    %836 = tpu.matmul %834, %835, %cst_340 {dimension_numbers = #tpu.dot_dimension_numbers<[1], [1], [0], [0], [0, 0, 1, 0], [], []>} : vector<8x8xbf16>, vector<8x8xbf16>, vector<8x8xf32> -> vector<8x8xf32>
    %cst_341 = arith.constant 0.353553385 : f32
    %837 = vector.broadcast %cst_341 : f32 to vector<8x8xf32>
    %838 = arith.mulf %836, %837 : vector<8x8xf32>
    %839 = vector.broadcast %6 : vector<1x8xf32> to vector<8x8xf32>
    %840 = arith.addf %838, %839 : vector<8x8xf32>
    %841 = vector.extract_strided_slice %817 {offsets = [0, 8], sizes = [8, 8], strides = [1, 1]} : vector<8x32xf32> to vector<8x8xf32>
    %842 = vector.extract_strided_slice %826 {offsets = [0, 8], sizes = [8, 8], strides = [1, 1]} : vector<8x32xf32> to vector<8x8xf32>
    %843 = arith.truncf %841 : vector<8x8xf32> to vector<8x8xbf16>
    %844 = arith.truncf %842 : vector<8x8xf32> to vector<8x8xbf16>
    %cst_342 = arith.constant dense<0.000000e+00> : vector<8x8xf32>
    %845 = tpu.matmul %843, %844, %cst_342 {dimension_numbers = #tpu.dot_dimension_numbers<[1], [1], [0], [0], [0, 0, 1, 0], [], []>} : vector<8x8xbf16>, vector<8x8xbf16>, vector<8x8xf32> -> vector<8x8xf32>
    %cst_343 = arith.constant 0.353553385 : f32
    %846 = vector.broadcast %cst_343 : f32 to vector<8x8xf32>
    %847 = arith.mulf %845, %846 : vector<8x8xf32>
    %848 = vector.broadcast %6 : vector<1x8xf32> to vector<8x8xf32>
    %849 = arith.addf %847, %848 : vector<8x8xf32>
    %850 = vector.extract_strided_slice %817 {offsets = [0, 16], sizes = [8, 8], strides = [1, 1]} : vector<8x32xf32> to vector<8x8xf32>
    %851 = vector.extract_strided_slice %826 {offsets = [0, 16], sizes = [8, 8], strides = [1, 1]} : vector<8x32xf32> to vector<8x8xf32>
    %852 = arith.truncf %850 : vector<8x8xf32> to vector<8x8xbf16>
    %853 = arith.truncf %851 : vector<8x8xf32> to vector<8x8xbf16>
    %cst_344 = arith.constant dense<0.000000e+00> : vector<8x8xf32>
    %854 = tpu.matmul %852, %853, %cst_344 {dimension_numbers = #tpu.dot_dimension_numbers<[1], [1], [0], [0], [0, 0, 1, 0], [], []>} : vector<8x8xbf16>, vector<8x8xbf16>, vector<8x8xf32> -> vector<8x8xf32>
    %cst_345 = arith.constant 0.353553385 : f32
    %855 = vector.broadcast %cst_345 : f32 to vector<8x8xf32>
    %856 = arith.mulf %854, %855 : vector<8x8xf32>
    %857 = vector.broadcast %6 : vector<1x8xf32> to vector<8x8xf32>
    %858 = arith.addf %856, %857 : vector<8x8xf32>
    %859 = vector.extract_strided_slice %817 {offsets = [0, 24], sizes = [8, 8], strides = [1, 1]} : vector<8x32xf32> to vector<8x8xf32>
    %860 = vector.extract_strided_slice %826 {offsets = [0, 24], sizes = [8, 8], strides = [1, 1]} : vector<8x32xf32> to vector<8x8xf32>
    %861 = arith.truncf %859 : vector<8x8xf32> to vector<8x8xbf16>
    %862 = arith.truncf %860 : vector<8x8xf32> to vector<8x8xbf16>
    %cst_346 = arith.constant dense<0.000000e+00> : vector<8x8xf32>
    %863 = tpu.matmul %861, %862, %cst_346 {dimension_numbers = #tpu.dot_dimension_numbers<[1], [1], [0], [0], [0, 0, 1, 0], [], []>} : vector<8x8xbf16>, vector<8x8xbf16>, vector<8x8xf32> -> vector<8x8xf32>
    %cst_347 = arith.constant 0.353553385 : f32
    %864 = vector.broadcast %cst_347 : f32 to vector<8x8xf32>
    %865 = arith.mulf %863, %864 : vector<8x8xf32>
    %866 = vector.broadcast %6 : vector<1x8xf32> to vector<8x8xf32>
    %867 = arith.addf %865, %866 : vector<8x8xf32>
    %868 = tpu.concatenate %840, %849, %858, %867 in 0 : vector<8x8xf32>, vector<8x8xf32>, vector<8x8xf32>, vector<8x8xf32> -> vector<32x8xf32>
    %cst_348 = arith.constant dense<0xFF800000> : vector<32xf32>
    %869 = vector.multi_reduction <maximumf>, %868, %cst_348 [1] : vector<32x8xf32> to vector<32xf32>
    %870 = vector.shape_cast %869 : vector<32xf32> to vector<32x1xf32>
    %871 = vector.broadcast %870 : vector<32x1xf32> to vector<32x8xf32>
    %872 = arith.subf %868, %871 : vector<32x8xf32>
    %873 = math.exp %872 : vector<32x8xf32>
    %cst_349 = arith.constant dense<0.000000e+00> : vector<32xf32>
    %874 = vector.multi_reduction <add>, %873, %cst_349 [1] : vector<32x8xf32> to vector<32xf32>
    %875 = vector.shape_cast %874 : vector<32xf32> to vector<32x1xf32>
    %876 = vector.broadcast %875 : vector<32x1xf32> to vector<32x8xf32>
    %877 = arith.divf %873, %876 : vector<32x8xf32>
    %878 = vector.extract_strided_slice %877 {offsets = [0, 0], sizes = [8, 8], strides = [1, 1]} : vector<32x8xf32> to vector<8x8xf32>
    %879 = vector.extract_strided_slice %827 {offsets = [0, 0], sizes = [8, 8], strides = [1, 1]} : vector<8x32xf32> to vector<8x8xf32>
    %880 = arith.truncf %878 : vector<8x8xf32> to vector<8x8xbf16>
    %881 = arith.truncf %879 : vector<8x8xf32> to vector<8x8xbf16>
    %cst_350 = arith.constant dense<0.000000e+00> : vector<8x8xf32>
    %882 = tpu.matmul %880, %881, %cst_350 {dimension_numbers = #tpu.dot_dimension_numbers<[1], [0], [0], [1], [0, 0, 1, 1], [], []>} : vector<8x8xbf16>, vector<8x8xbf16>, vector<8x8xf32> -> vector<8x8xf32>
    %883 = vector.extract_strided_slice %877 {offsets = [8, 0], sizes = [8, 8], strides = [1, 1]} : vector<32x8xf32> to vector<8x8xf32>
    %884 = vector.extract_strided_slice %827 {offsets = [0, 8], sizes = [8, 8], strides = [1, 1]} : vector<8x32xf32> to vector<8x8xf32>
    %885 = arith.truncf %883 : vector<8x8xf32> to vector<8x8xbf16>
    %886 = arith.truncf %884 : vector<8x8xf32> to vector<8x8xbf16>
    %cst_351 = arith.constant dense<0.000000e+00> : vector<8x8xf32>
    %887 = tpu.matmul %885, %886, %cst_351 {dimension_numbers = #tpu.dot_dimension_numbers<[1], [0], [0], [1], [0, 0, 1, 1], [], []>} : vector<8x8xbf16>, vector<8x8xbf16>, vector<8x8xf32> -> vector<8x8xf32>
    %888 = vector.extract_strided_slice %877 {offsets = [16, 0], sizes = [8, 8], strides = [1, 1]} : vector<32x8xf32> to vector<8x8xf32>
    %889 = vector.extract_strided_slice %827 {offsets = [0, 16], sizes = [8, 8], strides = [1, 1]} : vector<8x32xf32> to vector<8x8xf32>
    %890 = arith.truncf %888 : vector<8x8xf32> to vector<8x8xbf16>
    %891 = arith.truncf %889 : vector<8x8xf32> to vector<8x8xbf16>
    %cst_352 = arith.constant dense<0.000000e+00> : vector<8x8xf32>
    %892 = tpu.matmul %890, %891, %cst_352 {dimension_numbers = #tpu.dot_dimension_numbers<[1], [0], [0], [1], [0, 0, 1, 1], [], []>} : vector<8x8xbf16>, vector<8x8xbf16>, vector<8x8xf32> -> vector<8x8xf32>
    %893 = vector.extract_strided_slice %877 {offsets = [24, 0], sizes = [8, 8], strides = [1, 1]} : vector<32x8xf32> to vector<8x8xf32>
    %894 = vector.extract_strided_slice %827 {offsets = [0, 24], sizes = [8, 8], strides = [1, 1]} : vector<8x32xf32> to vector<8x8xf32>
    %895 = arith.truncf %893 : vector<8x8xf32> to vector<8x8xbf16>
    %896 = arith.truncf %894 : vector<8x8xf32> to vector<8x8xbf16>
    %cst_353 = arith.constant dense<0.000000e+00> : vector<8x8xf32>
    %897 = tpu.matmul %895, %896, %cst_353 {dimension_numbers = #tpu.dot_dimension_numbers<[1], [0], [0], [1], [0, 0, 1, 1], [], []>} : vector<8x8xbf16>, vector<8x8xbf16>, vector<8x8xf32> -> vector<8x8xf32>
    %898 = tpu.concatenate %882, %887, %892, %897 in 1 : vector<8x8xf32>, vector<8x8xf32>, vector<8x8xf32>, vector<8x8xf32> -> vector<8x32xf32>
    %899 = arith.truncf %898 : vector<8x32xf32> to vector<8x32xbf16>
    %cst_354 = arith.constant dense<0.000000e+00> : vector<8x32xf32>
    %900 = tpu.matmul %899, %829, %cst_354 {dimension_numbers = #tpu.dot_dimension_numbers<[1], [0], [0], [1], [0, 0, 1, 1], [], []>} : vector<8x32xbf16>, vector<32x32xbf16>, vector<8x32xf32> -> vector<8x32xf32>
    %901 = vector.broadcast %831 : vector<1x32xf32> to vector<8x32xf32>
    %902 = arith.addf %900, %901 : vector<8x32xf32>
    %903 = arith.addf %809, %902 : vector<8x32xf32>
    %c10 = arith.constant 10 : index
    %c0_355 = arith.constant 0 : index
    %c0_356 = arith.constant 0 : index
    %904 = vector.load %arg6[%c10, %c0_355, %c0_356] : memref<12x1x32xf32, #tpu.memory_space<vmem>>, vector<1x1x32xf32>
    %905 = vector.shape_cast %904 : vector<1x1x32xf32> to vector<1x32xf32>
    %c10_357 = arith.constant 10 : index
    %c0_358 = arith.constant 0 : index
    %c0_359 = arith.constant 0 : index
    %906 = vector.load %arg7[%c10_357, %c0_358, %c0_359] : memref<12x1x32xf32, #tpu.memory_space<vmem>>, vector<1x1x32xf32>
    %907 = vector.shape_cast %906 : vector<1x1x32xf32> to vector<1x32xf32>
    %cst_360 = arith.constant dense<0.000000e+00> : vector<8xf32>
    %908 = vector.multi_reduction <add>, %903, %cst_360 [1] : vector<8x32xf32> to vector<8xf32>
    %909 = vector.shape_cast %908 : vector<8xf32> to vector<8x1xf32>
    %cst_361 = arith.constant 3.200000e+01 : f32
    %910 = vector.broadcast %cst_361 : f32 to vector<8x1xf32>
    %911 = arith.divf %909, %910 : vector<8x1xf32>
    %912 = arith.mulf %903, %903 : vector<8x32xf32>
    %cst_362 = arith.constant dense<0.000000e+00> : vector<8xf32>
    %913 = vector.multi_reduction <add>, %912, %cst_362 [1] : vector<8x32xf32> to vector<8xf32>
    %914 = vector.shape_cast %913 : vector<8xf32> to vector<8x1xf32>
    %cst_363 = arith.constant 3.200000e+01 : f32
    %915 = vector.broadcast %cst_363 : f32 to vector<8x1xf32>
    %916 = arith.divf %914, %915 : vector<8x1xf32>
    %917 = arith.mulf %911, %911 : vector<8x1xf32>
    %918 = arith.subf %916, %917 : vector<8x1xf32>
    %919 = vector.broadcast %911 : vector<8x1xf32> to vector<8x32xf32>
    %920 = arith.subf %903, %919 : vector<8x32xf32>
    %cst_364 = arith.constant 9.99999974E-6 : f32
    %921 = vector.broadcast %cst_364 : f32 to vector<8x1xf32>
    %922 = arith.addf %918, %921 : vector<8x1xf32>
    %923 = math.rsqrt %922 : vector<8x1xf32>
    %924 = vector.broadcast %923 : vector<8x1xf32> to vector<8x32xf32>
    %925 = arith.mulf %920, %924 : vector<8x32xf32>
    %926 = vector.broadcast %905 : vector<1x32xf32> to vector<8x32xf32>
    %927 = arith.mulf %925, %926 : vector<8x32xf32>
    %928 = vector.broadcast %907 : vector<1x32xf32> to vector<8x32xf32>
    %929 = arith.addf %927, %928 : vector<8x32xf32>
    %c3_365 = arith.constant 3 : index
    %c0_366 = arith.constant 0 : index
    %c0_367 = arith.constant 0 : index
    %930 = vector.load %arg14[%c3_365, %c0_366, %c0_367] : memref<4x32x64xbf16, #tpu.memory_space<vmem>>, vector<1x32x64xbf16>
    %931 = vector.shape_cast %930 : vector<1x32x64xbf16> to vector<32x64xbf16>
    %932 = arith.truncf %929 : vector<8x32xf32> to vector<8x32xbf16>
    %cst_368 = arith.constant dense<0.000000e+00> : vector<8x64xf32>
    %933 = tpu.matmul %932, %931, %cst_368 {dimension_numbers = #tpu.dot_dimension_numbers<[1], [0], [0], [1], [0, 0, 1, 1], [], []>} : vector<8x32xbf16>, vector<32x64xbf16>, vector<8x64xf32> -> vector<8x64xf32>
    %c3_369 = arith.constant 3 : index
    %c0_370 = arith.constant 0 : index
    %c0_371 = arith.constant 0 : index
    %934 = vector.load %arg15[%c3_369, %c0_370, %c0_371] : memref<4x1x64xf32, #tpu.memory_space<vmem>>, vector<1x1x64xf32>
    %935 = vector.shape_cast %934 : vector<1x1x64xf32> to vector<1x64xf32>
    %936 = vector.broadcast %935 : vector<1x64xf32> to vector<8x64xf32>
    %937 = arith.addf %933, %936 : vector<8x64xf32>
    %938 = arith.mulf %937, %937 : vector<8x64xf32>
    %939 = arith.mulf %937, %938 : vector<8x64xf32>
    %cst_372 = arith.constant 4.471500e-02 : f32
    %940 = vector.broadcast %cst_372 : f32 to vector<8x64xf32>
    %941 = arith.mulf %940, %939 : vector<8x64xf32>
    %942 = arith.addf %937, %941 : vector<8x64xf32>
    %cst_373 = arith.constant 0.797884583 : f32
    %943 = vector.broadcast %cst_373 : f32 to vector<8x64xf32>
    %944 = arith.mulf %943, %942 : vector<8x64xf32>
    %945 = math.tanh %944 : vector<8x64xf32>
    %cst_374 = arith.constant 1.000000e+00 : f32
    %946 = vector.broadcast %cst_374 : f32 to vector<8x64xf32>
    %947 = arith.addf %946, %945 : vector<8x64xf32>
    %cst_375 = arith.constant 5.000000e-01 : f32
    %948 = vector.broadcast %cst_375 : f32 to vector<8x64xf32>
    %949 = arith.mulf %948, %947 : vector<8x64xf32>
    %950 = arith.mulf %937, %949 : vector<8x64xf32>
    %c3_376 = arith.constant 3 : index
    %c0_377 = arith.constant 0 : index
    %c0_378 = arith.constant 0 : index
    %951 = vector.load %arg16[%c3_376, %c0_377, %c0_378] : memref<4x64x32xbf16, #tpu.memory_space<vmem>>, vector<1x64x32xbf16>
    %952 = vector.shape_cast %951 : vector<1x64x32xbf16> to vector<64x32xbf16>
    %953 = arith.truncf %950 : vector<8x64xf32> to vector<8x64xbf16>
    %cst_379 = arith.constant dense<0.000000e+00> : vector<8x32xf32>
    %954 = tpu.matmul %953, %952, %cst_379 {dimension_numbers = #tpu.dot_dimension_numbers<[1], [0], [0], [1], [0, 0, 1, 1], [], []>} : vector<8x64xbf16>, vector<64x32xbf16>, vector<8x32xf32> -> vector<8x32xf32>
    %c3_380 = arith.constant 3 : index
    %c0_381 = arith.constant 0 : index
    %c0_382 = arith.constant 0 : index
    %955 = vector.load %arg17[%c3_380, %c0_381, %c0_382] : memref<4x1x32xf32, #tpu.memory_space<vmem>>, vector<1x1x32xf32>
    %956 = vector.shape_cast %955 : vector<1x1x32xf32> to vector<1x32xf32>
    %957 = vector.broadcast %956 : vector<1x32xf32> to vector<8x32xf32>
    %958 = arith.addf %954, %957 : vector<8x32xf32>
    %959 = arith.addf %929, %958 : vector<8x32xf32>
    %c11 = arith.constant 11 : index
    %c0_383 = arith.constant 0 : index
    %c0_384 = arith.constant 0 : index
    %960 = vector.load %arg6[%c11, %c0_383, %c0_384] : memref<12x1x32xf32, #tpu.memory_space<vmem>>, vector<1x1x32xf32>
    %961 = vector.shape_cast %960 : vector<1x1x32xf32> to vector<1x32xf32>
    %c11_385 = arith.constant 11 : index
    %c0_386 = arith.constant 0 : index
    %c0_387 = arith.constant 0 : index
    %962 = vector.load %arg7[%c11_385, %c0_386, %c0_387] : memref<12x1x32xf32, #tpu.memory_space<vmem>>, vector<1x1x32xf32>
    %963 = vector.shape_cast %962 : vector<1x1x32xf32> to vector<1x32xf32>
    %cst_388 = arith.constant dense<0.000000e+00> : vector<8xf32>
    %964 = vector.multi_reduction <add>, %959, %cst_388 [1] : vector<8x32xf32> to vector<8xf32>
    %965 = vector.shape_cast %964 : vector<8xf32> to vector<8x1xf32>
    %cst_389 = arith.constant 3.200000e+01 : f32
    %966 = vector.broadcast %cst_389 : f32 to vector<8x1xf32>
    %967 = arith.divf %965, %966 : vector<8x1xf32>
    %968 = arith.mulf %959, %959 : vector<8x32xf32>
    %cst_390 = arith.constant dense<0.000000e+00> : vector<8xf32>
    %969 = vector.multi_reduction <add>, %968, %cst_390 [1] : vector<8x32xf32> to vector<8xf32>
    %970 = vector.shape_cast %969 : vector<8xf32> to vector<8x1xf32>
    %cst_391 = arith.constant 3.200000e+01 : f32
    %971 = vector.broadcast %cst_391 : f32 to vector<8x1xf32>
    %972 = arith.divf %970, %971 : vector<8x1xf32>
    %973 = arith.mulf %967, %967 : vector<8x1xf32>
    %974 = arith.subf %972, %973 : vector<8x1xf32>
    %975 = vector.broadcast %967 : vector<8x1xf32> to vector<8x32xf32>
    %976 = arith.subf %959, %975 : vector<8x32xf32>
    %cst_392 = arith.constant 9.99999974E-6 : f32
    %977 = vector.broadcast %cst_392 : f32 to vector<8x1xf32>
    %978 = arith.addf %974, %977 : vector<8x1xf32>
    %979 = math.rsqrt %978 : vector<8x1xf32>
    %980 = vector.broadcast %979 : vector<8x1xf32> to vector<8x32xf32>
    %981 = arith.mulf %976, %980 : vector<8x32xf32>
    %982 = vector.broadcast %961 : vector<1x32xf32> to vector<8x32xf32>
    %983 = arith.mulf %981, %982 : vector<8x32xf32>
    %984 = vector.broadcast %963 : vector<1x32xf32> to vector<8x32xf32>
    %985 = arith.addf %983, %984 : vector<8x32xf32>
    %c0_393 = arith.constant 0 : index
    %c0_394 = arith.constant 0 : index
    %986 = vector.load %arg18[%c0_393, %c0_394] : memref<128x32xbf16, #tpu.memory_space<vmem>>, vector<128x32xbf16>
    %987 = arith.truncf %985 : vector<8x32xf32> to vector<8x32xbf16>
    %cst_395 = arith.constant dense<0.000000e+00> : vector<8x128xf32>
    %988 = tpu.matmul %987, %986, %cst_395 {dimension_numbers = #tpu.dot_dimension_numbers<[1], [1], [0], [0], [0, 0, 1, 0], [], []>} : vector<8x32xbf16>, vector<128x32xbf16>, vector<8x128xf32> -> vector<8x128xf32>
    %c0_396 = arith.constant 0 : index
    %c0_397 = arith.constant 0 : index
    %989 = vector.load %arg19[%c0_396, %c0_397] : memref<1x128xf32, #tpu.memory_space<vmem>>, vector<1x128xf32>
    %990 = vector.broadcast %989 : vector<1x128xf32> to vector<8x128xf32>
    %991 = arith.addf %988, %990 : vector<8x128xf32>
    %c0_398 = arith.constant 0 : index
    %c0_399 = arith.constant 0 : index
    %c0_400 = arith.constant 0 : index
    %992 = vector.load %arg5[%c0_398, %c0_399, %c0_400] : memref<1x8x1xi32, #tpu.memory_space<vmem>>, vector<1x8x1xi32>
    %993 = vector.shape_cast %992 : vector<1x8x1xi32> to vector<8x1xi32>
    %cst_401 = arith.constant dense<0xFF800000> : vector<8xf32>
    %994 = vector.multi_reduction <maximumf>, %991, %cst_401 [1] : vector<8x128xf32> to vector<8xf32>
    %995 = vector.shape_cast %994 : vector<8xf32> to vector<8x1xf32>
    %996 = vector.broadcast %995 : vector<8x1xf32> to vector<8x128xf32>
    %997 = arith.subf %991, %996 : vector<8x128xf32>
    %998 = math.exp %997 : vector<8x128xf32>
    %cst_402 = arith.constant dense<0.000000e+00> : vector<8xf32>
    %999 = vector.multi_reduction <add>, %998, %cst_402 [1] : vector<8x128xf32> to vector<8xf32>
    %1000 = vector.shape_cast %999 : vector<8xf32> to vector<8x1xf32>
    %1001 = math.log %1000 : vector<8x1xf32>
    %1002 = arith.addf %995, %1001 : vector<8x1xf32>
    %1003 = tpu.iota {dimensions = array<i32: 1>} : vector<8x128xi32>
    %1004 = vector.broadcast %993 : vector<8x1xi32> to vector<8x128xi32>
    %1005 = arith.cmpi eq, %1003, %1004 : vector<8x128xi32>
    %cst_403 = arith.constant 0.000000e+00 : f32
    %1006 = vector.broadcast %cst_403 : f32 to vector<8x128xf32>
    %1007 = arith.select %1005, %991, %1006 : vector<8x128xi1>, vector<8x128xf32>
    %cst_404 = arith.constant dense<0.000000e+00> : vector<8xf32>
    %1008 = vector.multi_reduction <add>, %1007, %cst_404 [1] : vector<8x128xf32> to vector<8xf32>
    %1009 = vector.shape_cast %1008 : vector<8xf32> to vector<8x1xf32>
    %c-100_i32 = arith.constant -100 : i32
    %1010 = vector.broadcast %c-100_i32 : i32 to vector<8x1xi32>
    %1011 = arith.cmpi ne, %993, %1010 : vector<8x1xi32>
    %1012 = arith.extui %1011 : vector<8x1xi1> to vector<8x1xi32>
    %1013 = arith.sitofp %1012 : vector<8x1xi32> to vector<8x1xf32>
    %1014 = arith.subf %1002, %1009 : vector<8x1xf32>
    %1015 = arith.mulf %1014, %1013 : vector<8x1xf32>
    %1016 = vector.shape_cast %1015 : vector<8x1xf32> to vector<1x8x1xf32>
    %cst_405 = arith.constant dense<0.000000e+00> : vector<1xf32>
    %1017 = vector.multi_reduction <add>, %1016, %cst_405 [1, 2] : vector<1x8x1xf32> to vector<1xf32>
    %1018 = vector.shape_cast %1017 : vector<1xf32> to vector<1x1x1xf32>
    %1019 = vector.extract %1018[0, 0, 0] : f32 from vector<1x1x1xf32>
    %1020 = vector.broadcast %1019 : f32 to vector<1x1x1xf32>
    %c0_406 = arith.constant 0 : index
    %c0_407 = arith.constant 0 : index
    %c0_408 = arith.constant 0 : index
    %1021 = vector.load %arg20[%c0_406, %c0_407, %c0_408] : memref<1x1x1xf32, #tpu.memory_space<vmem>>, vector<1x1x1xf32>
    tpu.vector_store %arg20[%c0_406, %c0_407, %c0_408], %1020 {strides = array<i32>} : memref<1x1x1xf32, #tpu.memory_space<vmem>>, vector<1x1x1xf32>,
    return
  }
  func.func @transform_0(%arg0: i32) -> (i32, i32, i32) {
    %c0_i32 = arith.constant 0 : i32
    %c0_i32_0 = arith.constant 0 : i32
    %c0_i32_1 = arith.constant 0 : i32
    return %arg0, %c0_i32, %c0_i32_0 : i32, i32, i32
  }
  func.func @transform_1(%arg0: i32) -> (i32, i32, i32) {
    %c0_i32 = arith.constant 0 : i32
    %c0_i32_0 = arith.constant 0 : i32
    %c0_i32_1 = arith.constant 0 : i32
    return %arg0, %c0_i32, %c0_i32_0 : i32, i32, i32
  }
  func.func @transform_2(%arg0: i32) -> (i32, i32, i32) {
    %c0_i32 = arith.constant 0 : i32
    %c0_i32_0 = arith.constant 0 : i32
    %c0_i32_1 = arith.constant 0 : i32
    return %arg0, %c0_i32, %c0_i32_0 : i32, i32, i32
  }
  func.func @transform_3(%arg0: i32) -> (i32, i32, i32) {
    %c0_i32 = arith.constant 0 : i32
    %c0_i32_0 = arith.constant 0 : i32
    %c0_i32_1 = arith.constant 0 : i32
    return %arg0, %c0_i32, %c0_i32_0 : i32, i32, i32
  }
  func.func @transform_4(%arg0: i32) -> (i32, i32, i32) {
    %c0_i32 = arith.constant 0 : i32
    %c0_i32_0 = arith.constant 0 : i32
    %c0_i32_1 = arith.constant 0 : i32
    return %arg0, %c0_i32, %c0_i32_0 : i32, i32, i32
  }
  func.func @transform_5(%arg0: i32) -> (i32, i32, i32) {
    %c0_i32 = arith.constant 0 : i32
    %c0_i32_0 = arith.constant 0 : i32
    %c0_i32_1 = arith.constant 0 : i32
    %c0_i32_2 = arith.constant 0 : i32
    return %c0_i32, %c0_i32_0, %c0_i32_1 : i32, i32, i32
  }
  func.func @transform_6(%arg0: i32) -> (i32, i32, i32) {
    %c0_i32 = arith.constant 0 : i32
    %c0_i32_0 = arith.constant 0 : i32
    %c0_i32_1 = arith.constant 0 : i32
    %c0_i32_2 = arith.constant 0 : i32
    return %c0_i32, %c0_i32_0, %c0_i32_1 : i32, i32, i32
  }
  func.func @transform_7(%arg0: i32) -> (i32, i32, i32) {
    %c0_i32 = arith.constant 0 : i32
    %c0_i32_0 = arith.constant 0 : i32
    %c0_i32_1 = arith.constant 0 : i32
    %c0_i32_2 = arith.constant 0 : i32
    return %c0_i32, %c0_i32_0, %c0_i32_1 : i32, i32, i32
  }
  func.func @transform_8(%arg0: i32) -> (i32, i32, i32) {
    %c0_i32 = arith.constant 0 : i32
    %c0_i32_0 = arith.constant 0 : i32
    %c0_i32_1 = arith.constant 0 : i32
    %c0_i32_2 = arith.constant 0 : i32
    return %c0_i32, %c0_i32_0, %c0_i32_1 : i32, i32, i32
  }
  func.func @transform_9(%arg0: i32) -> (i32, i32, i32) {
    %c0_i32 = arith.constant 0 : i32
    %c0_i32_0 = arith.constant 0 : i32
    %c0_i32_1 = arith.constant 0 : i32
    %c0_i32_2 = arith.constant 0 : i32
    return %c0_i32, %c0_i32_0, %c0_i32_1 : i32, i32, i32
  }
  func.func @transform_10(%arg0: i32) -> (i32, i32, i32) {
    %c0_i32 = arith.constant 0 : i32
    %c0_i32_0 = arith.constant 0 : i32
    %c0_i32_1 = arith.constant 0 : i32
    %c0_i32_2 = arith.constant 0 : i32
    return %c0_i32, %c0_i32_0, %c0_i32_1 : i32, i32, i32
  }
  func.func @transform_11(%arg0: i32) -> (i32, i32, i32) {
    %c0_i32 = arith.constant 0 : i32
    %c0_i32_0 = arith.constant 0 : i32
    %c0_i32_1 = arith.constant 0 : i32
    %c0_i32_2 = arith.constant 0 : i32
    return %c0_i32, %c0_i32_0, %c0_i32_1 : i32, i32, i32
  }
  func.func @transform_12(%arg0: i32) -> (i32, i32, i32) {
    %c0_i32 = arith.constant 0 : i32
    %c0_i32_0 = arith.constant 0 : i32
    %c0_i32_1 = arith.constant 0 : i32
    %c0_i32_2 = arith.constant 0 : i32
    return %c0_i32, %c0_i32_0, %c0_i32_1 : i32, i32, i32
  }
  func.func @transform_13(%arg0: i32) -> (i32, i32, i32) {
    %c0_i32 = arith.constant 0 : i32
    %c0_i32_0 = arith.constant 0 : i32
    %c0_i32_1 = arith.constant 0 : i32
    %c0_i32_2 = arith.constant 0 : i32
    return %c0_i32, %c0_i32_0, %c0_i32_1 : i32, i32, i32
  }
  func.func @transform_14(%arg0: i32) -> (i32, i32, i32) {
    %c0_i32 = arith.constant 0 : i32
    %c0_i32_0 = arith.constant 0 : i32
    %c0_i32_1 = arith.constant 0 : i32
    %c0_i32_2 = arith.constant 0 : i32
    return %c0_i32, %c0_i32_0, %c0_i32_1 : i32, i32, i32
  }
  func.func @transform_15(%arg0: i32) -> (i32, i32, i32) {
    %c0_i32 = arith.constant 0 : i32
    %c0_i32_0 = arith.constant 0 : i32
    %c0_i32_1 = arith.constant 0 : i32
    %c0_i32_2 = arith.constant 0 : i32
    return %c0_i32, %c0_i32_0, %c0_i32_1 : i32, i32, i32
  }
  func.func @transform_16(%arg0: i32) -> (i32, i32, i32) {
    %c0_i32 = arith.constant 0 : i32
    %c0_i32_0 = arith.constant 0 : i32
    %c0_i32_1 = arith.constant 0 : i32
    %c0_i32_2 = arith.constant 0 : i32
    return %c0_i32, %c0_i32_0, %c0_i32_1 : i32, i32, i32
  }
  func.func @transform_17(%arg0: i32) -> (i32, i32) {
    %c0_i32 = arith.constant 0 : i32
    %c0_i32_0 = arith.constant 0 : i32
    %c0_i32_1 = arith.constant 0 : i32
    return %c0_i32, %c0_i32_0 : i32, i32
  }
  func.func @transform_18(%arg0: i32) -> (i32, i32) {
    %c0_i32 = arith.constant 0 : i32
    %c0_i32_0 = arith.constant 0 : i32
    %c0_i32_1 = arith.constant 0 : i32
    return %c0_i32, %c0_i32_0 : i32, i32
  }
  func.func @transform_19(%arg0: i32) -> (i32, i32, i32) {
    %c0_i32 = arith.constant 0 : i32
    %c0_i32_0 = arith.constant 0 : i32
    %c0_i32_1 = arith.constant 0 : i32
    return %arg0, %c0_i32, %c0_i32_0 : i32, i32, i32
  }
}

</mosaic_0001>

<llo_original>
// kernel: bart_generation_loss.1
$region0: #{bart_generation_loss.1}
  #allocation0 [shape = 'u32[]', space=smem, size = 0x4, offset = 0x4, fixed_abs, tag = 'smem constant byte address 0x4 - core index']
  #allocation1 [shape = 'u32[72,128]{1,0:T(1,128)}', space=vmem, size = 0x9000, scoped, tag = 'internal scratch']
  %s0 = inlined_call_operand.vmem [shape: f32[2,8,32], index: 0, kind: input, shape index: {}]
  %s1 = inlined_call_operand.vmem [shape: f32[2,8,32], index: 1, kind: input, shape index: {}]
  %s2 = inlined_call_operand.vmem [shape: f32[2,1,8], index: 2, kind: input, shape index: {}]
  %s3 = inlined_call_operand.vmem [shape: f32[2,1,8], index: 3, kind: input, shape index: {}]
  %s4 = inlined_call_operand.vmem [shape: s32[2,8,1], index: 4, kind: input, shape index: {}]
  %s5 = inlined_call_operand.vmem [shape: f32[12,1,32], index: 5, kind: input, shape index: {}]
  %s6 = inlined_call_operand.vmem [shape: f32[12,1,32], index: 6, kind: input, shape index: {}]
  %s7 = inlined_call_operand.vmem [shape: bf16[4,32,96], index: 7, kind: input, shape index: {}]
  %s8 = inlined_call_operand.vmem [shape: f32[4,1,96], index: 8, kind: input, shape index: {}]
  %s9 = inlined_call_operand.vmem [shape: bf16[8,32,32], index: 9, kind: input, shape index: {}]
  %s10 = inlined_call_operand.vmem [shape: f32[8,1,32], index: 10, kind: input, shape index: {}]
  %s11 = inlined_call_operand.vmem [shape: bf16[2,32,64], index: 11, kind: input, shape index: {}]
  %s12 = inlined_call_operand.vmem [shape: f32[2,1,64], index: 12, kind: input, shape index: {}]
  %s13 = inlined_call_operand.vmem [shape: bf16[4,32,64], index: 13, kind: input, shape index: {}]
  %s14 = inlined_call_operand.vmem [shape: f32[4,1,64], index: 14, kind: input, shape index: {}]
  %s15 = inlined_call_operand.vmem [shape: bf16[4,64,32], index: 15, kind: input, shape index: {}]
  %s16 = inlined_call_operand.vmem [shape: f32[4,1,32], index: 16, kind: input, shape index: {}]
  %s17 = inlined_call_operand.vmem [shape: bf16[128,32], index: 17, kind: input, shape index: {}]
  %s18 = inlined_call_operand.vmem [shape: f32[1,128], index: 18, kind: input, shape index: {}]
  %s19 = inlined_call_operand.vmem [shape: f32[2,1,1], index: 19, kind: output, shape index: {}]
  %s20 = sld [smem:[#allocation0]]
  $region109: #{bart_generation_loss.1} parent=0
    _
  %s22 = ssub.s32 1, %s20
  %s23 = scalar_select 0, %s22, %s20
  loop: start=0, step=1, limit=4
  $region2: #{bart_generation_loss.1} parent=0 // loop_pre_header
    _
  $region3: #{bart_generation_loss.1} parent=0 // loop_header
    %s25 = sphi 0, %s29
    %p26 = scmp.ge.s32.totalorder %s25, 4
    %s35 = sphi 0, %s37
    %s38 = sphi 0, %s35
    %s39 = sphi 0, %s38
    %s55 = sphi 0, %s39
    %s61 = sphi 0, %s63
    %s64 = sphi 0, %s61
    %s65 = sphi 0, %s64
    %s81 = sphi 0, %s65
    %s87 = sphi 0, %s89
    %s90 = sphi 0, %s87
    %s91 = sphi 0, %s90
    %s107 = sphi 0, %s91
    %s113 = sphi 0, %s115
    %s116 = sphi 0, %s113
    %s117 = sphi 0, %s116
    %s133 = sphi 0, %s117
    %s139 = sphi 0, %s141
    %s142 = sphi 0, %s139
    %s143 = sphi 0, %s142
    %s159 = sphi 0, %s143
    %s163 = sphi 0, %s163
    %s165 = sphi 0, %s163
    %s166 = sphi 0, %s165
    %s180 = sphi 0, %s166
    %s184 = sphi 0, %s184
    %s186 = sphi 0, %s184
    %s187 = sphi 0, %s186
    %s201 = sphi 0, %s187
    %s205 = sphi 0, %s205
    %s207 = sphi 0, %s205
    %s208 = sphi 0, %s207
    %s222 = sphi 0, %s208
    %s226 = sphi 0, %s226
    %s228 = sphi 0, %s226
    %s229 = sphi 0, %s228
    %s243 = sphi 0, %s229
    %s247 = sphi 0, %s247
    %s249 = sphi 0, %s247
    %s250 = sphi 0, %s249
    %s264 = sphi 0, %s250
    %s268 = sphi 0, %s268
    %s270 = sphi 0, %s268
    %s271 = sphi 0, %s270
    %s285 = sphi 0, %s271
    %s289 = sphi 0, %s289
    %s291 = sphi 0, %s289
    %s292 = sphi 0, %s291
    %s306 = sphi 0, %s292
    %s310 = sphi 0, %s310
    %s312 = sphi 0, %s310
    %s313 = sphi 0, %s312
    %s327 = sphi 0, %s313
    %s331 = sphi 0, %s331
    %s333 = sphi 0, %s331
    %s334 = sphi 0, %s333
    %s348 = sphi 0, %s334
    %s352 = sphi 0, %s352
    %s354 = sphi 0, %s352
    %s355 = sphi 0, %s354
    %s369 = sphi 0, %s355
    %s373 = sphi 0, %s373
    %s375 = sphi 0, %s373
    %s376 = sphi 0, %s375
    %s390 = sphi 0, %s376
    %s394 = sphi 0, %s394
    %s396 = sphi 0, %s394
    %s397 = sphi 0, %s396
    %s411 = sphi 0, %s397
    %s415 = sphi 0, %s415
    %s417 = sphi 0, %s415
    %s418 = sphi 0, %s417
    %s432 = sphi 0, %s418
    %s436 = sphi 0, %s436
    %s438 = sphi 0, %s436
    %s439 = sphi 0, %s438
    %s453 = sphi 0, %s439
    %s459 = sphi 0, %s461
    %s462 = sphi 0, %s459
    %s463 = sphi 0, %s462
    %s479 = sphi 0, %s463
  $region4: #{bart_generation_loss.1} parent=0 // loop_header_branch
    %28 = sbr.rel (%p26) target = $region8
  $region5: #{bart_generation_loss.1} parent=0 // loop_body
    %s30 = ssub.s32 %s25, 1
    %s31 = ssub.s32 %s25, 2
    %s32 = sadd.s32 %s25, 1
    %s33 = ssub.s32 %s25, %s32
    %p34 = scmp.eq.s32.totalorder %s33, 0
    %s36 = sadd.s32 %s35, 1
    %s37 = scalar_select %p34, %s35, %s36
    %p40 = pneg %p34
    %p41 = scmp.eq.s32.totalorder %s25, 1
    %p42 = por %p40, %p41
    %p43 = scmp.ne.s32.totalorder %s35, %s38
    %p44 = scmp.eq.s32.totalorder %s25, 0
    %p45 = por %p43, %p44
    %p46 = scmp.ne.s32.totalorder %s35, %s38
    %p47 = scmp.eq.s32.totalorder %s30, 1
    %p48 = por %p46, %p47
    %p49 = scmp.ne.s32.totalorder %s38, %s39
    %p50 = scmp.eq.s32.totalorder %s30, 0
    %p51 = por %p49, %p50
    %p52 = scmp.ne.s32.totalorder %s38, %s39
    %p53 = scmp.eq.s32.totalorder %s31, 1
    %p54 = por %p52, %p53
    %p56 = scmp.ne.s32.totalorder %s39, %s55
    %p57 = scmp.eq.s32.totalorder %s31, 0
    %p58 = por %p56, %p57
    %s59 = ssub.s32 %s25, %s32
    %p60 = scmp.eq.s32.totalorder %s59, 0
    %s62 = sadd.s32 %s61, 1
    %s63 = scalar_select %p60, %s61, %s62
    %p66 = pneg %p60
    %p67 = scmp.eq.s32.totalorder %s25, 1
    %p68 = por %p66, %p67
    %p69 = scmp.ne.s32.totalorder %s61, %s64
    %p70 = scmp.eq.s32.totalorder %s25, 0
    %p71 = por %p69, %p70
    %p72 = scmp.ne.s32.totalorder %s61, %s64
    %p73 = scmp.eq.s32.totalorder %s30, 1
    %p74 = por %p72, %p73
    %p75 = scmp.ne.s32.totalorder %s64, %s65
    %p76 = scmp.eq.s32.totalorder %s30, 0
    %p77 = por %p75, %p76
    %p78 = scmp.ne.s32.totalorder %s64, %s65
    %p79 = scmp.eq.s32.totalorder %s31, 1
    %p80 = por %p78, %p79
    %p82 = scmp.ne.s32.totalorder %s65, %s81
    %p83 = scmp.eq.s32.totalorder %s31, 0
    %p84 = por %p82, %p83
    %s85 = ssub.s32 %s25, %s32
    %p86 = scmp.eq.s32.totalorder %s85, 0
    %s88 = sadd.s32 %s87, 1
    %s89 = scalar_select %p86, %s87, %s88
    %p92 = pneg %p86
    %p93 = scmp.eq.s32.totalorder %s25, 1
    %p94 = por %p92, %p93
    %p95 = scmp.ne.s32.totalorder %s87, %s90
    %p96 = scmp.eq.s32.totalorder %s25, 0
    %p97 = por %p95, %p96
    %p98 = scmp.ne.s32.totalorder %s87, %s90
    %p99 = scmp.eq.s32.totalorder %s30, 1
    %p100 = por %p98, %p99
    %p101 = scmp.ne.s32.totalorder %s90, %s91
    %p102 = scmp.eq.s32.totalorder %s30, 0
    %p103 = por %p101, %p102
    %p104 = scmp.ne.s32.totalorder %s90, %s91
    %p105 = scmp.eq.s32.totalorder %s31, 1
    %p106 = por %p104, %p105
    %p108 = scmp.ne.s32.totalorder %s91, %s107
    %p109 = scmp.eq.s32.totalorder %s31, 0
    %p110 = por %p108, %p109
    %s111 = ssub.s32 %s25, %s32
    %p112 = scmp.eq.s32.totalorder %s111, 0
    %s114 = sadd.s32 %s113, 1
    %s115 = scalar_select %p112, %s113, %s114
    %p118 = pneg %p112
    %p119 = scmp.eq.s32.totalorder %s25, 1
    %p120 = por %p118, %p119
    %p121 = scmp.ne.s32.totalorder %s113, %s116
    %p122 = scmp.eq.s32.totalorder %s25, 0
    %p123 = por %p121, %p122
    %p124 = scmp.ne.s32.totalorder %s113, %s116
    %p125 = scmp.eq.s32.totalorder %s30, 1
    %p126 = por %p124, %p125
    %p127 = scmp.ne.s32.totalorder %s116, %s117
    %p128 = scmp.eq.s32.totalorder %s30, 0
    %p129 = por %p127, %p128
    %p130 = scmp.ne.s32.totalorder %s116, %s117
    %p131 = scmp.eq.s32.totalorder %s31, 1
    %p132 = por %p130, %p131
    %p134 = scmp.ne.s32.totalorder %s117, %s133
    %p135 = scmp.eq.s32.totalorder %s31, 0
    %p136 = por %p134, %p135
    %s137 = ssub.s32 %s25, %s32
    %p138 = scmp.eq.s32.totalorder %s137, 0
    %s140 = sadd.s32 %s139, 1
    %s141 = scalar_select %p138, %s139, %s140
    %p144 = pneg %p138
    %p145 = scmp.eq.s32.totalorder %s25, 1
    %p146 = por %p144, %p145
    %p147 = scmp.ne.s32.totalorder %s139, %s142
    %p148 = scmp.eq.s32.totalorder %s25, 0
    %p149 = por %p147, %p148
    %p150 = scmp.ne.s32.totalorder %s139, %s142
    %p151 = scmp.eq.s32.totalorder %s30, 1
    %p152 = por %p150, %p151
    %p153 = scmp.ne.s32.totalorder %s142, %s143
    %p154 = scmp.eq.s32.totalorder %s30, 0
    %p155 = por %p153, %p154
    %p156 = scmp.ne.s32.totalorder %s142, %s143
    %p157 = scmp.eq.s32.totalorder %s31, 1
    %p158 = por %p156, %p157
    %p160 = scmp.ne.s32.totalorder %s143, %s159
    %p161 = scmp.eq.s32.totalorder %s31, 0
    %p162 = por %p160, %p161
    %s164 = sadd.s32 %s163, 1
    %p167 = scmp.eq.s32.totalorder %s25, 1
    %p168 = scmp.ne.s32.totalorder %s163, %s165
    %p169 = scmp.eq.s32.totalorder %s25, 0
    %p170 = por %p168, %p169
    %p171 = scmp.ne.s32.totalorder %s163, %s165
    %p172 = scmp.eq.s32.totalorder %s30, 1
    %p173 = por %p171, %p172
    %p174 = scmp.ne.s32.totalorder %s165, %s166
    %p175 = scmp.eq.s32.totalorder %s30, 0
    %p176 = por %p174, %p175
    %p177 = scmp.ne.s32.totalorder %s165, %s166
    %p178 = scmp.eq.s32.totalorder %s31, 1
    %p179 = por %p177, %p178
    %p181 = scmp.ne.s32.totalorder %s166, %s180
    %p182 = scmp.eq.s32.totalorder %s31, 0
    %p183 = por %p181, %p182
    %s185 = sadd.s32 %s184, 1
    %p188 = scmp.eq.s32.totalorder %s25, 1
    %p189 = scmp.ne.s32.totalorder %s184, %s186
    %p190 = scmp.eq.s32.totalorder %s25, 0
    %p191 = por %p189, %p190
    %p192 = scmp.ne.s32.totalorder %s184, %s186
    %p193 = scmp.eq.s32.totalorder %s30, 1
    %p194 = por %p192, %p193
    %p195 = scmp.ne.s32.totalorder %s186, %s187
    %p196 = scmp.eq.s32.totalorder %s30, 0
    %p197 = por %p195, %p196
    %p198 = scmp.ne.s32.totalorder %s186, %s187
    %p199 = scmp.eq.s32.totalorder %s31, 1
    %p200 = por %p198, %p199
    %p202 = scmp.ne.s32.totalorder %s187, %s201
    %p203 = scmp.eq.s32.totalorder %s31, 0
    %p204 = por %p202, %p203
    %s206 = sadd.s32 %s205, 1
    %p209 = scmp.eq.s32.totalorder %s25, 1
    %p210 = scmp.ne.s32.totalorder %s205, %s207
    %p211 = scmp.eq.s32.totalorder %s25, 0
    %p212 = por %p210, %p211
    %p213 = scmp.ne.s32.totalorder %s205, %s207
    %p214 = scmp.eq.s32.totalorder %s30, 1
    %p215 = por %p213, %p214
    %p216 = scmp.ne.s32.totalorder %s207, %s208
    %p217 = scmp.eq.s32.totalorder %s30, 0
    %p218 = por %p216, %p217
    %p219 = scmp.ne.s32.totalorder %s207, %s208
    %p220 = scmp.eq.s32.totalorder %s31, 1
    %p221 = por %p219, %p220
    %p223 = scmp.ne.s32.totalorder %s208, %s222
    %p224 = scmp.eq.s32.totalorder %s31, 0
    %p225 = por %p223, %p224
    %s227 = sadd.s32 %s226, 1
    %p230 = scmp.eq.s32.totalorder %s25, 1
    %p231 = scmp.ne.s32.totalorder %s226, %s228
    %p232 = scmp.eq.s32.totalorder %s25, 0
    %p233 = por %p231, %p232
    %p234 = scmp.ne.s32.totalorder %s226, %s228
    %p235 = scmp.eq.s32.totalorder %s30, 1
    %p236 = por %p234, %p235
    %p237 = scmp.ne.s32.totalorder %s228, %s229
    %p238 = scmp.eq.s32.totalorder %s30, 0
    %p239 = por %p237, %p238
    %p240 = scmp.ne.s32.totalorder %s228, %s229
    %p241 = scmp.eq.s32.totalorder %s31, 1
    %p242 = por %p240, %p241
    %p244 = scmp.ne.s32.totalorder %s229, %s243
    %p245 = scmp.eq.s32.totalorder %s31, 0
    %p246 = por %p244, %p245
    %s248 = sadd.s32 %s247, 1
    %p251 = scmp.eq.s32.totalorder %s25, 1
    %p252 = scmp.ne.s32.totalorder %s247, %s249
    %p253 = scmp.eq.s32.totalorder %s25, 0
    %p254 = por %p252, %p253
    %p255 = scmp.ne.s32.totalorder %s247, %s249
    %p256 = scmp.eq.s32.totalorder %s30, 1
    %p257 = por %p255, %p256
    %p258 = scmp.ne.s32.totalorder %s249, %s250
    %p259 = scmp.eq.s32.totalorder %s30, 0
    %p260 = por %p258, %p259
    %p261 = scmp.ne.s32.totalorder %s249, %s250
    %p262 = scmp.eq.s32.totalorder %s31, 1
    %p263 = por %p261, %p262
    %p265 = scmp.ne.s32.totalorder %s250, %s264
    %p266 = scmp.eq.s32.totalorder %s31, 0
    %p267 = por %p265, %p266
    %s269 = sadd.s32 %s268, 1
    %p272 = scmp.eq.s32.totalorder %s25, 1
    %p273 = scmp.ne.s32.totalorder %s268, %s270
    %p274 = scmp.eq.s32.totalorder %s25, 0
    %p275 = por %p273, %p274
    %p276 = scmp.ne.s32.totalorder %s268, %s270
    %p277 = scmp.eq.s32.totalorder %s30, 1
    %p278 = por %p276, %p277
    %p279 = scmp.ne.s32.totalorder %s270, %s271
    %p280 = scmp.eq.s32.totalorder %s30, 0
    %p281 = por %p279, %p280
    %p282 = scmp.ne.s32.totalorder %s270, %s271
    %p283 = scmp.eq.s32.totalorder %s31, 1
    %p284 = por %p282, %p283
    %p286 = scmp.ne.s32.totalorder %s271, %s285
    %p287 = scmp.eq.s32.totalorder %s31, 0
    %p288 = por %p286, %p287
    %s290 = sadd.s32 %s289, 1
    %p293 = scmp.eq.s32.totalorder %s25, 1
    %p294 = scmp.ne.s32.totalorder %s289, %s291
    %p295 = scmp.eq.s32.totalorder %s25, 0
    %p296 = por %p294, %p295
    %p297 = scmp.ne.s32.totalorder %s289, %s291
    %p298 = scmp.eq.s32.totalorder %s30, 1
    %p299 = por %p297, %p298
    %p300 = scmp.ne.s32.totalorder %s291, %s292
    %p301 = scmp.eq.s32.totalorder %s30, 0
    %p302 = por %p300, %p301
    %p303 = scmp.ne.s32.totalorder %s291, %s292
    %p304 = scmp.eq.s32.totalorder %s31, 1
    %p305 = por %p303, %p304
    %p307 = scmp.ne.s32.totalorder %s292, %s306
    %p308 = scmp.eq.s32.totalorder %s31, 0
    %p309 = por %p307, %p308
    %s311 = sadd.s32 %s310, 1
    %p314 = scmp.eq.s32.totalorder %s25, 1
    %p315 = scmp.ne.s32.totalorder %s310, %s312
    %p316 = scmp.eq.s32.totalorder %s25, 0
    %p317 = por %p315, %p316
    %p318 = scmp.ne.s32.totalorder %s310, %s312
    %p319 = scmp.eq.s32.totalorder %s30, 1
    %p320 = por %p318, %p319
    %p321 = scmp.ne.s32.totalorder %s312, %s313
    %p322 = scmp.eq.s32.totalorder %s30, 0
    %p323 = por %p321, %p322
    %p324 = scmp.ne.s32.totalorder %s312, %s313
    %p325 = scmp.eq.s32.totalorder %s31, 1
    %p326 = por %p324, %p325
    %p328 = scmp.ne.s32.totalorder %s313, %s327
    %p329 = scmp.eq.s32.totalorder %s31, 0
    %p330 = por %p328, %p329
    %s332 = sadd.s32 %s331, 1
    %p335 = scmp.eq.s32.totalorder %s25, 1
    %p336 = scmp.ne.s32.totalorder %s331, %s333
    %p337 = scmp.eq.s32.totalorder %s25, 0
    %p338 = por %p336, %p337
    %p339 = scmp.ne.s32.totalorder %s331, %s333
    %p340 = scmp.eq.s32.totalorder %s30, 1
    %p341 = por %p339, %p340
    %p342 = scmp.ne.s32.totalorder %s333, %s334
    %p343 = scmp.eq.s32.totalorder %s30, 0
    %p344 = por %p342, %p343
    %p345 = scmp.ne.s32.totalorder %s333, %s334
    %p346 = scmp.eq.s32.totalorder %s31, 1
    %p347 = por %p345, %p346
    %p349 = scmp.ne.s32.totalorder %s334, %s348
    %p350 = scmp.eq.s32.totalorder %s31, 0
    %p351 = por %p349, %p350
    %s353 = sadd.s32 %s352, 1
    %p356 = scmp.eq.s32.totalorder %s25, 1
    %p357 = scmp.ne.s32.totalorder %s352, %s354
    %p358 = scmp.eq.s32.totalorder %s25, 0
    %p359 = por %p357, %p358
    %p360 = scmp.ne.s32.totalorder %s352, %s354
    %p361 = scmp.eq.s32.totalorder %s30, 1
    %p362 = por %p360, %p361
    %p363 = scmp.ne.s32.totalorder %s354, %s355
    %p364 = scmp.eq.s32.totalorder %s30, 0
    %p365 = por %p363, %p364
    %p366 = scmp.ne.s32.totalorder %s354, %s355
    %p367 = scmp.eq.s32.totalorder %s31, 1
    %p368 = por %p366, %p367
    %p370 = scmp.ne.s32.totalorder %s355, %s369
    %p371 = scmp.eq.s32.totalorder %s31, 0
    %p372 = por %p370, %p371
    %s374 = sadd.s32 %s373, 1
    %p377 = scmp.eq.s32.totalorder %s25, 1
    %p378 = scmp.ne.s32.totalorder %s373, %s375
    %p379 = scmp.eq.s32.totalorder %s25, 0
    %p380 = por %p378, %p379
    %p381 = scmp.ne.s32.totalorder %s373, %s375
    %p382 = scmp.eq.s32.totalorder %s30, 1
    %p383 = por %p381, %p382
    %p384 = scmp.ne.s32.totalorder %s375, %s376
    %p385 = scmp.eq.s32.totalorder %s30, 0
    %p386 = por %p384, %p385
    %p387 = scmp.ne.s32.totalorder %s375, %s376
    %p388 = scmp.eq.s32.totalorder %s31, 1
    %p389 = por %p387, %p388
    %p391 = scmp.ne.s32.totalorder %s376, %s390
    %p392 = scmp.eq.s32.totalorder %s31, 0
    %p393 = por %p391, %p392
    %s395 = sadd.s32 %s394, 1
    %p398 = scmp.eq.s32.totalorder %s25, 1
    %p399 = scmp.ne.s32.totalorder %s394, %s396
    %p400 = scmp.eq.s32.totalorder %s25, 0
    %p401 = por %p399, %p400
    %p402 = scmp.ne.s32.totalorder %s394, %s396
    %p403 = scmp.eq.s32.totalorder %s30, 1
    %p404 = por %p402, %p403
    %p405 = scmp.ne.s32.totalorder %s396, %s397
    %p406 = scmp.eq.s32.totalorder %s30, 0
    %p407 = por %p405, %p406
    %p408 = scmp.ne.s32.totalorder %s396, %s397
    %p409 = scmp.eq.s32.totalorder %s31, 1
    %p410 = por %p408, %p409
    %p412 = scmp.ne.s32.totalorder %s397, %s411
    %p413 = scmp.eq.s32.totalorder %s31, 0
    %p414 = por %p412, %p413
    %s416 = sadd.s32 %s415, 1
    %p419 = scmp.eq.s32.totalorder %s25, 1
    %p420 = scmp.ne.s32.totalorder %s415, %s417
    %p421 = scmp.eq.s32.totalorder %s25, 0
    %p422 = por %p420, %p421
    %p423 = scmp.ne.s32.totalorder %s415, %s417
    %p424 = scmp.eq.s32.totalorder %s30, 1
    %p425 = por %p423, %p424
    %p426 = scmp.ne.s32.totalorder %s417, %s418
    %p427 = scmp.eq.s32.totalorder %s30, 0
    %p428 = por %p426, %p427
    %p429 = scmp.ne.s32.totalorder %s417, %s418
    %p430 = scmp.eq.s32.totalorder %s31, 1
    %p431 = por %p429, %p430
    %p433 = scmp.ne.s32.totalorder %s418, %s432
    %p434 = scmp.eq.s32.totalorder %s31, 0
    %p435 = por %p433, %p434
    %s437 = sadd.s32 %s436, 1
    %p440 = scmp.eq.s32.totalorder %s25, 1
    %p441 = scmp.ne.s32.totalorder %s436, %s438
    %p442 = scmp.eq.s32.totalorder %s25, 0
    %p443 = por %p441, %p442
    %p444 = scmp.ne.s32.totalorder %s436, %s438
    %p445 = scmp.eq.s32.totalorder %s30, 1
    %p446 = por %p444, %p445
    %p447 = scmp.ne.s32.totalorder %s438, %s439
    %p448 = scmp.eq.s32.totalorder %s30, 0
    %p449 = por %p447, %p448
    %p450 = scmp.ne.s32.totalorder %s438, %s439
    %p451 = scmp.eq.s32.totalorder %s31, 1
    %p452 = por %p450, %p451
    %p454 = scmp.ne.s32.totalorder %s439, %s453
    %p455 = scmp.eq.s32.totalorder %s31, 0
    %p456 = por %p454, %p455
    %s457 = ssub.s32 %s25, %s32
    %p458 = scmp.eq.s32.totalorder %s457, 0
    %s460 = sadd.s32 %s459, 1
    %s461 = scalar_select %p458, %s459, %s460
    %p464 = pneg %p458
    %p465 = scmp.eq.s32.totalorder %s25, 1
    %p466 = por %p464, %p465
    %p467 = scmp.ne.s32.totalorder %s459, %s462
    %p468 = scmp.eq.s32.totalorder %s25, 0
    %p469 = por %p467, %p468
    %p470 = scmp.ne.s32.totalorder %s459, %s462
    %p471 = scmp.eq.s32.totalorder %s30, 1
    %p472 = por %p470, %p471
    %p473 = scmp.ne.s32.totalorder %s462, %s463
    %p474 = scmp.eq.s32.totalorder %s30, 0
    %p475 = por %p473, %p474
    %p476 = scmp.ne.s32.totalorder %s462, %s463
    %p477 = scmp.eq.s32.totalorder %s31, 1
    %p478 = por %p476, %p477
    %p480 = scmp.ne.s32.totalorder %s463, %s479
    %p481 = scmp.eq.s32.totalorder %s31, 0
    %p482 = por %p480, %p481
    %p483 = scmp.le.s32.totalorder 1, %s25
    %p484 = scmp.lt.s32.totalorder %s25, 3
    %p485 = pnand %p483, %p484
    %p486 = pneg %p485
    // Predicated region
    $region9: #{bart_generation_loss.1} parent=5 // pred_check
      _
    $region10: #{bart_generation_loss.1} parent=5 // pred_check_branch
      %488 = sbr.rel (%p485) target = $region12
    $region11: #{bart_generation_loss.1} parent=5 // pred_region
      %s489 = ssub.s32 %s25, 1
      // Predicated region
      $region13: #{bart_generation_loss.1} parent=11 // pred_check
        %p490 = pneg %p176
      $region14: #{bart_generation_loss.1} parent=11 // pred_check_branch
        %492 = sbr.rel (%p490) target = $region16
      $region15: #{bart_generation_loss.1} parent=11 // pred_region
        _
      $region16: #{bart_generation_loss.1} parent=11 // pred_fallthru
        _
      // Predicated region
      $region17: #{bart_generation_loss.1} parent=11 // pred_check
        %p493 = pneg %p197
      $region18: #{bart_generation_loss.1} parent=11 // pred_check_branch
        %495 = sbr.rel (%p493) target = $region20
      $region19: #{bart_generation_loss.1} parent=11 // pred_region
        _
      $region20: #{bart_generation_loss.1} parent=11 // pred_fallthru
        _
      // Predicated region
      $region21: #{bart_generation_loss.1} parent=11 // pred_check
        %p496 = pneg %p218
      $region22: #{bart_generation_loss.1} parent=11 // pred_check_branch
        %498 = sbr.rel (%p496) target = $region24
      $region23: #{bart_generation_loss.1} parent=11 // pred_region
        _
      $region24: #{bart_generation_loss.1} parent=11 // pred_fallthru
        _
      // Predicated region
      $region25: #{bart_generation_loss.1} parent=11 // pred_check
        %p499 = pneg %p239
      $region26: #{bart_generation_loss.1} parent=11 // pred_check_branch
        %501 = sbr.rel (%p499) target = $region28
      $region27: #{bart_generation_loss.1} parent=11 // pred_region
        _
      $region28: #{bart_generation_loss.1} parent=11 // pred_fallthru
        _
      // Predicated region
      $region29: #{bart_generation_loss.1} parent=11 // pred_check
        %p502 = pneg %p260
      $region30: #{bart_generation_loss.1} parent=11 // pred_check_branch
        %504 = sbr.rel (%p502) target = $region32
      $region31: #{bart_generation_loss.1} parent=11 // pred_region
        _
      $region32: #{bart_generation_loss.1} parent=11 // pred_fallthru
        _
      // Predicated region
      $region33: #{bart_generation_loss.1} parent=11 // pred_check
        %p505 = pneg %p281
      $region34: #{bart_generation_loss.1} parent=11 // pred_check_branch
        %507 = sbr.rel (%p505) target = $region36
      $region35: #{bart_generation_loss.1} parent=11 // pred_region
        _
      $region36: #{bart_generation_loss.1} parent=11 // pred_fallthru
        _
      // Predicated region
      $region37: #{bart_generation_loss.1} parent=11 // pred_check
        %p508 = pneg %p302
      $region38: #{bart_generation_loss.1} parent=11 // pred_check_branch
        %510 = sbr.rel (%p508) target = $region40
      $region39: #{bart_generation_loss.1} parent=11 // pred_region
        _
      $region40: #{bart_generation_loss.1} parent=11 // pred_fallthru
        _
      // Predicated region
      $region41: #{bart_generation_loss.1} parent=11 // pred_check
        %p511 = pneg %p323
      $region42: #{bart_generation_loss.1} parent=11 // pred_check_branch
        %513 = sbr.rel (%p511) target = $region44
      $region43: #{bart_generation_loss.1} parent=11 // pred_region
        _
      $region44: #{bart_generation_loss.1} parent=11 // pred_fallthru
        _
      // Predicated region
      $region45: #{bart_generation_loss.1} parent=11 // pred_check
        %p514 = pneg %p344
      $region46: #{bart_generation_loss.1} parent=11 // pred_check_branch
        %516 = sbr.rel (%p514) target = $region48
      $region47: #{bart_generation_loss.1} parent=11 // pred_region
        _
      $region48: #{bart_generation_loss.1} parent=11 // pred_fallthru
        _
      // Predicated region
      $region49: #{bart_generation_loss.1} parent=11 // pred_check
        %p517 = pneg %p365
      $region50: #{bart_generation_loss.1} parent=11 // pred_check_branch
        %519 = sbr.rel (%p517) target = $region52
      $region51: #{bart_generation_loss.1} parent=11 // pred_region
        _
      $region52: #{bart_generation_loss.1} parent=11 // pred_fallthru
        _
      // Predicated region
      $region53: #{bart_generation_loss.1} parent=11 // pred_check
        %p520 = pneg %p386
      $region54: #{bart_generation_loss.1} parent=11 // pred_check_branch
        %522 = sbr.rel (%p520) target = $region56
      $region55: #{bart_generation_loss.1} parent=11 // pred_region
        _
      $region56: #{bart_generation_loss.1} parent=11 // pred_fallthru
        _
      // Predicated region
      $region57: #{bart_generation_loss.1} parent=11 // pred_check
        %p523 = pneg %p407
      $region58: #{bart_generation_loss.1} parent=11 // pred_check_branch
        %525 = sbr.rel (%p523) target = $region60
      $region59: #{bart_generation_loss.1} parent=11 // pred_region
        _
      $region60: #{bart_generation_loss.1} parent=11 // pred_fallthru
        _
      // Predicated region
      $region61: #{bart_generation_loss.1} parent=11 // pred_check
        %p526 = pneg %p428
      $region62: #{bart_generation_loss.1} parent=11 // pred_check_branch
        %528 = sbr.rel (%p526) target = $region64
      $region63: #{bart_generation_loss.1} parent=11 // pred_region
        _
      $region64: #{bart_generation_loss.1} parent=11 // pred_fallthru
        _
      // Predicated region
      $region65: #{bart_generation_loss.1} parent=11 // pred_check
        %p529 = pneg %p449
      $region66: #{bart_generation_loss.1} parent=11 // pred_check_branch
        %531 = sbr.rel (%p529) target = $region68
      $region67: #{bart_generation_loss.1} parent=11 // pred_region
        _
      $region68: #{bart_generation_loss.1} parent=11 // pred_fallthru
        _
    $region12: #{bart_generation_loss.1} parent=5 // pred_fallthru
      _
    %p532 = scmp.lt.s32.totalorder %s25, 2
    // Predicated region
    $region69: #{bart_generation_loss.1} parent=5 // pred_check
      %p533 = pneg %p532
    $region70: #{bart_generation_loss.1} parent=5 // pred_check_branch
      %535 = sbr.rel (%p533) target = $region72
    $region71: #{bart_generation_loss.1} parent=5 // pred_region
      // Predicated region
      $region73: #{bart_generation_loss.1} parent=71 // pred_check
        %p536 = pneg %p45
      $region74: #{bart_generation_loss.1} parent=71 // pred_check_branch
        %538 = sbr.rel (%p536) target = $region76
      $region75: #{bart_generation_loss.1} parent=71 // pred_region
        %p539 = scmp.lt.s32.totalorder %s25, 1
        %s540 = scalar_select %p539, %s25, 1
        %s541 = smul.addr %s540, 8
        %s542 = scalar_lea.vmem %s0, %s541
      $region76: #{bart_generation_loss.1} parent=71 // pred_fallthru
        _
      // Predicated region
      $region77: #{bart_generation_loss.1} parent=71 // pred_check
        %p543 = pneg %p71
      $region78: #{bart_generation_loss.1} parent=71 // pred_check_branch
        %545 = sbr.rel (%p543) target = $region80
      $region79: #{bart_generation_loss.1} parent=71 // pred_region
        %p546 = scmp.lt.s32.totalorder %s25, 1
        %s547 = scalar_select %p546, %s25, 1
        %s548 = smul.addr %s547, 8
        %s549 = scalar_lea.vmem %s1, %s548
      $region80: #{bart_generation_loss.1} parent=71 // pred_fallthru
        _
      // Predicated region
      $region81: #{bart_generation_loss.1} parent=71 // pred_check
        %p550 = pneg %p97
      $region82: #{bart_generation_loss.1} parent=71 // pred_check_branch
        %552 = sbr.rel (%p550) target = $region84
      $region83: #{bart_generation_loss.1} parent=71 // pred_region
        %p553 = scmp.lt.s32.totalorder %s25, 1
        %s554 = scalar_select %p553, %s25, 1
        %s555 = scalar_lea.vmem %s2, %s554
      $region84: #{bart_generation_loss.1} parent=71 // pred_fallthru
        _
      // Predicated region
      $region85: #{bart_generation_loss.1} parent=71 // pred_check
        %p556 = pneg %p123
      $region86: #{bart_generation_loss.1} parent=71 // pred_check_branch
        %558 = sbr.rel (%p556) target = $region88
      $region87: #{bart_generation_loss.1} parent=71 // pred_region
        %p559 = scmp.lt.s32.totalorder %s25, 1
        %s560 = scalar_select %p559, %s25, 1
        %s561 = scalar_lea.vmem %s3, %s560
      $region88: #{bart_generation_loss.1} parent=71 // pred_fallthru
        _
      // Predicated region
      $region89: #{bart_generation_loss.1} parent=71 // pred_check
        %p562 = pneg %p149
      $region90: #{bart_generation_loss.1} parent=71 // pred_check_branch
        %564 = sbr.rel (%p562) target = $region92
      $region91: #{bart_generation_loss.1} parent=71 // pred_region
        %p565 = scmp.lt.s32.totalorder %s25, 1
        %s566 = scalar_select %p565, %s25, 1
        %s567 = smul.addr %s566, 8
        %s568 = scalar_lea.vmem %s4, %s567
      $region92: #{bart_generation_loss.1} parent=71 // pred_fallthru
        _
    $region72: #{bart_generation_loss.1} parent=5 // pred_fallthru
      _
    %p569 = scmp.le.s32.totalorder 1, %s25
    %p570 = scmp.lt.s32.totalorder %s25, 3
    %p571 = pnand %p569, %p570
    %p572 = pneg %p571
    // Predicated region
    $region93: #{bart_generation_loss.1} parent=5 // pred_check
      _
    $region94: #{bart_generation_loss.1} parent=5 // pred_check_branch
      %574 = sbr.rel (%p571) target = $region96
    $region95: #{bart_generation_loss.1} parent=5 // pred_region
      %s575 = ssub.s32 %s25, 1
      %p576 = scmp.lt.s32.totalorder %s30, 1
      %s577 = scalar_select %p576, %s30, 1
      %s578 = smul.addr %s577, 8
      %s579 = scalar_lea.vmem %s0, %s578
      %p580 = pneg %p51
      %p581 = pneg %p48
      %p582 = scmp.lt.s32.totalorder %s30, 1
      %s583 = scalar_select %p582, %s30, 1
      %s584 = smul.addr %s583, 8
      %s585 = scalar_lea.vmem %s1, %s584
      %p586 = pneg %p77
      %p587 = pneg %p74
      %p588 = scmp.lt.s32.totalorder %s30, 1
      %s589 = scalar_select %p588, %s30, 1
      %s590 = scalar_lea.vmem %s2, %s589
      %p591 = pneg %p103
      %p592 = pneg %p100
      %p593 = scmp.lt.s32.totalorder %s30, 1
      %s594 = scalar_select %p593, %s30, 1
      %s595 = scalar_lea.vmem %s3, %s594
      %p596 = pneg %p129
      %p597 = pneg %p126
      %p598 = scmp.lt.s32.totalorder %s30, 1
      %s599 = scalar_select %p598, %s30, 1
      %s600 = smul.addr %s599, 8
      %s601 = scalar_lea.vmem %s4, %s600
      %p602 = pneg %p155
      %p603 = pneg %p152
      %p604 = pneg %p176
      %p605 = pneg %p173
      %p606 = pneg %p197
      %p607 = pneg %p194
      %p608 = pneg %p218
      %p609 = pneg %p215
      %p610 = pneg %p239
      %p611 = pneg %p236
      %p612 = pneg %p260
      %p613 = pneg %p257
      %p614 = pneg %p281
      %p615 = pneg %p278
      %p616 = pneg %p302
      %p617 = pneg %p299
      %p618 = pneg %p323
      %p619 = pneg %p320
      %p620 = pneg %p344
      %p621 = pneg %p341
      %p622 = pneg %p365
      %p623 = pneg %p362
      %p624 = pneg %p386
      %p625 = pneg %p383
      %p626 = pneg %p407
      %p627 = pneg %p404
      %p628 = pneg %p428
      %p629 = pneg %p425
      %p630 = pneg %p449
      %p631 = pneg %p446
      %p632 = pneg %p475
      %p633 = pneg %p472
      %p634 = scmp.lt.s32.totalorder %s30, 1
      %s635 = scalar_select %p634, %s30, 1
      %s636 = scalar_lea.vmem %s19, %s635
      %p637 = scmp.lt.s32.totalorder %s30, 1
      %s638 = scalar_select %p637, %s30, 1
      %s639 = smul.addr %s638, 8
      %s640 = scalar_lea.vmem %s0, %s639
      %p641 = scmp.lt.s32.totalorder %s30, 1
      %s642 = scalar_select %p641, %s30, 1
      %s643 = smul.addr %s642, 8
      %s644 = scalar_lea.vmem %s1, %s643
      %p645 = scmp.lt.s32.totalorder %s30, 1
      %s646 = scalar_select %p645, %s30, 1
      %s647 = scalar_lea.vmem %s2, %s646
      %p648 = scmp.lt.s32.totalorder %s30, 1
      %s649 = scalar_select %p648, %s30, 1
      %s650 = scalar_lea.vmem %s3, %s649
      %p651 = scmp.lt.s32.totalorder %s30, 1
      %s652 = scalar_select %p651, %s30, 1
      %s653 = smul.addr %s652, 8
      %s654 = scalar_lea.vmem %s4, %s653
      %p655 = scmp.lt.s32.totalorder %s30, 1
      %s656 = scalar_select %p655, %s30, 1
      %s657 = scalar_lea.vmem %s19, %s656
      %v659 = vld [vmem:[%s647] sm:$0x1]
      %vm660 = vcmp.gt.f32.partialorder %v659, 0.5
      %v661 = vsel %vm660, 0.0, -1e+09
      %v662 = vld [vmem:[%s650] sm:$0x1]
      %vm663 = vcmp.gt.f32.partialorder %v662, 0.5
      %v664 = vsel %vm663, 0.0, -1e+09
      %v665 = vlaneseq
      %v666 = vshrl.u32 %v665, 7
      %v667 = vlaneseq
      %v668 = vand.u32 %v667, 127
      %vm669 = vcmp.le.s32.totalorder %v668, %v666
      %v670 = vsel %vm669, 0.0, -1e+09
      %v672 = vperm.slane %v664, 0
      %v674 = vadd.f32 %v670, %v672
      %v675 = vld [vmem:[%s640] sm:$0xff]
      %v676 = vld [vmem:[%s5] sm:$0x1]
      %v677 = vld [vmem:[%s6] sm:$0x1]
      %vm678 = vcmask 261120
      %v679 = vsel %vm678, %v675, 0.0
      %680 = vadd.xlane.f32.xlu0 %v679
      %v681 = vpop.xlane.xlu0 %680
      %v682 = vrcp.pop 32.0
      %v683 = vmul.f32 32.0, %v682
      %v684 = vsub.f32 1.0, %v683
      %v685 = vmul.f32 %v682, %v684
      %v686 = vadd.f32 %v682, %v685
      %vm687 = vweird.f32 %v682
      %v688 = vsel %vm687, %v682, %v686
      %v689 = vmul.f32 %v681, %v688
      %v690 = vmul.f32 %v675, %v675
      %v691 = vsel %vm678, %v690, 0.0
      %692 = vadd.xlane.f32.xlu0 %v691
      %v693 = vpop.xlane.xlu0 %692
      %v694 = vmul.f32 %v693, %v688
      %v695 = vmul.f32 %v689, %v689
      %v696 = vsub.f32 %v694, %v695
      %v697 = vsub.f32 %v675, %v689
      %v698 = vadd.f32 %v696, 1e-05
      %v699 = vrsqrt.pop %v698
      %v700 = vmul.f32 %v699, %v698
      %v701 = vmul.f32 %v700, %v699
      %v702 = vmul.f32 0.5, %v701
      %v703 = vsub.f32 1.5, %v702
      %v704 = vmul.f32 %v699, %v703
      %vm705 = vweird.f32 %v698
      %vm706 = vweird.f32 %v699
      %vm707 = vmor %vm705, %vm706
      %v708 = vsel %vm707, %v699, %v704
      %v709 = vmul.f32 %v697, %v708
      %v711 = vperm.slane %v676, 0
      %v713 = vmul.f32 %v709, %v711
      %v715 = vperm.slane %v677, 0
      %v717 = vadd.f32 %v713, %v715
      %v718 = vld [vmem:[%s7] sm:$0xf]
      %v719 = vld [vmem:[%s7 + $0x4] sm:$0xf]
      %v720 = vld [vmem:[%s7 + $0x8] sm:$0xf]
      %v721 = vld [vmem:[%s7 + $0xc] sm:$0xf]
      %v722 = vpack.c.bf16 %v717, %v717
      %v723 = vld [vmem:[%s8] sm:$0x1]
      %v725 = vperm.slane %v723, 0
      %v731 = vunpack.c.l.b16 %v718
      %v732 = vunpack.c.l.b16 %v719
      %v733 = vunpack.c.l.b16 %v720
      %v734 = vunpack.c.l.b16 %v721
      %v735 = vpack.c.b16 %v732, %v731
      %v736 = vpack.c.b16 %v734, %v733
      %v740 = vsel %vm678, %v722, 0
      %742 = vmatpush.bf16.msra.mxu0 0
      %743 = vmatpush.bf16.msra.mxu0 0
      %744 = vmatpush.bf16.msra.mxu0 0
      %745 = vmatpush.bf16.msra.mxu0 0
      %746 = vmatpush.bf16.msra.mxu0 0
      %747 = vmatpush.bf16.msra.mxu0 0
      %748 = vmatpush.bf16.msra.mxu0 %v736
      %749 = vmatpush.bf16.msra.mxu0 %v735
      %750 = vmatmul.bf16.gmra.mxu0 %v740
      %v751 = vpop.f32.mrf.mxu0
      %v752 = vadd.f32 %v725, %v751
      %v753 = vpop.f32.mrf.mxu0
      %754 = vdwg.mxu0
      %v755 = vld [vmem:[%s9] sm:$0xf]
      %v756 = vld [vmem:[%s9 + $0x4] sm:$0xf]
      %v757 = vld [vmem:[%s9 + $0x8] sm:$0xf]
      %v758 = vld [vmem:[%s9 + $0xc] sm:$0xf]
      %v759 = vld [vmem:[%s10] sm:$0x1]
      %v760 = vpack.c.bf16 %v752, %v752
      %762 = vrot.lane.b32.xlu0 %v760, 96
      %v763 = vpop.permute.xlu0 %762
      %vm764 = vcmask 64512
      %v766 = vsel %vm764, %v760, 0
      %v769 = vsel %vm764, %v763, 0
      %771 = vmatpush.bf16.xpose.msra.mxu0 0
      %772 = vmatpush.bf16.xpose.msra.mxu0 0
      %773 = vmatpush.bf16.xpose.msra.mxu0 0
      %774 = vmatpush.bf16.xpose.msra.mxu0 0
      %775 = vmatpush.bf16.xpose.msra.mxu0 0
      %776 = vmatpush.bf16.xpose.msra.mxu0 0
      %777 = vmatpush.bf16.xpose.msra.mxu0 0
      %778 = vmatpush.bf16.xpose.msra.mxu0 %v769
      %779 = vmatmul.bf16.gmra.mxu0 %v766
      %v780 = vpop.f32.mrf.mxu0
      %v781 = vadd.f32 0.0, %v780
      %v782 = vpop.f32.mrf.mxu0
      %783 = vdwg.mxu0
      %v784 = vmul.f32 %v781, 0.35355338
      %v786 = vperm.slane %v661, 0
      %v788 = vadd.f32 %v784, %v786
      %789 = vrot.lane.b32.xlu0 %v760, 120
      %v790 = vpop.permute.xlu0 %789
      %791 = vrot.lane.b32.xlu0 %v760, 88
      %v792 = vpop.permute.xlu0 %791
      %v794 = vsel %vm764, %v790, 0
      %v797 = vsel %vm764, %v792, 0
      %799 = vmatpush.bf16.xpose.msra.mxu0 0
      %800 = vmatpush.bf16.xpose.msra.mxu0 0
      %801 = vmatpush.bf16.xpose.msra.mxu0 0
      %802 = vmatpush.bf16.xpose.msra.mxu0 0
      %803 = vmatpush.bf16.xpose.msra.mxu0 0
      %804 = vmatpush.bf16.xpose.msra.mxu0 0
      %805 = vmatpush.bf16.xpose.msra.mxu0 0
      %806 = vmatpush.bf16.xpose.msra.mxu0 %v797
      %807 = vmatmul.bf16.gmra.mxu0 %v794
      %v808 = vpop.f32.mrf.mxu0
      %v809 = vadd.f32 0.0, %v808
      %v810 = vpop.f32.mrf.mxu0
      %811 = vdwg.mxu0
      %v812 = vmul.f32 %v809, 0.35355338
      %v813 = vadd.f32 %v812, %v786
      %814 = vrot.lane.b32.xlu0 %v760, 112
      %v815 = vpop.permute.xlu0 %814
      %816 = vrot.lane.b32.xlu0 %v760, 80
      %v817 = vpop.permute.xlu0 %816
      %v819 = vsel %vm764, %v815, 0
      %v822 = vsel %vm764, %v817, 0
      %824 = vmatpush.bf16.xpose.msra.mxu0 0
      %825 = vmatpush.bf16.xpose.msra.mxu0 0
      %826 = vmatpush.bf16.xpose.msra.mxu0 0
      %827 = vmatpush.bf16.xpose.msra.mxu0 0
      %828 = vmatpush.bf16.xpose.msra.mxu0 0
      %829 = vmatpush.bf16.xpose.msra.mxu0 0
      %830 = vmatpush.bf16.xpose.msra.mxu0 0
      %831 = vmatpush.bf16.xpose.msra.mxu0 %v822
      %832 = vmatmul.bf16.gmra.mxu0 %v819
      %v833 = vpop.f32.mrf.mxu0
      %v834 = vadd.f32 0.0, %v833
      %v835 = vpop.f32.mrf.mxu0
      %836 = vdwg.mxu0
      %v837 = vmul.f32 %v834, 0.35355338
      %v838 = vadd.f32 %v837, %v786
      %839 = vrot.lane.b32.xlu0 %v760, 104
      %v840 = vpop.permute.xlu0 %839
      %841 = vrot.lane.b32.xlu0 %v760, 72
      %v842 = vpop.permute.xlu0 %841
      %v844 = vsel %vm764, %v840, 0
      %v847 = vsel %vm764, %v842, 0
      %849 = vmatpush.bf16.xpose.msra.mxu0 0
      %850 = vmatpush.bf16.xpose.msra.mxu0 0
      %851 = vmatpush.bf16.xpose.msra.mxu0 0
      %852 = vmatpush.bf16.xpose.msra.mxu0 0
      %853 = vmatpush.bf16.xpose.msra.mxu0 0
      %854 = vmatpush.bf16.xpose.msra.mxu0 0
      %855 = vmatpush.bf16.xpose.msra.mxu0 0
      %856 = vmatpush.bf16.xpose.msra.mxu0 %v847
      %857 = vmatmul.bf16.gmra.mxu0 %v844
      %v858 = vpop.f32.mrf.mxu0
      %v859 = vadd.f32 0.0, %v858
      %v860 = vpop.f32.mrf.mxu0
      %861 = vdwg.mxu0
      %v862 = vmul.f32 %v859, 0.35355338
      %v863 = vadd.f32 %v862, %v786
      %v864 = vsel %vm764, %v788, -inf
      %865 = vmax.xlane.f32.xlu0 %v864
      %v866 = vpop.xlane.xlu0 %865
      %v867 = vsel %vm764, %v813, -inf
      %868 = vmax.xlane.f32.xlu0 %v867
      %v869 = vpop.xlane.xlu0 %868
      %v870 = vsel %vm764, %v838, -inf
      %871 = vmax.xlane.f32.xlu0 %v870
      %v872 = vpop.xlane.xlu0 %871
      %v873 = vsel %vm764, %v863, -inf
      %874 = vmax.xlane.f32.xlu0 %v873
      %v875 = vpop.xlane.xlu0 %874
      %v876 = vsub.f32 %v788, %v866
      %v877 = vsub.f32 %v813, %v869
      %v878 = vsub.f32 %v838, %v872
      %v879 = vsub.f32 %v863, %v875
      %v880 = vmul.f32 %v876, 1.442695
      %v881 = vpow.pop %v880
      %v882 = vmul.f32 %v877, 1.442695
      %v883 = vpow.pop %v882
      %v884 = vmul.f32 %v878, 1.442695
      %v885 = vpow.pop %v884
      %v886 = vmul.f32 %v879, 1.442695
      %v887 = vpow.pop %v886
      %v888 = vsel %vm764, %v881, 0.0
      %889 = vadd.xlane.f32.xlu0 %v888
      %v890 = vpop.xlane.xlu0 %889
      %v891 = vsel %vm764, %v883, 0.0
      %892 = vadd.xlane.f32.xlu0 %v891
      %v893 = vpop.xlane.xlu0 %892
      %v894 = vsel %vm764, %v885, 0.0
      %895 = vadd.xlane.f32.xlu0 %v894
      %v896 = vpop.xlane.xlu0 %895
      %v897 = vsel %vm764, %v887, 0.0
      %898 = vadd.xlane.f32.xlu0 %v897
      %v899 = vpop.xlane.xlu0 %898
      %v900 = vrcp.pop %v890
      %v901 = vmul.f32 %v890, %v900
      %v902 = vsub.f32 1.0, %v901
      %v903 = vmul.f32 %v900, %v902
      %v904 = vadd.f32 %v900, %v903
      %vm905 = vweird.f32 %v890
      %vm906 = vweird.f32 %v900
      %vm907 = vmor %vm905, %vm906
      %v908 = vsel %vm907, %v900, %v904
      %v909 = vand.u32 2147483647, %v890
      %vm910 = vcmp.eq.f32.partialorder %v909, 8.507059e+37
      %v911 = vand.u32 %v890, 2147483648
      %v912 = vor.u32 1.1754944e-38, %v911
      %v913 = vsel %vm910, %v912, %v908
      %v914 = vmul.f32 %v881, %v913
      %v915 = vrcp.pop %v893
      %v916 = vmul.f32 %v893, %v915
      %v917 = vsub.f32 1.0, %v916
      %v918 = vmul.f32 %v915, %v917
      %v919 = vadd.f32 %v915, %v918
      %vm920 = vweird.f32 %v893
      %vm921 = vweird.f32 %v915
      %vm922 = vmor %vm920, %vm921
      %v923 = vsel %vm922, %v915, %v919
      %v924 = vand.u32 2147483647, %v893
      %vm925 = vcmp.eq.f32.partialorder %v924, 8.507059e+37
      %v926 = vand.u32 %v893, 2147483648
      %v927 = vor.u32 1.1754944e-38, %v926
      %v928 = vsel %vm925, %v927, %v923
      %v929 = vmul.f32 %v883, %v928
      %v930 = vrcp.pop %v896
      %v931 = vmul.f32 %v896, %v930
      %v932 = vsub.f32 1.0, %v931
      %v933 = vmul.f32 %v930, %v932
      %v934 = vadd.f32 %v930, %v933
      %vm935 = vweird.f32 %v896
      %vm936 = vweird.f32 %v930
      %vm937 = vmor %vm935, %vm936
      %v938 = vsel %vm937, %v930, %v934
      %v939 = vand.u32 2147483647, %v896
      %vm940 = vcmp.eq.f32.partialorder %v939, 8.507059e+37
      %v941 = vand.u32 %v896, 2147483648
      %v942 = vor.u32 1.1754944e-38, %v941
      %v943 = vsel %vm940, %v942, %v938
      %v944 = vmul.f32 %v885, %v943
      %v945 = vrcp.pop %v899
      %v946 = vmul.f32 %v899, %v945
      %v947 = vsub.f32 1.0, %v946
      %v948 = vmul.f32 %v945, %v947
      %v949 = vadd.f32 %v945, %v948
      %vm950 = vweird.f32 %v899
      %vm951 = vweird.f32 %v945
      %vm952 = vmor %vm950, %vm951
      %v953 = vsel %vm952, %v945, %v949
      %v954 = vand.u32 2147483647, %v899
      %vm955 = vcmp.eq.f32.partialorder %v954, 8.507059e+37
      %v956 = vand.u32 %v899, 2147483648
      %v957 = vor.u32 1.1754944e-38, %v956
      %v958 = vsel %vm955, %v957, %v953
      %v959 = vmul.f32 %v887, %v958
      %v960 = vpack.c.bf16 %v914, %v914
      %961 = vrot.lane.b32.xlu0 %v760, 64
      %v962 = vpop.permute.xlu0 %961
      %v964 = vsel %vm764, %v960, 0
      %vm966 = vcmask 1043456
      %v968 = vsel %vm966, %v962, 0
      %970 = vmatpush.bf16.msra.mxu0 0
      %971 = vmatpush.bf16.msra.mxu0 0
      %972 = vmatpush.bf16.msra.mxu0 0
      %973 = vmatpush.bf16.msra.mxu0 0
      %974 = vmatpush.bf16.msra.mxu0 0
      %975 = vmatpush.bf16.msra.mxu0 0
      %976 = vmatpush.bf16.msra.mxu0 0
      %977 = vmatpush.bf16.msra.mxu0 %v968
      %978 = vmatmul.bf16.gmra.mxu0 %v964
      %v979 = vpop.f32.mrf.mxu0
      %v980 = vadd.f32 0.0, %v979
      %v981 = vpop.f32.mrf.mxu0
      %982 = vdwg.mxu0
      %v983 = vpack.c.bf16 %v929, %v929
      %984 = vrot.lane.b32.xlu0 %v760, 56
      %v985 = vpop.permute.xlu0 %984
      %v987 = vsel %vm764, %v983, 0
      %v990 = vsel %vm966, %v985, 0
      %992 = vmatpush.bf16.msra.mxu0 0
      %993 = vmatpush.bf16.msra.mxu0 0
      %994 = vmatpush.bf16.msra.mxu0 0
      %995 = vmatpush.bf16.msra.mxu0 0
      %996 = vmatpush.bf16.msra.mxu0 0
      %997 = vmatpush.bf16.msra.mxu0 0
      %998 = vmatpush.bf16.msra.mxu0 0
      %999 = vmatpush.bf16.msra.mxu0 %v990
      %1000 = vmatmul.bf16.gmra.mxu0 %v987
      %v1001 = vpop.f32.mrf.mxu0
      %v1002 = vadd.f32 0.0, %v1001
      %v1003 = vpop.f32.mrf.mxu0
      %1004 = vdwg.mxu0
      %v1005 = vpack.c.bf16 %v944, %v944
      %1006 = vrot.lane.b32.xlu0 %v760, 48
      %v1007 = vpop.permute.xlu0 %1006
      %v1009 = vsel %vm764, %v1005, 0
      %v1012 = vsel %vm966, %v1007, 0
      %1014 = vmatpush.bf16.msra.mxu0 0
      %1015 = vmatpush.bf16.msra.mxu0 0
      %1016 = vmatpush.bf16.msra.mxu0 0
      %1017 = vmatpush.bf16.msra.mxu0 0
      %1018 = vmatpush.bf16.msra.mxu0 0
      %1019 = vmatpush.bf16.msra.mxu0 0
      %1020 = vmatpush.bf16.msra.mxu0 0
      %1021 = vmatpush.bf16.msra.mxu0 %v1012
      %1022 = vmatmul.bf16.gmra.mxu0 %v1009
      %v1023 = vpop.f32.mrf.mxu0
      %v1024 = vadd.f32 0.0, %v1023
      %v1025 = vpop.f32.mrf.mxu0
      %1026 = vdwg.mxu0
      %v1027 = vpack.c.bf16 %v959, %v959
      %1028 = vrot.lane.b32.xlu0 %v760, 40
      %v1029 = vpop.permute.xlu0 %1028
      %v1031 = vsel %vm764, %v1027, 0
      %v1034 = vsel %vm966, %v1029, 0
      %1036 = vmatpush.bf16.msra.mxu0 0
      %1037 = vmatpush.bf16.msra.mxu0 0
      %1038 = vmatpush.bf16.msra.mxu0 0
      %1039 = vmatpush.bf16.msra.mxu0 0
      %1040 = vmatpush.bf16.msra.mxu0 0
      %1041 = vmatpush.bf16.msra.mxu0 0
      %1042 = vmatpush.bf16.msra.mxu0 0
      %1043 = vmatpush.bf16.msra.mxu0 %v1034
      %1044 = vmatmul.bf16.gmra.mxu0 %v1031
      %v1045 = vpop.f32.mrf.mxu0
      %v1046 = vadd.f32 0.0, %v1045
      %v1047 = vpop.f32.mrf.mxu0
      %1048 = vdwg.mxu0
      %1050 = vrot.lane.b32.xlu0 %v1002, 8
      %v1051 = vpop.permute.xlu0 %1050
      %1054 = vrot.lane.b32.xlu0 %v1024, 16
      %v1055 = vpop.permute.xlu0 %1054
      %1058 = vrot.lane.b32.xlu0 %v1046, 24
      %v1059 = vpop.permute.xlu0 %1058
      %v1061 = vsel %vm764, %v980, %v1051
      %vm1062 = vcmask 130048
      %v1063 = vsel %vm1062, %v1061, %v1055
      %vm1064 = vcmask 195584
      %v1065 = vsel %vm1064, %v1063, %v1059
      %v1066 = vpack.c.bf16 %v1065, %v1065
      %v1068 = vperm.slane %v759, 0
      %v1074 = vunpack.c.l.b16 %v755
      %v1075 = vunpack.c.l.b16 %v756
      %v1076 = vunpack.c.l.b16 %v757
      %v1077 = vunpack.c.l.b16 %v758
      %v1078 = vpack.c.b16 %v1075, %v1074
      %v1079 = vpack.c.b16 %v1077, %v1076
      %v1083 = vsel %vm678, %v1066, 0
      %1085 = vmatpush.bf16.msra.mxu0 0
      %1086 = vmatpush.bf16.msra.mxu0 0
      %1087 = vmatpush.bf16.msra.mxu0 0
      %1088 = vmatpush.bf16.msra.mxu0 0
      %1089 = vmatpush.bf16.msra.mxu0 0
      %1090 = vmatpush.bf16.msra.mxu0 0
      %1091 = vmatpush.bf16.msra.mxu0 %v1079
      %1092 = vmatpush.bf16.msra.mxu0 %v1078
      %1093 = vmatmul.bf16.gmra.mxu0 %v1083
      %v1094 = vpop.f32.mrf.mxu0
      %v1095 = vadd.f32 %v1068, %v1094
      %v1096 = vpop.f32.mrf.mxu0
      %1097 = vdwg.mxu0
      %v1098 = vadd.f32 %v717, %v1095
      %s1099 = scalar_lea.vmem %s5, 2
      %v1100 = vld [vmem:[%s1099] sm:$0x1]
      %s1101 = scalar_lea.vmem %s6, 2
      %v1102 = vld [vmem:[%s1101] sm:$0x1]
      %v1103 = vsel %vm678, %v1098, 0.0
      %1104 = vadd.xlane.f32.xlu0 %v1103
      %v1105 = vpop.xlane.xlu0 %1104
      %v1106 = vmul.f32 %v1105, %v688
      %v1107 = vmul.f32 %v1098, %v1098
      %v1108 = vsel %vm678, %v1107, 0.0
      %1109 = vadd.xlane.f32.xlu0 %v1108
      %v1110 = vpop.xlane.xlu0 %1109
      %v1111 = vmul.f32 %v1110, %v688
      %v1112 = vmul.f32 %v1106, %v1106
      %v1113 = vsub.f32 %v1111, %v1112
      %v1114 = vsub.f32 %v1098, %v1106
      %v1115 = vadd.f32 %v1113, 1e-05
      %v1116 = vrsqrt.pop %v1115
      %v1117 = vmul.f32 %v1116, %v1115
      %v1118 = vmul.f32 %v1117, %v1116
      %v1119 = vmul.f32 0.5, %v1118
      %v1120 = vsub.f32 1.5, %v1119
      %v1121 = vmul.f32 %v1116, %v1120
      %vm1122 = vweird.f32 %v1115
      %vm1123 = vweird.f32 %v1116
      %vm1124 = vmor %vm1122, %vm1123
      %v1125 = vsel %vm1124, %v1116, %v1121
      %v1126 = vmul.f32 %v1114, %v1125
      %v1128 = vperm.slane %v1100, 0
      %v1130 = vmul.f32 %v1126, %v1128
      %v1132 = vperm.slane %v1102, 0
      %v1134 = vadd.f32 %v1130, %v1132
      %v1135 = vld [vmem:[%s13] sm:$0xf]
      %v1136 = vld [vmem:[%s13 + $0x4] sm:$0xf]
      %v1137 = vld [vmem:[%s13 + $0x8] sm:$0xf]
      %v1138 = vld [vmem:[%s13 + $0xc] sm:$0xf]
      %v1139 = vpack.c.bf16 %v1134, %v1134
      %v1140 = vld [vmem:[%s14] sm:$0x1]
      %v1142 = vperm.slane %v1140, 0
      %v1148 = vunpack.c.l.b16 %v1135
      %v1149 = vunpack.c.l.b16 %v1136
      %v1150 = vunpack.c.l.b16 %v1137
      %v1151 = vunpack.c.l.b16 %v1138
      %v1152 = vpack.c.b16 %v1149, %v1148
      %v1153 = vpack.c.b16 %v1151, %v1150
      %v1157 = vsel %vm678, %v1139, 0
      %1159 = vmatpush.bf16.msra.mxu0 0
      %1160 = vmatpush.bf16.msra.mxu0 0
      %1161 = vmatpush.bf16.msra.mxu0 0
      %1162 = vmatpush.bf16.msra.mxu0 0
      %1163 = vmatpush.bf16.msra.mxu0 0
      %1164 = vmatpush.bf16.msra.mxu0 0
      %1165 = vmatpush.bf16.msra.mxu0 %v1153
      %1166 = vmatpush.bf16.msra.mxu0 %v1152
      %1167 = vmatmul.bf16.gmra.mxu0 %v1157
      %v1168 = vpop.f32.mrf.mxu0
      %v1169 = vadd.f32 %v1142, %v1168
      %v1170 = vpop.f32.mrf.mxu0
      %1171 = vdwg.mxu0
      %v1172 = vmul.f32 %v1169, %v1169
      %v1173 = vmul.f32 %v1169, %v1172
      %v1174 = vmul.f32 %v1173, 0.044715
      %v1175 = vadd.f32 %v1169, %v1174
      %v1176 = vmul.f32 %v1175, 0.7978846
      %v1177 = vtanh.pop %v1176
      %v1178 = vadd.f32 %v1177, 1.0
      %v1179 = vmul.f32 %v1178, 0.5
      %v1180 = vmul.f32 %v1169, %v1179
      %v1181 = vld [vmem:[%s15] sm:$0xf]
      %v1182 = vld [vmem:[%s15 + $0x4] sm:$0xf]
      %v1183 = vld [vmem:[%s15 + $0x8] sm:$0xf]
      %v1184 = vld [vmem:[%s15 + $0xc] sm:$0xf]
      %v1185 = vld [vmem:[%s15 + $0x10] sm:$0xf]
      %v1186 = vld [vmem:[%s15 + $0x14] sm:$0xf]
      %v1187 = vld [vmem:[%s15 + $0x18] sm:$0xf]
      %v1188 = vld [vmem:[%s15 + $0x1c] sm:$0xf]
      %v1189 = vpack.c.bf16 %v1180, %v1180
      %v1190 = vld [vmem:[%s16] sm:$0x1]
      %v1192 = vperm.slane %v1190, 0
      %v1202 = vunpack.c.l.b16 %v1181
      %v1203 = vunpack.c.l.b16 %v1182
      %v1204 = vunpack.c.l.b16 %v1183
      %v1205 = vunpack.c.l.b16 %v1184
      %v1206 = vunpack.c.l.b16 %v1185
      %v1207 = vunpack.c.l.b16 %v1186
      %v1208 = vunpack.c.l.b16 %v1187
      %v1209 = vunpack.c.l.b16 %v1188
      %v1210 = vpack.c.b16 %v1203, %v1202
      %v1211 = vpack.c.b16 %v1205, %v1204
      %v1212 = vpack.c.b16 %v1207, %v1206
      %v1213 = vpack.c.b16 %v1209, %v1208
      %vm1218 = vcmask 523264
      %v1220 = vsel %vm1218, %v1189, 0
      %1222 = vmatpush.bf16.msra.mxu0 0
      %1223 = vmatpush.bf16.msra.mxu0 0
      %1224 = vmatpush.bf16.msra.mxu0 0
      %1225 = vmatpush.bf16.msra.mxu0 0
      %1226 = vmatpush.bf16.msra.mxu0 %v1213
      %1227 = vmatpush.bf16.msra.mxu0 %v1212
      %1228 = vmatpush.bf16.msra.mxu0 %v1211
      %1229 = vmatpush.bf16.msra.mxu0 %v1210
      %1230 = vmatmul.bf16.gmra.mxu0 %v1220
      %v1231 = vpop.f32.mrf.mxu0
      %v1232 = vadd.f32 %v1192, %v1231
      %v1233 = vpop.f32.mrf.mxu0
      %1234 = vdwg.mxu0
      %v1235 = vadd.f32 %v1134, %v1232
      %s1236 = scalar_lea.vmem %s5, 3
      %v1237 = vld [vmem:[%s1236] sm:$0x1]
      %s1238 = scalar_lea.vmem %s6, 3
      %v1239 = vld [vmem:[%s1238] sm:$0x1]
      %v1240 = vsel %vm678, %v1235, 0.0
      %1241 = vadd.xlane.f32.xlu0 %v1240
      %v1242 = vpop.xlane.xlu0 %1241
      %v1243 = vmul.f32 %v1242, %v688
      %v1244 = vmul.f32 %v1235, %v1235
      %v1245 = vsel %vm678, %v1244, 0.0
      %1246 = vadd.xlane.f32.xlu0 %v1245
      %v1247 = vpop.xlane.xlu0 %1246
      %v1248 = vmul.f32 %v1247, %v688
      %v1249 = vmul.f32 %v1243, %v1243
      %v1250 = vsub.f32 %v1248, %v1249
      %v1251 = vsub.f32 %v1235, %v1243
      %v1252 = vadd.f32 %v1250, 1e-05
      %v1253 = vrsqrt.pop %v1252
      %v1254 = vmul.f32 %v1253, %v1252
      %v1255 = vmul.f32 %v1254, %v1253
      %v1256 = vmul.f32 0.5, %v1255
      %v1257 = vsub.f32 1.5, %v1256
      %v1258 = vmul.f32 %v1253, %v1257
      %vm1259 = vweird.f32 %v1252
      %vm1260 = vweird.f32 %v1253
      %vm1261 = vmor %vm1259, %vm1260
      %v1262 = vsel %vm1261, %v1253, %v1258
      %v1263 = vmul.f32 %v1251, %v1262
      %v1265 = vperm.slane %v1237, 0
      %v1267 = vmul.f32 %v1263, %v1265
      %v1269 = vperm.slane %v1239, 0
      %v1271 = vadd.f32 %v1267, %v1269
      %s1272 = scalar_lea.vmem %s7, 16
      %v1273 = vld [vmem:[%s1272] sm:$0xf]
      %v1274 = vld [vmem:[%s1272 + $0x4] sm:$0xf]
      %v1275 = vld [vmem:[%s1272 + $0x8] sm:$0xf]
      %v1276 = vld [vmem:[%s1272 + $0xc] sm:$0xf]
      %v1277 = vpack.c.bf16 %v1271, %v1271
      %s1278 = scalar_lea.vmem %s8, 1
      %v1279 = vld [vmem:[%s1278] sm:$0x1]
      %v1281 = vperm.slane %v1279, 0
      %v1287 = vunpack.c.l.b16 %v1273
      %v1288 = vunpack.c.l.b16 %v1274
      %v1289 = vunpack.c.l.b16 %v1275
      %v1290 = vunpack.c.l.b16 %v1276
      %v1291 = vpack.c.b16 %v1288, %v1287
      %v1292 = vpack.c.b16 %v1290, %v1289
      %v1296 = vsel %vm678, %v1277, 0
      %1298 = vmatpush.bf16.msra.mxu0 0
      %1299 = vmatpush.bf16.msra.mxu0 0
      %1300 = vmatpush.bf16.msra.mxu0 0
      %1301 = vmatpush.bf16.msra.mxu0 0
      %1302 = vmatpush.bf16.msra.mxu0 0
      %1303 = vmatpush.bf16.msra.mxu0 0
      %1304 = vmatpush.bf16.msra.mxu0 %v1292
      %1305 = vmatpush.bf16.msra.mxu0 %v1291
      %1306 = vmatmul.bf16.gmra.mxu0 %v1296
      %v1307 = vpop.f32.mrf.mxu0
      %v1308 = vadd.f32 %v1281, %v1307
      %v1309 = vpop.f32.mrf.mxu0
      %1310 = vdwg.mxu0
      %s1311 = scalar_lea.vmem %s9, 16
      %v1312 = vld [vmem:[%s1311] sm:$0xf]
      %v1313 = vld [vmem:[%s1311 + $0x4] sm:$0xf]
      %v1314 = vld [vmem:[%s1311 + $0x8] sm:$0xf]
      %v1315 = vld [vmem:[%s1311 + $0xc] sm:$0xf]
      %s1316 = scalar_lea.vmem %s10, 1
      %v1317 = vld [vmem:[%s1316] sm:$0x1]
      %v1318 = vpack.c.bf16 %v1308, %v1308
      %1320 = vrot.lane.b32.xlu0 %v1318, 96
      %v1321 = vpop.permute.xlu0 %1320
      %v1323 = vsel %vm764, %v1318, 0
      %v1326 = vsel %vm764, %v1321, 0
      %1328 = vmatpush.bf16.xpose.msra.mxu0 0
      %1329 = vmatpush.bf16.xpose.msra.mxu0 0
      %1330 = vmatpush.bf16.xpose.msra.mxu0 0
      %1331 = vmatpush.bf16.xpose.msra.mxu0 0
      %1332 = vmatpush.bf16.xpose.msra.mxu0 0
      %1333 = vmatpush.bf16.xpose.msra.mxu0 0
      %1334 = vmatpush.bf16.xpose.msra.mxu0 0
      %1335 = vmatpush.bf16.xpose.msra.mxu0 %v1326
      %1336 = vmatmul.bf16.gmra.mxu0 %v1323
      %v1337 = vpop.f32.mrf.mxu0
      %v1338 = vadd.f32 0.0, %v1337
      %v1339 = vpop.f32.mrf.mxu0
      %1340 = vdwg.mxu0
      %v1341 = vmul.f32 %v1338, 0.35355338
      %v1342 = vadd.f32 %v1341, %v786
      %1343 = vrot.lane.b32.xlu0 %v1318, 120
      %v1344 = vpop.permute.xlu0 %1343
      %1345 = vrot.lane.b32.xlu0 %v1318, 88
      %v1346 = vpop.permute.xlu0 %1345
      %v1348 = vsel %vm764, %v1344, 0
      %v1351 = vsel %vm764, %v1346, 0
      %1353 = vmatpush.bf16.xpose.msra.mxu0 0
      %1354 = vmatpush.bf16.xpose.msra.mxu0 0
      %1355 = vmatpush.bf16.xpose.msra.mxu0 0
      %1356 = vmatpush.bf16.xpose.msra.mxu0 0
      %1357 = vmatpush.bf16.xpose.msra.mxu0 0
      %1358 = vmatpush.bf16.xpose.msra.mxu0 0
      %1359 = vmatpush.bf16.xpose.msra.mxu0 0
      %1360 = vmatpush.bf16.xpose.msra.mxu0 %v1351
      %1361 = vmatmul.bf16.gmra.mxu0 %v1348
      %v1362 = vpop.f32.mrf.mxu0
      %v1363 = vadd.f32 0.0, %v1362
      %v1364 = vpop.f32.mrf.mxu0
      %1365 = vdwg.mxu0
      %v1366 = vmul.f32 %v1363, 0.35355338
      %v1367 = vadd.f32 %v1366, %v786
      %1368 = vrot.lane.b32.xlu0 %v1318, 112
      %v1369 = vpop.permute.xlu0 %1368
      %1370 = vrot.lane.b32.xlu0 %v1318, 80
      %v1371 = vpop.permute.xlu0 %1370
      %v1373 = vsel %vm764, %v1369, 0
      %v1376 = vsel %vm764, %v1371, 0
      %1378 = vmatpush.bf16.xpose.msra.mxu0 0
      %1379 = vmatpush.bf16.xpose.msra.mxu0 0
      %1380 = vmatpush.bf16.xpose.msra.mxu0 0
      %1381 = vmatpush.bf16.xpose.msra.mxu0 0
      %1382 = vmatpush.bf16.xpose.msra.mxu0 0
      %1383 = vmatpush.bf16.xpose.msra.mxu0 0
      %1384 = vmatpush.bf16.xpose.msra.mxu0 0
      %1385 = vmatpush.bf16.xpose.msra.mxu0 %v1376
      %1386 = vmatmul.bf16.gmra.mxu0 %v1373
      %v1387 = vpop.f32.mrf.mxu0
      %v1388 = vadd.f32 0.0, %v1387
      %v1389 = vpop.f32.mrf.mxu0
      %1390 = vdwg.mxu0
      %v1391 = vmul.f32 %v1388, 0.35355338
      %v1392 = vadd.f32 %v1391, %v786
      %1393 = vrot.lane.b32.xlu0 %v1318, 104
      %v1394 = vpop.permute.xlu0 %1393
      %1395 = vrot.lane.b32.xlu0 %v1318, 72
      %v1396 = vpop.permute.xlu0 %1395
      %v1398 = vsel %vm764, %v1394, 0
      %v1401 = vsel %vm764, %v1396, 0
      %1403 = vmatpush.bf16.xpose.msra.mxu0 0
      %1404 = vmatpush.bf16.xpose.msra.mxu0 0
      %1405 = vmatpush.bf16.xpose.msra.mxu0 0
      %1406 = vmatpush.bf16.xpose.msra.mxu0 0
      %1407 = vmatpush.bf16.xpose.msra.mxu0 0
      %1408 = vmatpush.bf16.xpose.msra.mxu0 0
      %1409 = vmatpush.bf16.xpose.msra.mxu0 0
      %1410 = vmatpush.bf16.xpose.msra.mxu0 %v1401
      %1411 = vmatmul.bf16.gmra.mxu0 %v1398
      %v1412 = vpop.f32.mrf.mxu0
      %v1413 = vadd.f32 0.0, %v1412
      %v1414 = vpop.f32.mrf.mxu0
      %1415 = vdwg.mxu0
      %v1416 = vmul.f32 %v1413, 0.35355338
      %v1417 = vadd.f32 %v1416, %v786
      %v1418 = vsel %vm764, %v1342, -inf
      %1419 = vmax.xlane.f32.xlu0 %v1418
      %v1420 = vpop.xlane.xlu0 %1419
      %v1421 = vsel %vm764, %v1367, -inf
      %1422 = vmax.xlane.f32.xlu0 %v1421
      %v1423 = vpop.xlane.xlu0 %1422
      %v1424 = vsel %vm764, %v1392, -inf
      %1425 = vmax.xlane.f32.xlu0 %v1424
      %v1426 = vpop.xlane.xlu0 %1425
      %v1427 = vsel %vm764, %v1417, -inf
      %1428 = vmax.xlane.f32.xlu0 %v1427
      %v1429 = vpop.xlane.xlu0 %1428
      %v1430 = vsub.f32 %v1342, %v1420
      %v1431 = vsub.f32 %v1367, %v1423
      %v1432 = vsub.f32 %v1392, %v1426
      %v1433 = vsub.f32 %v1417, %v1429
      %v1434 = vmul.f32 %v1430, 1.442695
      %v1435 = vpow.pop %v1434
      %v1436 = vmul.f32 %v1431, 1.442695
      %v1437 = vpow.pop %v1436
      %v1438 = vmul.f32 %v1432, 1.442695
      %v1439 = vpow.pop %v1438
      %v1440 = vmul.f32 %v1433, 1.442695
      %v1441 = vpow.pop %v1440
      %v1442 = vsel %vm764, %v1435, 0.0
      %1443 = vadd.xlane.f32.xlu0 %v1442
      %v1444 = vpop.xlane.xlu0 %1443
      %v1445 = vsel %vm764, %v1437, 0.0
      %1446 = vadd.xlane.f32.xlu0 %v1445
      %v1447 = vpop.xlane.xlu0 %1446
      %v1448 = vsel %vm764, %v1439, 0.0
      %1449 = vadd.xlane.f32.xlu0 %v1448
      %v1450 = vpop.xlane.xlu0 %1449
      %v1451 = vsel %vm764, %v1441, 0.0
      %1452 = vadd.xlane.f32.xlu0 %v1451
      %v1453 = vpop.xlane.xlu0 %1452
      %v1454 = vrcp.pop %v1444
      %v1455 = vmul.f32 %v1444, %v1454
      %v1456 = vsub.f32 1.0, %v1455
      %v1457 = vmul.f32 %v1454, %v1456
      %v1458 = vadd.f32 %v1454, %v1457
      %vm1459 = vweird.f32 %v1444
      %vm1460 = vweird.f32 %v1454
      %vm1461 = vmor %vm1459, %vm1460
      %v1462 = vsel %vm1461, %v1454, %v1458
      %v1463 = vand.u32 2147483647, %v1444
      %vm1464 = vcmp.eq.f32.partialorder %v1463, 8.507059e+37
      %v1465 = vand.u32 %v1444, 2147483648
      %v1466 = vor.u32 1.1754944e-38, %v1465
      %v1467 = vsel %vm1464, %v1466, %v1462
      %v1468 = vmul.f32 %v1435, %v1467
      %v1469 = vrcp.pop %v1447
      %v1470 = vmul.f32 %v1447, %v1469
      %v1471 = vsub.f32 1.0, %v1470
      %v1472 = vmul.f32 %v1469, %v1471
      %v1473 = vadd.f32 %v1469, %v1472
      %vm1474 = vweird.f32 %v1447
      %vm1475 = vweird.f32 %v1469
      %vm1476 = vmor %vm1474, %vm1475
      %v1477 = vsel %vm1476, %v1469, %v1473
      %v1478 = vand.u32 2147483647, %v1447
      %vm1479 = vcmp.eq.f32.partialorder %v1478, 8.507059e+37
      %v1480 = vand.u32 %v1447, 2147483648
      %v1481 = vor.u32 1.1754944e-38, %v1480
      %v1482 = vsel %vm1479, %v1481, %v1477
      %v1483 = vmul.f32 %v1437, %v1482
      %v1484 = vrcp.pop %v1450
      %v1485 = vmul.f32 %v1450, %v1484
      %v1486 = vsub.f32 1.0, %v1485
      %v1487 = vmul.f32 %v1484, %v1486
      %v1488 = vadd.f32 %v1484, %v1487
      %vm1489 = vweird.f32 %v1450
      %vm1490 = vweird.f32 %v1484
      %vm1491 = vmor %vm1489, %vm1490
      %v1492 = vsel %vm1491, %v1484, %v1488
      %v1493 = vand.u32 2147483647, %v1450
      %vm1494 = vcmp.eq.f32.partialorder %v1493, 8.507059e+37
      %v1495 = vand.u32 %v1450, 2147483648
      %v1496 = vor.u32 1.1754944e-38, %v1495
      %v1497 = vsel %vm1494, %v1496, %v1492
      %v1498 = vmul.f32 %v1439, %v1497
      %v1499 = vrcp.pop %v1453
      %v1500 = vmul.f32 %v1453, %v1499
      %v1501 = vsub.f32 1.0, %v1500
      %v1502 = vmul.f32 %v1499, %v1501
      %v1503 = vadd.f32 %v1499, %v1502
      %vm1504 = vweird.f32 %v1453
      %vm1505 = vweird.f32 %v1499
      %vm1506 = vmor %vm1504, %vm1505
      %v1507 = vsel %vm1506, %v1499, %v1503
      %v1508 = vand.u32 2147483647, %v1453
      %vm1509 = vcmp.eq.f32.partialorder %v1508, 8.507059e+37
      %v1510 = vand.u32 %v1453, 2147483648
      %v1511 = vor.u32 1.1754944e-38, %v1510
      %v1512 = vsel %vm1509, %v1511, %v1507
      %v1513 = vmul.f32 %v1441, %v1512
      %v1514 = vpack.c.bf16 %v1468, %v1468
      %1515 = vrot.lane.b32.xlu0 %v1318, 64
      %v1516 = vpop.permute.xlu0 %1515
      %v1518 = vsel %vm764, %v1514, 0
      %v1521 = vsel %vm966, %v1516, 0
      %1523 = vmatpush.bf16.msra.mxu0 0
      %1524 = vmatpush.bf16.msra.mxu0 0
      %1525 = vmatpush.bf16.msra.mxu0 0
      %1526 = vmatpush.bf16.msra.mxu0 0
      %1527 = vmatpush.bf16.msra.mxu0 0
      %1528 = vmatpush.bf16.msra.mxu0 0
      %1529 = vmatpush.bf16.msra.mxu0 0
      %1530 = vmatpush.bf16.msra.mxu0 %v1521
      %1531 = vmatmul.bf16.gmra.mxu0 %v1518
      %v1532 = vpop.f32.mrf.mxu0
      %v1533 = vadd.f32 0.0, %v1532
      %v1534 = vpop.f32.mrf.mxu0
      %1535 = vdwg.mxu0
      %v1536 = vpack.c.bf16 %v1483, %v1483
      %1537 = vrot.lane.b32.xlu0 %v1318, 56
      %v1538 = vpop.permute.xlu0 %1537
      %v1540 = vsel %vm764, %v1536, 0
      %v1543 = vsel %vm966, %v1538, 0
      %1545 = vmatpush.bf16.msra.mxu0 0
      %1546 = vmatpush.bf16.msra.mxu0 0
      %1547 = vmatpush.bf16.msra.mxu0 0
      %1548 = vmatpush.bf16.msra.mxu0 0
      %1549 = vmatpush.bf16.msra.mxu0 0
      %1550 = vmatpush.bf16.msra.mxu0 0
      %1551 = vmatpush.bf16.msra.mxu0 0
      %1552 = vmatpush.bf16.msra.mxu0 %v1543
      %1553 = vmatmul.bf16.gmra.mxu0 %v1540
      %v1554 = vpop.f32.mrf.mxu0
      %v1555 = vadd.f32 0.0, %v1554
      %v1556 = vpop.f32.mrf.mxu0
      %1557 = vdwg.mxu0
      %v1558 = vpack.c.bf16 %v1498, %v1498
      %1559 = vrot.lane.b32.xlu0 %v1318, 48
      %v1560 = vpop.permute.xlu0 %1559
      %v1562 = vsel %vm764, %v1558, 0
      %v1565 = vsel %vm966, %v1560, 0
      %1567 = vmatpush.bf16.msra.mxu0 0
      %1568 = vmatpush.bf16.msra.mxu0 0
      %1569 = vmatpush.bf16.msra.mxu0 0
      %1570 = vmatpush.bf16.msra.mxu0 0
      %1571 = vmatpush.bf16.msra.mxu0 0
      %1572 = vmatpush.bf16.msra.mxu0 0
      %1573 = vmatpush.bf16.msra.mxu0 0
      %1574 = vmatpush.bf16.msra.mxu0 %v1565
      %1575 = vmatmul.bf16.gmra.mxu0 %v1562
      %v1576 = vpop.f32.mrf.mxu0
      %v1577 = vadd.f32 0.0, %v1576
      %v1578 = vpop.f32.mrf.mxu0
      %1579 = vdwg.mxu0
      %v1580 = vpack.c.bf16 %v1513, %v1513
      %1581 = vrot.lane.b32.xlu0 %v1318, 40
      %v1582 = vpop.permute.xlu0 %1581
      %v1584 = vsel %vm764, %v1580, 0
      %v1587 = vsel %vm966, %v1582, 0
      %1589 = vmatpush.bf16.msra.mxu0 0
      %1590 = vmatpush.bf16.msra.mxu0 0
      %1591 = vmatpush.bf16.msra.mxu0 0
      %1592 = vmatpush.bf16.msra.mxu0 0
      %1593 = vmatpush.bf16.msra.mxu0 0
      %1594 = vmatpush.bf16.msra.mxu0 0
      %1595 = vmatpush.bf16.msra.mxu0 0
      %1596 = vmatpush.bf16.msra.mxu0 %v1587
      %1597 = vmatmul.bf16.gmra.mxu0 %v1584
      %v1598 = vpop.f32.mrf.mxu0
      %v1599 = vadd.f32 0.0, %v1598
      %v1600 = vpop.f32.mrf.mxu0
      %1601 = vdwg.mxu0
      %1603 = vrot.lane.b32.xlu0 %v1555, 8
      %v1604 = vpop.permute.xlu0 %1603
      %1607 = vrot.lane.b32.xlu0 %v1577, 16
      %v1608 = vpop.permute.xlu0 %1607
      %1611 = vrot.lane.b32.xlu0 %v1599, 24
      %v1612 = vpop.permute.xlu0 %1611
      %v1614 = vsel %vm764, %v1533, %v1604
      %v1615 = vsel %vm1062, %v1614, %v1608
      %v1616 = vsel %vm1064, %v1615, %v1612
      %v1617 = vpack.c.bf16 %v1616, %v1616
      %v1619 = vperm.slane %v1317, 0
      %v1625 = vunpack.c.l.b16 %v1312
      %v1626 = vunpack.c.l.b16 %v1313
      %v1627 = vunpack.c.l.b16 %v1314
      %v1628 = vunpack.c.l.b16 %v1315
      %v1629 = vpack.c.b16 %v1626, %v1625
      %v1630 = vpack.c.b16 %v1628, %v1627
      %v1634 = vsel %vm678, %v1617, 0
      %1636 = vmatpush.bf16.msra.mxu0 0
      %1637 = vmatpush.bf16.msra.mxu0 0
      %1638 = vmatpush.bf16.msra.mxu0 0
      %1639 = vmatpush.bf16.msra.mxu0 0
      %1640 = vmatpush.bf16.msra.mxu0 0
      %1641 = vmatpush.bf16.msra.mxu0 0
      %1642 = vmatpush.bf16.msra.mxu0 %v1630
      %1643 = vmatpush.bf16.msra.mxu0 %v1629
      %1644 = vmatmul.bf16.gmra.mxu0 %v1634
      %v1645 = vpop.f32.mrf.mxu0
      %v1646 = vadd.f32 %v1619, %v1645
      %v1647 = vpop.f32.mrf.mxu0
      %1648 = vdwg.mxu0
      %v1649 = vadd.f32 %v1271, %v1646
      %s1650 = scalar_lea.vmem %s5, 4
      %v1651 = vld [vmem:[%s1650] sm:$0x1]
      %s1652 = scalar_lea.vmem %s6, 4
      %v1653 = vld [vmem:[%s1652] sm:$0x1]
      %v1654 = vsel %vm678, %v1649, 0.0
      %1655 = vadd.xlane.f32.xlu0 %v1654
      %v1656 = vpop.xlane.xlu0 %1655
      %v1657 = vmul.f32 %v1656, %v688
      %v1658 = vmul.f32 %v1649, %v1649
      %v1659 = vsel %vm678, %v1658, 0.0
      %1660 = vadd.xlane.f32.xlu0 %v1659
      %v1661 = vpop.xlane.xlu0 %1660
      %v1662 = vmul.f32 %v1661, %v688
      %v1663 = vmul.f32 %v1657, %v1657
      %v1664 = vsub.f32 %v1662, %v1663
      %v1665 = vsub.f32 %v1649, %v1657
      %v1666 = vadd.f32 %v1664, 1e-05
      %v1667 = vrsqrt.pop %v1666
      %v1668 = vmul.f32 %v1667, %v1666
      %v1669 = vmul.f32 %v1668, %v1667
      %v1670 = vmul.f32 0.5, %v1669
      %v1671 = vsub.f32 1.5, %v1670
      %v1672 = vmul.f32 %v1667, %v1671
      %vm1673 = vweird.f32 %v1666
      %vm1674 = vweird.f32 %v1667
      %vm1675 = vmor %vm1673, %vm1674
      %v1676 = vsel %vm1675, %v1667, %v1672
      %v1677 = vmul.f32 %v1665, %v1676
      %v1679 = vperm.slane %v1651, 0
      %v1681 = vmul.f32 %v1677, %v1679
      %v1683 = vperm.slane %v1653, 0
      %v1685 = vadd.f32 %v1681, %v1683
      %s1686 = scalar_lea.vmem %s13, 16
      %v1687 = vld [vmem:[%s1686] sm:$0xf]
      %v1688 = vld [vmem:[%s1686 + $0x4] sm:$0xf]
      %v1689 = vld [vmem:[%s1686 + $0x8] sm:$0xf]
      %v1690 = vld [vmem:[%s1686 + $0xc] sm:$0xf]
      %v1691 = vpack.c.bf16 %v1685, %v1685
      %s1692 = scalar_lea.vmem %s14, 1
      %v1693 = vld [vmem:[%s1692] sm:$0x1]
      %v1695 = vperm.slane %v1693, 0
      %v1701 = vunpack.c.l.b16 %v1687
      %v1702 = vunpack.c.l.b16 %v1688
      %v1703 = vunpack.c.l.b16 %v1689
      %v1704 = vunpack.c.l.b16 %v1690
      %v1705 = vpack.c.b16 %v1702, %v1701
      %v1706 = vpack.c.b16 %v1704, %v1703
      %v1710 = vsel %vm678, %v1691, 0
      %1712 = vmatpush.bf16.msra.mxu0 0
      %1713 = vmatpush.bf16.msra.mxu0 0
      %1714 = vmatpush.bf16.msra.mxu0 0
      %1715 = vmatpush.bf16.msra.mxu0 0
      %1716 = vmatpush.bf16.msra.mxu0 0
      %1717 = vmatpush.bf16.msra.mxu0 0
      %1718 = vmatpush.bf16.msra.mxu0 %v1706
      %1719 = vmatpush.bf16.msra.mxu0 %v1705
      %1720 = vmatmul.bf16.gmra.mxu0 %v1710
      %v1721 = vpop.f32.mrf.mxu0
      %v1722 = vadd.f32 %v1695, %v1721
      %v1723 = vpop.f32.mrf.mxu0
      %1724 = vdwg.mxu0
      %v1725 = vmul.f32 %v1722, %v1722
      %v1726 = vmul.f32 %v1722, %v1725
      %v1727 = vmul.f32 %v1726, 0.044715
      %v1728 = vadd.f32 %v1722, %v1727
      %v1729 = vmul.f32 %v1728, 0.7978846
      %v1730 = vtanh.pop %v1729
      %v1731 = vadd.f32 %v1730, 1.0
      %v1732 = vmul.f32 %v1731, 0.5
      %v1733 = vmul.f32 %v1722, %v1732
      %s1734 = scalar_lea.vmem %s15, 32
      %v1735 = vld [vmem:[%s1734] sm:$0xf]
      %v1736 = vld [vmem:[%s1734 + $0x4] sm:$0xf]
      %v1737 = vld [vmem:[%s1734 + $0x8] sm:$0xf]
      %v1738 = vld [vmem:[%s1734 + $0xc] sm:$0xf]
      %v1739 = vld [vmem:[%s1734 + $0x10] sm:$0xf]
      %v1740 = vld [vmem:[%s1734 + $0x14] sm:$0xf]
      %v1741 = vld [vmem:[%s1734 + $0x18] sm:$0xf]
      %v1742 = vld [vmem:[%s1734 + $0x1c] sm:$0xf]
      %v1743 = vpack.c.bf16 %v1733, %v1733
      %s1744 = scalar_lea.vmem %s16, 1
      %v1745 = vld [vmem:[%s1744] sm:$0x1]
      %v1747 = vperm.slane %v1745, 0
      %v1757 = vunpack.c.l.b16 %v1735
      %v1758 = vunpack.c.l.b16 %v1736
      %v1759 = vunpack.c.l.b16 %v1737
      %v1760 = vunpack.c.l.b16 %v1738
      %v1761 = vunpack.c.l.b16 %v1739
      %v1762 = vunpack.c.l.b16 %v1740
      %v1763 = vunpack.c.l.b16 %v1741
      %v1764 = vunpack.c.l.b16 %v1742
      %v1765 = vpack.c.b16 %v1758, %v1757
      %v1766 = vpack.c.b16 %v1760, %v1759
      %v1767 = vpack.c.b16 %v1762, %v1761
      %v1768 = vpack.c.b16 %v1764, %v1763
      %v1774 = vsel %vm1218, %v1743, 0
      %1776 = vmatpush.bf16.msra.mxu0 0
      %1777 = vmatpush.bf16.msra.mxu0 0
      %1778 = vmatpush.bf16.msra.mxu0 0
      %1779 = vmatpush.bf16.msra.mxu0 0
      %1780 = vmatpush.bf16.msra.mxu0 %v1768
      %1781 = vmatpush.bf16.msra.mxu0 %v1767
      %1782 = vmatpush.bf16.msra.mxu0 %v1766
      %1783 = vmatpush.bf16.msra.mxu0 %v1765
      %1784 = vmatmul.bf16.gmra.mxu0 %v1774
      %v1785 = vpop.f32.mrf.mxu0
      %v1786 = vadd.f32 %v1747, %v1785
      %v1787 = vpop.f32.mrf.mxu0
      %1788 = vdwg.mxu0
      %v1789 = vadd.f32 %v1685, %v1786
      %s1790 = scalar_lea.vmem %s5, 5
      %v1791 = vld [vmem:[%s1790] sm:$0x1]
      %s1792 = scalar_lea.vmem %s6, 5
      %v1793 = vld [vmem:[%s1792] sm:$0x1]
      %v1794 = vsel %vm678, %v1789, 0.0
      %1795 = vadd.xlane.f32.xlu0 %v1794
      %v1796 = vpop.xlane.xlu0 %1795
      %v1797 = vmul.f32 %v1796, %v688
      %v1798 = vmul.f32 %v1789, %v1789
      %v1799 = vsel %vm678, %v1798, 0.0
      %1800 = vadd.xlane.f32.xlu0 %v1799
      %v1801 = vpop.xlane.xlu0 %1800
      %v1802 = vmul.f32 %v1801, %v688
      %v1803 = vmul.f32 %v1797, %v1797
      %v1804 = vsub.f32 %v1802, %v1803
      %v1805 = vsub.f32 %v1789, %v1797
      %v1806 = vadd.f32 %v1804, 1e-05
      %v1807 = vrsqrt.pop %v1806
      %v1808 = vmul.f32 %v1807, %v1806
      %v1809 = vmul.f32 %v1808, %v1807
      %v1810 = vmul.f32 0.5, %v1809
      %v1811 = vsub.f32 1.5, %v1810
      %v1812 = vmul.f32 %v1807, %v1811
      %vm1813 = vweird.f32 %v1806
      %vm1814 = vweird.f32 %v1807
      %vm1815 = vmor %vm1813, %vm1814
      %v1816 = vsel %vm1815, %v1807, %v1812
      %v1817 = vmul.f32 %v1805, %v1816
      %v1819 = vperm.slane %v1791, 0
      %v1821 = vmul.f32 %v1817, %v1819
      %v1823 = vperm.slane %v1793, 0
      %v1825 = vadd.f32 %v1821, %v1823
      %v1826 = vld [vmem:[%s644] sm:$0xff]
      %s1827 = scalar_lea.vmem %s5, 1
      %v1828 = vld [vmem:[%s1827] sm:$0x1]
      %s1829 = scalar_lea.vmem %s6, 1
      %v1830 = vld [vmem:[%s1829] sm:$0x1]
      %v1831 = vsel %vm678, %v1826, 0.0
      %1832 = vadd.xlane.f32.xlu0 %v1831
      %v1833 = vpop.xlane.xlu0 %1832
      %v1834 = vmul.f32 %v1833, %v688
      %v1835 = vmul.f32 %v1826, %v1826
      %v1836 = vsel %vm678, %v1835, 0.0
      %1837 = vadd.xlane.f32.xlu0 %v1836
      %v1838 = vpop.xlane.xlu0 %1837
      %v1839 = vmul.f32 %v1838, %v688
      %v1840 = vmul.f32 %v1834, %v1834
      %v1841 = vsub.f32 %v1839, %v1840
      %v1842 = vsub.f32 %v1826, %v1834
      %v1843 = vadd.f32 %v1841, 1e-05
      %v1844 = vrsqrt.pop %v1843
      %v1845 = vmul.f32 %v1844, %v1843
      %v1846 = vmul.f32 %v1845, %v1844
      %v1847 = vmul.f32 0.5, %v1846
      %v1848 = vsub.f32 1.5, %v1847
      %v1849 = vmul.f32 %v1844, %v1848
      %vm1850 = vweird.f32 %v1843
      %vm1851 = vweird.f32 %v1844
      %vm1852 = vmor %vm1850, %vm1851
      %v1853 = vsel %vm1852, %v1844, %v1849
      %v1854 = vmul.f32 %v1842, %v1853
      %v1856 = vperm.slane %v1828, 0
      %v1858 = vmul.f32 %v1854, %v1856
      %v1860 = vperm.slane %v1830, 0
      %v1862 = vadd.f32 %v1858, %v1860
      %s1863 = scalar_lea.vmem %s7, 32
      %v1864 = vld [vmem:[%s1863] sm:$0xf]
      %v1865 = vld [vmem:[%s1863 + $0x4] sm:$0xf]
      %v1866 = vld [vmem:[%s1863 + $0x8] sm:$0xf]
      %v1867 = vld [vmem:[%s1863 + $0xc] sm:$0xf]
      %v1868 = vpack.c.bf16 %v1862, %v1862
      %s1869 = scalar_lea.vmem %s8, 2
      %v1870 = vld [vmem:[%s1869] sm:$0x1]
      %v1872 = vperm.slane %v1870, 0
      %v1878 = vunpack.c.l.b16 %v1864
      %v1879 = vunpack.c.l.b16 %v1865
      %v1880 = vunpack.c.l.b16 %v1866
      %v1881 = vunpack.c.l.b16 %v1867
      %v1882 = vpack.c.b16 %v1879, %v1878
      %v1883 = vpack.c.b16 %v1881, %v1880
      %v1887 = vsel %vm678, %v1868, 0
      %1889 = vmatpush.bf16.msra.mxu0 0
      %1890 = vmatpush.bf16.msra.mxu0 0
      %1891 = vmatpush.bf16.msra.mxu0 0
      %1892 = vmatpush.bf16.msra.mxu0 0
      %1893 = vmatpush.bf16.msra.mxu0 0
      %1894 = vmatpush.bf16.msra.mxu0 0
      %1895 = vmatpush.bf16.msra.mxu0 %v1883
      %1896 = vmatpush.bf16.msra.mxu0 %v1882
      %1897 = vmatmul.bf16.gmra.mxu0 %v1887
      %v1898 = vpop.f32.mrf.mxu0
      %v1899 = vadd.f32 %v1872, %v1898
      %v1900 = vpop.f32.mrf.mxu0
      %1901 = vdwg.mxu0
      %s1902 = scalar_lea.vmem %s9, 32
      %v1903 = vld [vmem:[%s1902] sm:$0xf]
      %v1904 = vld [vmem:[%s1902 + $0x4] sm:$0xf]
      %v1905 = vld [vmem:[%s1902 + $0x8] sm:$0xf]
      %v1906 = vld [vmem:[%s1902 + $0xc] sm:$0xf]
      %s1907 = scalar_lea.vmem %s10, 2
      %v1908 = vld [vmem:[%s1907] sm:$0x1]
      %v1909 = vpack.c.bf16 %v1899, %v1899
      %1911 = vrot.lane.b32.xlu0 %v1909, 96
      %v1912 = vpop.permute.xlu0 %1911
      %v1914 = vsel %vm764, %v1909, 0
      %v1917 = vsel %vm764, %v1912, 0
      %1919 = vmatpush.bf16.xpose.msra.mxu0 0
      %1920 = vmatpush.bf16.xpose.msra.mxu0 0
      %1921 = vmatpush.bf16.xpose.msra.mxu0 0
      %1922 = vmatpush.bf16.xpose.msra.mxu0 0
      %1923 = vmatpush.bf16.xpose.msra.mxu0 0
      %1924 = vmatpush.bf16.xpose.msra.mxu0 0
      %1925 = vmatpush.bf16.xpose.msra.mxu0 0
      %1926 = vmatpush.bf16.xpose.msra.mxu0 %v1917
      %1927 = vmatmul.bf16.gmra.mxu0 %v1914
      %v1928 = vpop.f32.mrf.mxu0
      %v1929 = vadd.f32 0.0, %v1928
      %v1930 = vpop.f32.mrf.mxu0
      %1931 = vdwg.mxu0
      %v1932 = vmul.f32 %v1929, 0.35355338
      %v1933 = vadd.f32 %v1932, %v674
      %1934 = vrot.lane.b32.xlu0 %v1909, 120
      %v1935 = vpop.permute.xlu0 %1934
      %1936 = vrot.lane.b32.xlu0 %v1909, 88
      %v1937 = vpop.permute.xlu0 %1936
      %v1939 = vsel %vm764, %v1935, 0
      %v1942 = vsel %vm764, %v1937, 0
      %1944 = vmatpush.bf16.xpose.msra.mxu0 0
      %1945 = vmatpush.bf16.xpose.msra.mxu0 0
      %1946 = vmatpush.bf16.xpose.msra.mxu0 0
      %1947 = vmatpush.bf16.xpose.msra.mxu0 0
      %1948 = vmatpush.bf16.xpose.msra.mxu0 0
      %1949 = vmatpush.bf16.xpose.msra.mxu0 0
      %1950 = vmatpush.bf16.xpose.msra.mxu0 0
      %1951 = vmatpush.bf16.xpose.msra.mxu0 %v1942
      %1952 = vmatmul.bf16.gmra.mxu0 %v1939
      %v1953 = vpop.f32.mrf.mxu0
      %v1954 = vadd.f32 0.0, %v1953
      %v1955 = vpop.f32.mrf.mxu0
      %1956 = vdwg.mxu0
      %v1957 = vmul.f32 %v1954, 0.35355338
      %v1958 = vadd.f32 %v1957, %v674
      %1959 = vrot.lane.b32.xlu0 %v1909, 112
      %v1960 = vpop.permute.xlu0 %1959
      %1961 = vrot.lane.b32.xlu0 %v1909, 80
      %v1962 = vpop.permute.xlu0 %1961
      %v1964 = vsel %vm764, %v1960, 0
      %v1967 = vsel %vm764, %v1962, 0
      %1969 = vmatpush.bf16.xpose.msra.mxu0 0
      %1970 = vmatpush.bf16.xpose.msra.mxu0 0
      %1971 = vmatpush.bf16.xpose.msra.mxu0 0
      %1972 = vmatpush.bf16.xpose.msra.mxu0 0
      %1973 = vmatpush.bf16.xpose.msra.mxu0 0
      %1974 = vmatpush.bf16.xpose.msra.mxu0 0
      %1975 = vmatpush.bf16.xpose.msra.mxu0 0
      %1976 = vmatpush.bf16.xpose.msra.mxu0 %v1967
      %1977 = vmatmul.bf16.gmra.mxu0 %v1964
      %v1978 = vpop.f32.mrf.mxu0
      %v1979 = vadd.f32 0.0, %v1978
      %v1980 = vpop.f32.mrf.mxu0
      %1981 = vdwg.mxu0
      %v1982 = vmul.f32 %v1979, 0.35355338
      %v1983 = vadd.f32 %v1982, %v674
      %1984 = vrot.lane.b32.xlu0 %v1909, 104
      %v1985 = vpop.permute.xlu0 %1984
      %1986 = vrot.lane.b32.xlu0 %v1909, 72
      %v1987 = vpop.permute.xlu0 %1986
      %v1989 = vsel %vm764, %v1985, 0
      %v1992 = vsel %vm764, %v1987, 0
      %1994 = vmatpush.bf16.xpose.msra.mxu0 0
      %1995 = vmatpush.bf16.xpose.msra.mxu0 0
      %1996 = vmatpush.bf16.xpose.msra.mxu0 0
      %1997 = vmatpush.bf16.xpose.msra.mxu0 0
      %1998 = vmatpush.bf16.xpose.msra.mxu0 0
      %1999 = vmatpush.bf16.xpose.msra.mxu0 0
      %2000 = vmatpush.bf16.xpose.msra.mxu0 0
      %2001 = vmatpush.bf16.xpose.msra.mxu0 %v1992
      %2002 = vmatmul.bf16.gmra.mxu0 %v1989
      %v2003 = vpop.f32.mrf.mxu0
      %v2004 = vadd.f32 0.0, %v2003
      %v2005 = vpop.f32.mrf.mxu0
      %2006 = vdwg.mxu0
      %v2007 = vmul.f32 %v2004, 0.35355338
      %v2008 = vadd.f32 %v2007, %v674
      %v2009 = vsel %vm764, %v1933, -inf
      %2010 = vmax.xlane.f32.xlu0 %v2009
      %v2011 = vpop.xlane.xlu0 %2010
      %v2012 = vsel %vm764, %v1958, -inf
      %2013 = vmax.xlane.f32.xlu0 %v2012
      %v2014 = vpop.xlane.xlu0 %2013
      %v2015 = vsel %vm764, %v1983, -inf
      %2016 = vmax.xlane.f32.xlu0 %v2015
      %v2017 = vpop.xlane.xlu0 %2016
      %v2018 = vsel %vm764, %v2008, -inf
      %2019 = vmax.xlane.f32.xlu0 %v2018
      %v2020 = vpop.xlane.xlu0 %2019
      %v2021 = vsub.f32 %v1933, %v2011
      %v2022 = vsub.f32 %v1958, %v2014
      %v2023 = vsub.f32 %v1983, %v2017
      %v2024 = vsub.f32 %v2008, %v2020
      %v2025 = vmul.f32 %v2021, 1.442695
      %v2026 = vpow.pop %v2025
      %v2027 = vmul.f32 %v2022, 1.442695
      %v2028 = vpow.pop %v2027
      %v2029 = vmul.f32 %v2023, 1.442695
      %v2030 = vpow.pop %v2029
      %v2031 = vmul.f32 %v2024, 1.442695
      %v2032 = vpow.pop %v2031
      %v2033 = vsel %vm764, %v2026, 0.0
      %2034 = vadd.xlane.f32.xlu0 %v2033
      %v2035 = vpop.xlane.xlu0 %2034
      %v2036 = vsel %vm764, %v2028, 0.0
      %2037 = vadd.xlane.f32.xlu0 %v2036
      %v2038 = vpop.xlane.xlu0 %2037
      %v2039 = vsel %vm764, %v2030, 0.0
      %2040 = vadd.xlane.f32.xlu0 %v2039
      %v2041 = vpop.xlane.xlu0 %2040
      %v2042 = vsel %vm764, %v2032, 0.0
      %2043 = vadd.xlane.f32.xlu0 %v2042
      %v2044 = vpop.xlane.xlu0 %2043
      %v2045 = vrcp.pop %v2035
      %v2046 = vmul.f32 %v2035, %v2045
      %v2047 = vsub.f32 1.0, %v2046
      %v2048 = vmul.f32 %v2045, %v2047
      %v2049 = vadd.f32 %v2045, %v2048
      %vm2050 = vweird.f32 %v2035
      %vm2051 = vweird.f32 %v2045
      %vm2052 = vmor %vm2050, %vm2051
      %v2053 = vsel %vm2052, %v2045, %v2049
      %v2054 = vand.u32 2147483647, %v2035
      %vm2055 = vcmp.eq.f32.partialorder %v2054, 8.507059e+37
      %v2056 = vand.u32 %v2035, 2147483648
      %v2057 = vor.u32 1.1754944e-38, %v2056
      %v2058 = vsel %vm2055, %v2057, %v2053
      %v2059 = vmul.f32 %v2026, %v2058
      %v2060 = vrcp.pop %v2038
      %v2061 = vmul.f32 %v2038, %v2060
      %v2062 = vsub.f32 1.0, %v2061
      %v2063 = vmul.f32 %v2060, %v2062
      %v2064 = vadd.f32 %v2060, %v2063
      %vm2065 = vweird.f32 %v2038
      %vm2066 = vweird.f32 %v2060
      %vm2067 = vmor %vm2065, %vm2066
      %v2068 = vsel %vm2067, %v2060, %v2064
      %v2069 = vand.u32 2147483647, %v2038
      %vm2070 = vcmp.eq.f32.partialorder %v2069, 8.507059e+37
      %v2071 = vand.u32 %v2038, 2147483648
      %v2072 = vor.u32 1.1754944e-38, %v2071
      %v2073 = vsel %vm2070, %v2072, %v2068
      %v2074 = vmul.f32 %v2028, %v2073
      %v2075 = vrcp.pop %v2041
      %v2076 = vmul.f32 %v2041, %v2075
      %v2077 = vsub.f32 1.0, %v2076
      %v2078 = vmul.f32 %v2075, %v2077
      %v2079 = vadd.f32 %v2075, %v2078
      %vm2080 = vweird.f32 %v2041
      %vm2081 = vweird.f32 %v2075
      %vm2082 = vmor %vm2080, %vm2081
      %v2083 = vsel %vm2082, %v2075, %v2079
      %v2084 = vand.u32 2147483647, %v2041
      %vm2085 = vcmp.eq.f32.partialorder %v2084, 8.507059e+37
      %v2086 = vand.u32 %v2041, 2147483648
      %v2087 = vor.u32 1.1754944e-38, %v2086
      %v2088 = vsel %vm2085, %v2087, %v2083
      %v2089 = vmul.f32 %v2030, %v2088
      %v2090 = vrcp.pop %v2044
      %v2091 = vmul.f32 %v2044, %v2090
      %v2092 = vsub.f32 1.0, %v2091
      %v2093 = vmul.f32 %v2090, %v2092
      %v2094 = vadd.f32 %v2090, %v2093
      %vm2095 = vweird.f32 %v2044
      %vm2096 = vweird.f32 %v2090
      %vm2097 = vmor %vm2095, %vm2096
      %v2098 = vsel %vm2097, %v2090, %v2094
      %v2099 = vand.u32 2147483647, %v2044
      %vm2100 = vcmp.eq.f32.partialorder %v2099, 8.507059e+37
      %v2101 = vand.u32 %v2044, 2147483648
      %v2102 = vor.u32 1.1754944e-38, %v2101
      %v2103 = vsel %vm2100, %v2102, %v2098
      %v2104 = vmul.f32 %v2032, %v2103
      %v2105 = vpack.c.bf16 %v2059, %v2059
      %2106 = vrot.lane.b32.xlu0 %v1909, 64
      %v2107 = vpop.permute.xlu0 %2106
      %v2109 = vsel %vm764, %v2105, 0
      %v2112 = vsel %vm966, %v2107, 0
      %2114 = vmatpush.bf16.msra.mxu0 0
      %2115 = vmatpush.bf16.msra.mxu0 0
      %2116 = vmatpush.bf16.msra.mxu0 0
      %2117 = vmatpush.bf16.msra.mxu0 0
      %2118 = vmatpush.bf16.msra.mxu0 0
      %2119 = vmatpush.bf16.msra.mxu0 0
      %2120 = vmatpush.bf16.msra.mxu0 0
      %2121 = vmatpush.bf16.msra.mxu0 %v2112
      %2122 = vmatmul.bf16.gmra.mxu0 %v2109
      %v2123 = vpop.f32.mrf.mxu0
      %v2124 = vadd.f32 0.0, %v2123
      %v2125 = vpop.f32.mrf.mxu0
      %2126 = vdwg.mxu0
      %v2127 = vpack.c.bf16 %v2074, %v2074
      %2128 = vrot.lane.b32.xlu0 %v1909, 56
      %v2129 = vpop.permute.xlu0 %2128
      %v2131 = vsel %vm764, %v2127, 0
      %v2134 = vsel %vm966, %v2129, 0
      %2136 = vmatpush.bf16.msra.mxu0 0
      %2137 = vmatpush.bf16.msra.mxu0 0
      %2138 = vmatpush.bf16.msra.mxu0 0
      %2139 = vmatpush.bf16.msra.mxu0 0
      %2140 = vmatpush.bf16.msra.mxu0 0
      %2141 = vmatpush.bf16.msra.mxu0 0
      %2142 = vmatpush.bf16.msra.mxu0 0
      %2143 = vmatpush.bf16.msra.mxu0 %v2134
      %2144 = vmatmul.bf16.gmra.mxu0 %v2131
      %v2145 = vpop.f32.mrf.mxu0
      %v2146 = vadd.f32 0.0, %v2145
      %v2147 = vpop.f32.mrf.mxu0
      %2148 = vdwg.mxu0
      %v2149 = vpack.c.bf16 %v2089, %v2089
      %2150 = vrot.lane.b32.xlu0 %v1909, 48
      %v2151 = vpop.permute.xlu0 %2150
      %v2153 = vsel %vm764, %v2149, 0
      %v2156 = vsel %vm966, %v2151, 0
      %2158 = vmatpush.bf16.msra.mxu0 0
      %2159 = vmatpush.bf16.msra.mxu0 0
      %2160 = vmatpush.bf16.msra.mxu0 0
      %2161 = vmatpush.bf16.msra.mxu0 0
      %2162 = vmatpush.bf16.msra.mxu0 0
      %2163 = vmatpush.bf16.msra.mxu0 0
      %2164 = vmatpush.bf16.msra.mxu0 0
      %2165 = vmatpush.bf16.msra.mxu0 %v2156
      %2166 = vmatmul.bf16.gmra.mxu0 %v2153
      %v2167 = vpop.f32.mrf.mxu0
      %v2168 = vadd.f32 0.0, %v2167
      %v2169 = vpop.f32.mrf.mxu0
      %2170 = vdwg.mxu0
      %v2171 = vpack.c.bf16 %v2104, %v2104
      %2172 = vrot.lane.b32.xlu0 %v1909, 40
      %v2173 = vpop.permute.xlu0 %2172
      %v2175 = vsel %vm764, %v2171, 0
      %v2178 = vsel %vm966, %v2173, 0
      %2180 = vmatpush.bf16.msra.mxu0 0
      %2181 = vmatpush.bf16.msra.mxu0 0
      %2182 = vmatpush.bf16.msra.mxu0 0
      %2183 = vmatpush.bf16.msra.mxu0 0
      %2184 = vmatpush.bf16.msra.mxu0 0
      %2185 = vmatpush.bf16.msra.mxu0 0
      %2186 = vmatpush.bf16.msra.mxu0 0
      %2187 = vmatpush.bf16.msra.mxu0 %v2178
      %2188 = vmatmul.bf16.gmra.mxu0 %v2175
      %v2189 = vpop.f32.mrf.mxu0
      %v2190 = vadd.f32 0.0, %v2189
      %v2191 = vpop.f32.mrf.mxu0
      %2192 = vdwg.mxu0
      %2194 = vrot.lane.b32.xlu0 %v2146, 8
      %v2195 = vpop.permute.xlu0 %2194
      %2198 = vrot.lane.b32.xlu0 %v2168, 16
      %v2199 = vpop.permute.xlu0 %2198
      %2202 = vrot.lane.b32.xlu0 %v2190, 24
      %v2203 = vpop.permute.xlu0 %2202
      %v2205 = vsel %vm764, %v2124, %v2195
      %v2206 = vsel %vm1062, %v2205, %v2199
      %v2207 = vsel %vm1064, %v2206, %v2203
      %v2208 = vpack.c.bf16 %v2207, %v2207
      %v2210 = vperm.slane %v1908, 0
      %v2216 = vunpack.c.l.b16 %v1903
      %v2217 = vunpack.c.l.b16 %v1904
      %v2218 = vunpack.c.l.b16 %v1905
      %v2219 = vunpack.c.l.b16 %v1906
      %v2220 = vpack.c.b16 %v2217, %v2216
      %v2221 = vpack.c.b16 %v2219, %v2218
      %v2225 = vsel %vm678, %v2208, 0
      %2227 = vmatpush.bf16.msra.mxu0 0
      %2228 = vmatpush.bf16.msra.mxu0 0
      %2229 = vmatpush.bf16.msra.mxu0 0
      %2230 = vmatpush.bf16.msra.mxu0 0
      %2231 = vmatpush.bf16.msra.mxu0 0
      %2232 = vmatpush.bf16.msra.mxu0 0
      %2233 = vmatpush.bf16.msra.mxu0 %v2221
      %2234 = vmatpush.bf16.msra.mxu0 %v2220
      %2235 = vmatmul.bf16.gmra.mxu0 %v2225
      %v2236 = vpop.f32.mrf.mxu0
      %v2237 = vadd.f32 %v2210, %v2236
      %v2238 = vpop.f32.mrf.mxu0
      %2239 = vdwg.mxu0
      %v2240 = vadd.f32 %v1862, %v2237
      %s2241 = scalar_lea.vmem %s5, 6
      %v2242 = vld [vmem:[%s2241] sm:$0x1]
      %s2243 = scalar_lea.vmem %s6, 6
      %v2244 = vld [vmem:[%s2243] sm:$0x1]
      %v2245 = vsel %vm678, %v2240, 0.0
      %2246 = vadd.xlane.f32.xlu0 %v2245
      %v2247 = vpop.xlane.xlu0 %2246
      %v2248 = vmul.f32 %v2247, %v688
      %v2249 = vmul.f32 %v2240, %v2240
      %v2250 = vsel %vm678, %v2249, 0.0
      %2251 = vadd.xlane.f32.xlu0 %v2250
      %v2252 = vpop.xlane.xlu0 %2251
      %v2253 = vmul.f32 %v2252, %v688
      %v2254 = vmul.f32 %v2248, %v2248
      %v2255 = vsub.f32 %v2253, %v2254
      %v2256 = vsub.f32 %v2240, %v2248
      %v2257 = vadd.f32 %v2255, 1e-05
      %v2258 = vrsqrt.pop %v2257
      %v2259 = vmul.f32 %v2258, %v2257
      %v2260 = vmul.f32 %v2259, %v2258
      %v2261 = vmul.f32 0.5, %v2260
      %v2262 = vsub.f32 1.5, %v2261
      %v2263 = vmul.f32 %v2258, %v2262
      %vm2264 = vweird.f32 %v2257
      %vm2265 = vweird.f32 %v2258
      %vm2266 = vmor %vm2264, %vm2265
      %v2267 = vsel %vm2266, %v2258, %v2263
      %v2268 = vmul.f32 %v2256, %v2267
      %v2270 = vperm.slane %v2242, 0
      %v2272 = vmul.f32 %v2268, %v2270
      %v2274 = vperm.slane %v2244, 0
      %v2276 = vadd.f32 %v2272, %v2274
      %s2277 = scalar_lea.vmem %s9, 96
      %v2278 = vld [vmem:[%s2277] sm:$0xf]
      %v2279 = vld [vmem:[%s2277 + $0x4] sm:$0xf]
      %v2280 = vld [vmem:[%s2277 + $0x8] sm:$0xf]
      %v2281 = vld [vmem:[%s2277 + $0xc] sm:$0xf]
      %v2282 = vpack.c.bf16 %v2276, %v2276
      %s2283 = scalar_lea.vmem %s10, 6
      %v2284 = vld [vmem:[%s2283] sm:$0x1]
      %v2286 = vperm.slane %v2284, 0
      %v2292 = vunpack.c.l.b16 %v2278
      %v2293 = vunpack.c.l.b16 %v2279
      %v2294 = vunpack.c.l.b16 %v2280
      %v2295 = vunpack.c.l.b16 %v2281
      %v2296 = vpack.c.b16 %v2293, %v2292
      %v2297 = vpack.c.b16 %v2295, %v2294
      %v2301 = vsel %vm678, %v2282, 0
      %2303 = vmatpush.bf16.msra.mxu0 0
      %2304 = vmatpush.bf16.msra.mxu0 0
      %2305 = vmatpush.bf16.msra.mxu0 0
      %2306 = vmatpush.bf16.msra.mxu0 0
      %2307 = vmatpush.bf16.msra.mxu0 0
      %2308 = vmatpush.bf16.msra.mxu0 0
      %2309 = vmatpush.bf16.msra.mxu0 %v2297
      %2310 = vmatpush.bf16.msra.mxu0 %v2296
      %2311 = vmatmul.bf16.gmra.mxu0 %v2301
      %v2312 = vpop.f32.mrf.mxu0
      %v2313 = vadd.f32 %v2286, %v2312
      %v2314 = vpop.f32.mrf.mxu0
      %2315 = vdwg.mxu0
      %v2316 = vld [vmem:[%s11] sm:$0xf]
      %v2317 = vld [vmem:[%s11 + $0x4] sm:$0xf]
      %v2318 = vld [vmem:[%s11 + $0x8] sm:$0xf]
      %v2319 = vld [vmem:[%s11 + $0xc] sm:$0xf]
      %v2320 = vpack.c.bf16 %v1825, %v1825
      %v2321 = vld [vmem:[%s12] sm:$0x1]
      %v2323 = vperm.slane %v2321, 0
      %v2329 = vunpack.c.l.b16 %v2316
      %v2330 = vunpack.c.l.b16 %v2317
      %v2331 = vunpack.c.l.b16 %v2318
      %v2332 = vunpack.c.l.b16 %v2319
      %v2333 = vpack.c.b16 %v2330, %v2329
      %v2334 = vpack.c.b16 %v2332, %v2331
      %v2338 = vsel %vm678, %v2320, 0
      %2340 = vmatpush.bf16.msra.mxu0 0
      %2341 = vmatpush.bf16.msra.mxu0 0
      %2342 = vmatpush.bf16.msra.mxu0 0
      %2343 = vmatpush.bf16.msra.mxu0 0
      %2344 = vmatpush.bf16.msra.mxu0 0
      %2345 = vmatpush.bf16.msra.mxu0 0
      %2346 = vmatpush.bf16.msra.mxu0 %v2334
      %2347 = vmatpush.bf16.msra.mxu0 %v2333
      %2348 = vmatmul.bf16.gmra.mxu0 %v2338
      %v2349 = vpop.f32.mrf.mxu0
      %v2350 = vadd.f32 %v2323, %v2349
      %v2351 = vpop.f32.mrf.mxu0
      %2352 = vdwg.mxu0
      %s2353 = scalar_lea.vmem %s9, 64
      %v2354 = vld [vmem:[%s2353] sm:$0xf]
      %v2355 = vld [vmem:[%s2353 + $0x4] sm:$0xf]
      %v2356 = vld [vmem:[%s2353 + $0x8] sm:$0xf]
      %v2357 = vld [vmem:[%s2353 + $0xc] sm:$0xf]
      %s2358 = scalar_lea.vmem %s10, 4
      %v2359 = vld [vmem:[%s2358] sm:$0x1]
      %v2360 = vpack.c.bf16 %v2313, %v2313
      %v2361 = vpack.c.bf16 %v2350, %v2350
      %v2363 = vsel %vm764, %v2360, 0
      %v2366 = vsel %vm764, %v2361, 0
      %2368 = vmatpush.bf16.xpose.msra.mxu0 0
      %2369 = vmatpush.bf16.xpose.msra.mxu0 0
      %2370 = vmatpush.bf16.xpose.msra.mxu0 0
      %2371 = vmatpush.bf16.xpose.msra.mxu0 0
      %2372 = vmatpush.bf16.xpose.msra.mxu0 0
      %2373 = vmatpush.bf16.xpose.msra.mxu0 0
      %2374 = vmatpush.bf16.xpose.msra.mxu0 0
      %2375 = vmatpush.bf16.xpose.msra.mxu0 %v2366
      %2376 = vmatmul.bf16.gmra.mxu0 %v2363
      %v2377 = vpop.f32.mrf.mxu0
      %v2378 = vadd.f32 0.0, %v2377
      %v2379 = vpop.f32.mrf.mxu0
      %2380 = vdwg.mxu0
      %v2381 = vmul.f32 %v2378, 0.35355338
      %v2382 = vadd.f32 %v2381, %v786
      %2384 = vrot.lane.b32.xlu0 %v2360, 120
      %v2385 = vpop.permute.xlu0 %2384
      %2387 = vrot.lane.b32.xlu0 %v2361, 120
      %v2388 = vpop.permute.xlu0 %2387
      %v2390 = vsel %vm764, %v2385, 0
      %v2393 = vsel %vm764, %v2388, 0
      %2395 = vmatpush.bf16.xpose.msra.mxu0 0
      %2396 = vmatpush.bf16.xpose.msra.mxu0 0
      %2397 = vmatpush.bf16.xpose.msra.mxu0 0
      %2398 = vmatpush.bf16.xpose.msra.mxu0 0
      %2399 = vmatpush.bf16.xpose.msra.mxu0 0
      %2400 = vmatpush.bf16.xpose.msra.mxu0 0
      %2401 = vmatpush.bf16.xpose.msra.mxu0 0
      %2402 = vmatpush.bf16.xpose.msra.mxu0 %v2393
      %2403 = vmatmul.bf16.gmra.mxu0 %v2390
      %v2404 = vpop.f32.mrf.mxu0
      %v2405 = vadd.f32 0.0, %v2404
      %v2406 = vpop.f32.mrf.mxu0
      %2407 = vdwg.mxu0
      %v2408 = vmul.f32 %v2405, 0.35355338
      %v2409 = vadd.f32 %v2408, %v786
      %2410 = vrot.lane.b32.xlu0 %v2360, 112
      %v2411 = vpop.permute.xlu0 %2410
      %2412 = vrot.lane.b32.xlu0 %v2361, 112
      %v2413 = vpop.permute.xlu0 %2412
      %v2415 = vsel %vm764, %v2411, 0
      %v2418 = vsel %vm764, %v2413, 0
      %2420 = vmatpush.bf16.xpose.msra.mxu0 0
      %2421 = vmatpush.bf16.xpose.msra.mxu0 0
      %2422 = vmatpush.bf16.xpose.msra.mxu0 0
      %2423 = vmatpush.bf16.xpose.msra.mxu0 0
      %2424 = vmatpush.bf16.xpose.msra.mxu0 0
      %2425 = vmatpush.bf16.xpose.msra.mxu0 0
      %2426 = vmatpush.bf16.xpose.msra.mxu0 0
      %2427 = vmatpush.bf16.xpose.msra.mxu0 %v2418
      %2428 = vmatmul.bf16.gmra.mxu0 %v2415
      %v2429 = vpop.f32.mrf.mxu0
      %v2430 = vadd.f32 0.0, %v2429
      %v2431 = vpop.f32.mrf.mxu0
      %2432 = vdwg.mxu0
      %v2433 = vmul.f32 %v2430, 0.35355338
      %v2434 = vadd.f32 %v2433, %v786
      %2435 = vrot.lane.b32.xlu0 %v2360, 104
      %v2436 = vpop.permute.xlu0 %2435
      %2437 = vrot.lane.b32.xlu0 %v2361, 104
      %v2438 = vpop.permute.xlu0 %2437
      %v2440 = vsel %vm764, %v2436, 0
      %v2443 = vsel %vm764, %v2438, 0
      %2445 = vmatpush.bf16.xpose.msra.mxu0 0
      %2446 = vmatpush.bf16.xpose.msra.mxu0 0
      %2447 = vmatpush.bf16.xpose.msra.mxu0 0
      %2448 = vmatpush.bf16.xpose.msra.mxu0 0
      %2449 = vmatpush.bf16.xpose.msra.mxu0 0
      %2450 = vmatpush.bf16.xpose.msra.mxu0 0
      %2451 = vmatpush.bf16.xpose.msra.mxu0 0
      %2452 = vmatpush.bf16.xpose.msra.mxu0 %v2443
      %2453 = vmatmul.bf16.gmra.mxu0 %v2440
      %v2454 = vpop.f32.mrf.mxu0
      %v2455 = vadd.f32 0.0, %v2454
      %v2456 = vpop.f32.mrf.mxu0
      %2457 = vdwg.mxu0
      %v2458 = vmul.f32 %v2455, 0.35355338
      %v2459 = vadd.f32 %v2458, %v786
      %v2460 = vsel %vm764, %v2382, -inf
      %2461 = vmax.xlane.f32.xlu0 %v2460
      %v2462 = vpop.xlane.xlu0 %2461
      %v2463 = vsel %vm764, %v2409, -inf
      %2464 = vmax.xlane.f32.xlu0 %v2463
      %v2465 = vpop.xlane.xlu0 %2464
      %v2466 = vsel %vm764, %v2434, -inf
      %2467 = vmax.xlane.f32.xlu0 %v2466
      %v2468 = vpop.xlane.xlu0 %2467
      %v2469 = vsel %vm764, %v2459, -inf
      %2470 = vmax.xlane.f32.xlu0 %v2469
      %v2471 = vpop.xlane.xlu0 %2470
      %v2472 = vsub.f32 %v2382, %v2462
      %v2473 = vsub.f32 %v2409, %v2465
      %v2474 = vsub.f32 %v2434, %v2468
      %v2475 = vsub.f32 %v2459, %v2471
      %v2476 = vmul.f32 %v2472, 1.442695
      %v2477 = vpow.pop %v2476
      %v2478 = vmul.f32 %v2473, 1.442695
      %v2479 = vpow.pop %v2478
      %v2480 = vmul.f32 %v2474, 1.442695
      %v2481 = vpow.pop %v2480
      %v2482 = vmul.f32 %v2475, 1.442695
      %v2483 = vpow.pop %v2482
      %v2484 = vsel %vm764, %v2477, 0.0
      %2485 = vadd.xlane.f32.xlu0 %v2484
      %v2486 = vpop.xlane.xlu0 %2485
      %v2487 = vsel %vm764, %v2479, 0.0
      %2488 = vadd.xlane.f32.xlu0 %v2487
      %v2489 = vpop.xlane.xlu0 %2488
      %v2490 = vsel %vm764, %v2481, 0.0
      %2491 = vadd.xlane.f32.xlu0 %v2490
      %v2492 = vpop.xlane.xlu0 %2491
      %v2493 = vsel %vm764, %v2483, 0.0
      %2494 = vadd.xlane.f32.xlu0 %v2493
      %v2495 = vpop.xlane.xlu0 %2494
      %v2496 = vrcp.pop %v2486
      %v2497 = vmul.f32 %v2486, %v2496
      %v2498 = vsub.f32 1.0, %v2497
      %v2499 = vmul.f32 %v2496, %v2498
      %v2500 = vadd.f32 %v2496, %v2499
      %vm2501 = vweird.f32 %v2486
      %vm2502 = vweird.f32 %v2496
      %vm2503 = vmor %vm2501, %vm2502
      %v2504 = vsel %vm2503, %v2496, %v2500
      %v2505 = vand.u32 2147483647, %v2486
      %vm2506 = vcmp.eq.f32.partialorder %v2505, 8.507059e+37
      %v2507 = vand.u32 %v2486, 2147483648
      %v2508 = vor.u32 1.1754944e-38, %v2507
      %v2509 = vsel %vm2506, %v2508, %v2504
      %v2510 = vmul.f32 %v2477, %v2509
      %v2511 = vrcp.pop %v2489
      %v2512 = vmul.f32 %v2489, %v2511
      %v2513 = vsub.f32 1.0, %v2512
      %v2514 = vmul.f32 %v2511, %v2513
      %v2515 = vadd.f32 %v2511, %v2514
      %vm2516 = vweird.f32 %v2489
      %vm2517 = vweird.f32 %v2511
      %vm2518 = vmor %vm2516, %vm2517
      %v2519 = vsel %vm2518, %v2511, %v2515
      %v2520 = vand.u32 2147483647, %v2489
      %vm2521 = vcmp.eq.f32.partialorder %v2520, 8.507059e+37
      %v2522 = vand.u32 %v2489, 2147483648
      %v2523 = vor.u32 1.1754944e-38, %v2522
      %v2524 = vsel %vm2521, %v2523, %v2519
      %v2525 = vmul.f32 %v2479, %v2524
      %v2526 = vrcp.pop %v2492
      %v2527 = vmul.f32 %v2492, %v2526
      %v2528 = vsub.f32 1.0, %v2527
      %v2529 = vmul.f32 %v2526, %v2528
      %v2530 = vadd.f32 %v2526, %v2529
      %vm2531 = vweird.f32 %v2492
      %vm2532 = vweird.f32 %v2526
      %vm2533 = vmor %vm2531, %vm2532
      %v2534 = vsel %vm2533, %v2526, %v2530
      %v2535 = vand.u32 2147483647, %v2492
      %vm2536 = vcmp.eq.f32.partialorder %v2535, 8.507059e+37
      %v2537 = vand.u32 %v2492, 2147483648
      %v2538 = vor.u32 1.1754944e-38, %v2537
      %v2539 = vsel %vm2536, %v2538, %v2534
      %v2540 = vmul.f32 %v2481, %v2539
      %v2541 = vrcp.pop %v2495
      %v2542 = vmul.f32 %v2495, %v2541
      %v2543 = vsub.f32 1.0, %v2542
      %v2544 = vmul.f32 %v2541, %v2543
      %v2545 = vadd.f32 %v2541, %v2544
      %vm2546 = vweird.f32 %v2495
      %vm2547 = vweird.f32 %v2541
      %vm2548 = vmor %vm2546, %vm2547
      %v2549 = vsel %vm2548, %v2541, %v2545
      %v2550 = vand.u32 2147483647, %v2495
      %vm2551 = vcmp.eq.f32.partialorder %v2550, 8.507059e+37
      %v2552 = vand.u32 %v2495, 2147483648
      %v2553 = vor.u32 1.1754944e-38, %v2552
      %v2554 = vsel %vm2551, %v2553, %v2549
      %v2555 = vmul.f32 %v2483, %v2554
      %v2556 = vpack.c.bf16 %v2510, %v2510
      %2557 = vrot.lane.b32.xlu0 %v2361, 96
      %v2558 = vpop.permute.xlu0 %2557
      %v2560 = vsel %vm764, %v2556, 0
      %v2563 = vsel %vm966, %v2558, 0
      %2565 = vmatpush.bf16.msra.mxu0 0
      %2566 = vmatpush.bf16.msra.mxu0 0
      %2567 = vmatpush.bf16.msra.mxu0 0
      %2568 = vmatpush.bf16.msra.mxu0 0
      %2569 = vmatpush.bf16.msra.mxu0 0
      %2570 = vmatpush.bf16.msra.mxu0 0
      %2571 = vmatpush.bf16.msra.mxu0 0
      %2572 = vmatpush.bf16.msra.mxu0 %v2563
      %2573 = vmatmul.bf16.gmra.mxu0 %v2560
      %v2574 = vpop.f32.mrf.mxu0
      %v2575 = vadd.f32 0.0, %v2574
      %v2576 = vpop.f32.mrf.mxu0
      %2577 = vdwg.mxu0
      %v2578 = vpack.c.bf16 %v2525, %v2525
      %2579 = vrot.lane.b32.xlu0 %v2361, 88
      %v2580 = vpop.permute.xlu0 %2579
      %v2582 = vsel %vm764, %v2578, 0
      %v2585 = vsel %vm966, %v2580, 0
      %2587 = vmatpush.bf16.msra.mxu0 0
      %2588 = vmatpush.bf16.msra.mxu0 0
      %2589 = vmatpush.bf16.msra.mxu0 0
      %2590 = vmatpush.bf16.msra.mxu0 0
      %2591 = vmatpush.bf16.msra.mxu0 0
      %2592 = vmatpush.bf16.msra.mxu0 0
      %2593 = vmatpush.bf16.msra.mxu0 0
      %2594 = vmatpush.bf16.msra.mxu0 %v2585
      %2595 = vmatmul.bf16.gmra.mxu0 %v2582
      %v2596 = vpop.f32.mrf.mxu0
      %v2597 = vadd.f32 0.0, %v2596
      %v2598 = vpop.f32.mrf.mxu0
      %2599 = vdwg.mxu0
      %v2600 = vpack.c.bf16 %v2540, %v2540
      %2601 = vrot.lane.b32.xlu0 %v2361, 80
      %v2602 = vpop.permute.xlu0 %2601
      %v2604 = vsel %vm764, %v2600, 0
      %v2607 = vsel %vm966, %v2602, 0
      %2609 = vmatpush.bf16.msra.mxu0 0
      %2610 = vmatpush.bf16.msra.mxu0 0
      %2611 = vmatpush.bf16.msra.mxu0 0
      %2612 = vmatpush.bf16.msra.mxu0 0
      %2613 = vmatpush.bf16.msra.mxu0 0
      %2614 = vmatpush.bf16.msra.mxu0 0
      %2615 = vmatpush.bf16.msra.mxu0 0
      %2616 = vmatpush.bf16.msra.mxu0 %v2607
      %2617 = vmatmul.bf16.gmra.mxu0 %v2604
      %v2618 = vpop.f32.mrf.mxu0
      %v2619 = vadd.f32 0.0, %v2618
      %v2620 = vpop.f32.mrf.mxu0
      %2621 = vdwg.mxu0
      %v2622 = vpack.c.bf16 %v2555, %v2555
      %2623 = vrot.lane.b32.xlu0 %v2361, 72
      %v2624 = vpop.permute.xlu0 %2623
      %v2626 = vsel %vm764, %v2622, 0
      %v2629 = vsel %vm966, %v2624, 0
      %2631 = vmatpush.bf16.msra.mxu0 0
      %2632 = vmatpush.bf16.msra.mxu0 0
      %2633 = vmatpush.bf16.msra.mxu0 0
      %2634 = vmatpush.bf16.msra.mxu0 0
      %2635 = vmatpush.bf16.msra.mxu0 0
      %2636 = vmatpush.bf16.msra.mxu0 0
      %2637 = vmatpush.bf16.msra.mxu0 0
      %2638 = vmatpush.bf16.msra.mxu0 %v2629
      %2639 = vmatmul.bf16.gmra.mxu0 %v2626
      %v2640 = vpop.f32.mrf.mxu0
      %v2641 = vadd.f32 0.0, %v2640
      %v2642 = vpop.f32.mrf.mxu0
      %2643 = vdwg.mxu0
      %2645 = vrot.lane.b32.xlu0 %v2597, 8
      %v2646 = vpop.permute.xlu0 %2645
      %2649 = vrot.lane.b32.xlu0 %v2619, 16
      %v2650 = vpop.permute.xlu0 %2649
      %2653 = vrot.lane.b32.xlu0 %v2641, 24
      %v2654 = vpop.permute.xlu0 %2653
      %v2656 = vsel %vm764, %v2575, %v2646
      %v2657 = vsel %vm1062, %v2656, %v2650
      %v2658 = vsel %vm1064, %v2657, %v2654
      %v2659 = vpack.c.bf16 %v2658, %v2658
      %v2661 = vperm.slane %v2359, 0
      %v2667 = vunpack.c.l.b16 %v2354
      %v2668 = vunpack.c.l.b16 %v2355
      %v2669 = vunpack.c.l.b16 %v2356
      %v2670 = vunpack.c.l.b16 %v2357
      %v2671 = vpack.c.b16 %v2668, %v2667
      %v2672 = vpack.c.b16 %v2670, %v2669
      %v2676 = vsel %vm678, %v2659, 0
      %2678 = vmatpush.bf16.msra.mxu0 0
      %2679 = vmatpush.bf16.msra.mxu0 0
      %2680 = vmatpush.bf16.msra.mxu0 0
      %2681 = vmatpush.bf16.msra.mxu0 0
      %2682 = vmatpush.bf16.msra.mxu0 0
      %2683 = vmatpush.bf16.msra.mxu0 0
      %2684 = vmatpush.bf16.msra.mxu0 %v2672
      %2685 = vmatpush.bf16.msra.mxu0 %v2671
      %2686 = vmatmul.bf16.gmra.mxu0 %v2676
      %v2687 = vpop.f32.mrf.mxu0
      %v2688 = vadd.f32 %v2661, %v2687
      %v2689 = vpop.f32.mrf.mxu0
      %2690 = vdwg.mxu0
      %v2691 = vadd.f32 %v2276, %v2688
      %s2692 = scalar_lea.vmem %s5, 7
      %v2693 = vld [vmem:[%s2692] sm:$0x1]
      %s2694 = scalar_lea.vmem %s6, 7
      %v2695 = vld [vmem:[%s2694] sm:$0x1]
      %v2696 = vsel %vm678, %v2691, 0.0
      %2697 = vadd.xlane.f32.xlu0 %v2696
      %v2698 = vpop.xlane.xlu0 %2697
      %v2699 = vmul.f32 %v2698, %v688
      %v2700 = vmul.f32 %v2691, %v2691
      %v2701 = vsel %vm678, %v2700, 0.0
      %2702 = vadd.xlane.f32.xlu0 %v2701
      %v2703 = vpop.xlane.xlu0 %2702
      %v2704 = vmul.f32 %v2703, %v688
      %v2705 = vmul.f32 %v2699, %v2699
      %v2706 = vsub.f32 %v2704, %v2705
      %v2707 = vsub.f32 %v2691, %v2699
      %v2708 = vadd.f32 %v2706, 1e-05
      %v2709 = vrsqrt.pop %v2708
      %v2710 = vmul.f32 %v2709, %v2708
      %v2711 = vmul.f32 %v2710, %v2709
      %v2712 = vmul.f32 0.5, %v2711
      %v2713 = vsub.f32 1.5, %v2712
      %v2714 = vmul.f32 %v2709, %v2713
      %vm2715 = vweird.f32 %v2708
      %vm2716 = vweird.f32 %v2709
      %vm2717 = vmor %vm2715, %vm2716
      %v2718 = vsel %vm2717, %v2709, %v2714
      %v2719 = vmul.f32 %v2707, %v2718
      %v2721 = vperm.slane %v2693, 0
      %v2723 = vmul.f32 %v2719, %v2721
      %v2725 = vperm.slane %v2695, 0
      %v2727 = vadd.f32 %v2723, %v2725
      %s2728 = scalar_lea.vmem %s13, 32
      %v2729 = vld [vmem:[%s2728] sm:$0xf]
      %v2730 = vld [vmem:[%s2728 + $0x4] sm:$0xf]
      %v2731 = vld [vmem:[%s2728 + $0x8] sm:$0xf]
      %v2732 = vld [vmem:[%s2728 + $0xc] sm:$0xf]
      %v2733 = vpack.c.bf16 %v2727, %v2727
      %s2734 = scalar_lea.vmem %s14, 2
      %v2735 = vld [vmem:[%s2734] sm:$0x1]
      %v2737 = vperm.slane %v2735, 0
      %v2743 = vunpack.c.l.b16 %v2729
      %v2744 = vunpack.c.l.b16 %v2730
      %v2745 = vunpack.c.l.b16 %v2731
      %v2746 = vunpack.c.l.b16 %v2732
      %v2747 = vpack.c.b16 %v2744, %v2743
      %v2748 = vpack.c.b16 %v2746, %v2745
      %v2752 = vsel %vm678, %v2733, 0
      %2754 = vmatpush.bf16.msra.mxu0 0
      %2755 = vmatpush.bf16.msra.mxu0 0
      %2756 = vmatpush.bf16.msra.mxu0 0
      %2757 = vmatpush.bf16.msra.mxu0 0
      %2758 = vmatpush.bf16.msra.mxu0 0
      %2759 = vmatpush.bf16.msra.mxu0 0
      %2760 = vmatpush.bf16.msra.mxu0 %v2748
      %2761 = vmatpush.bf16.msra.mxu0 %v2747
      %2762 = vmatmul.bf16.gmra.mxu0 %v2752
      %v2763 = vpop.f32.mrf.mxu0
      %v2764 = vadd.f32 %v2737, %v2763
      %v2765 = vpop.f32.mrf.mxu0
      %2766 = vdwg.mxu0
      %v2767 = vmul.f32 %v2764, %v2764
      %v2768 = vmul.f32 %v2764, %v2767
      %v2769 = vmul.f32 %v2768, 0.044715
      %v2770 = vadd.f32 %v2764, %v2769
      %v2771 = vmul.f32 %v2770, 0.7978846
      %v2772 = vtanh.pop %v2771
      %v2773 = vadd.f32 %v2772, 1.0
      %v2774 = vmul.f32 %v2773, 0.5
      %v2775 = vmul.f32 %v2764, %v2774
      %s2776 = scalar_lea.vmem %s15, 64
      %v2777 = vld [vmem:[%s2776] sm:$0xf]
      %v2778 = vld [vmem:[%s2776 + $0x4] sm:$0xf]
      %v2779 = vld [vmem:[%s2776 + $0x8] sm:$0xf]
      %v2780 = vld [vmem:[%s2776 + $0xc] sm:$0xf]
      %v2781 = vld [vmem:[%s2776 + $0x10] sm:$0xf]
      %v2782 = vld [vmem:[%s2776 + $0x14] sm:$0xf]
      %v2783 = vld [vmem:[%s2776 + $0x18] sm:$0xf]
      %v2784 = vld [vmem:[%s2776 + $0x1c] sm:$0xf]
      %v2785 = vpack.c.bf16 %v2775, %v2775
      %s2786 = scalar_lea.vmem %s16, 2
      %v2787 = vld [vmem:[%s2786] sm:$0x1]
      %v2789 = vperm.slane %v2787, 0
      %v2799 = vunpack.c.l.b16 %v2777
      %v2800 = vunpack.c.l.b16 %v2778
      %v2801 = vunpack.c.l.b16 %v2779
      %v2802 = vunpack.c.l.b16 %v2780
      %v2803 = vunpack.c.l.b16 %v2781
      %v2804 = vunpack.c.l.b16 %v2782
      %v2805 = vunpack.c.l.b16 %v2783
      %v2806 = vunpack.c.l.b16 %v2784
      %v2807 = vpack.c.b16 %v2800, %v2799
      %v2808 = vpack.c.b16 %v2802, %v2801
      %v2809 = vpack.c.b16 %v2804, %v2803
      %v2810 = vpack.c.b16 %v2806, %v2805
      %v2816 = vsel %vm1218, %v2785, 0
      %2818 = vmatpush.bf16.msra.mxu0 0
      %2819 = vmatpush.bf16.msra.mxu0 0
      %2820 = vmatpush.bf16.msra.mxu0 0
      %2821 = vmatpush.bf16.msra.mxu0 0
      %2822 = vmatpush.bf16.msra.mxu0 %v2810
      %2823 = vmatpush.bf16.msra.mxu0 %v2809
      %2824 = vmatpush.bf16.msra.mxu0 %v2808
      %2825 = vmatpush.bf16.msra.mxu0 %v2807
      %2826 = vmatmul.bf16.gmra.mxu0 %v2816
      %v2827 = vpop.f32.mrf.mxu0
      %v2828 = vadd.f32 %v2789, %v2827
      %v2829 = vpop.f32.mrf.mxu0
      %2830 = vdwg.mxu0
      %v2831 = vadd.f32 %v2727, %v2828
      %s2832 = scalar_lea.vmem %s5, 8
      %v2833 = vld [vmem:[%s2832] sm:$0x1]
      %s2834 = scalar_lea.vmem %s6, 8
      %v2835 = vld [vmem:[%s2834] sm:$0x1]
      %v2836 = vsel %vm678, %v2831, 0.0
      %2837 = vadd.xlane.f32.xlu0 %v2836
      %v2838 = vpop.xlane.xlu0 %2837
      %v2839 = vmul.f32 %v2838, %v688
      %v2840 = vmul.f32 %v2831, %v2831
      %v2841 = vsel %vm678, %v2840, 0.0
      %2842 = vadd.xlane.f32.xlu0 %v2841
      %v2843 = vpop.xlane.xlu0 %2842
      %v2844 = vmul.f32 %v2843, %v688
      %v2845 = vmul.f32 %v2839, %v2839
      %v2846 = vsub.f32 %v2844, %v2845
      %v2847 = vsub.f32 %v2831, %v2839
      %v2848 = vadd.f32 %v2846, 1e-05
      %v2849 = vrsqrt.pop %v2848
      %v2850 = vmul.f32 %v2849, %v2848
      %v2851 = vmul.f32 %v2850, %v2849
      %v2852 = vmul.f32 0.5, %v2851
      %v2853 = vsub.f32 1.5, %v2852
      %v2854 = vmul.f32 %v2849, %v2853
      %vm2855 = vweird.f32 %v2848
      %vm2856 = vweird.f32 %v2849
      %vm2857 = vmor %vm2855, %vm2856
      %v2858 = vsel %vm2857, %v2849, %v2854
      %v2859 = vmul.f32 %v2847, %v2858
      %v2861 = vperm.slane %v2833, 0
      %v2863 = vmul.f32 %v2859, %v2861
      %v2865 = vperm.slane %v2835, 0
      %v2867 = vadd.f32 %v2863, %v2865
      %s2868 = scalar_lea.vmem %s7, 48
      %v2869 = vld [vmem:[%s2868] sm:$0xf]
      %v2870 = vld [vmem:[%s2868 + $0x4] sm:$0xf]
      %v2871 = vld [vmem:[%s2868 + $0x8] sm:$0xf]
      %v2872 = vld [vmem:[%s2868 + $0xc] sm:$0xf]
      %v2873 = vpack.c.bf16 %v2867, %v2867
      %s2874 = scalar_lea.vmem %s8, 3
      %v2875 = vld [vmem:[%s2874] sm:$0x1]
      %v2877 = vperm.slane %v2875, 0
      %v2883 = vunpack.c.l.b16 %v2869
      %v2884 = vunpack.c.l.b16 %v2870
      %v2885 = vunpack.c.l.b16 %v2871
      %v2886 = vunpack.c.l.b16 %v2872
      %v2887 = vpack.c.b16 %v2884, %v2883
      %v2888 = vpack.c.b16 %v2886, %v2885
      %v2892 = vsel %vm678, %v2873, 0
      %2894 = vmatpush.bf16.msra.mxu0 0
      %2895 = vmatpush.bf16.msra.mxu0 0
      %2896 = vmatpush.bf16.msra.mxu0 0
      %2897 = vmatpush.bf16.msra.mxu0 0
      %2898 = vmatpush.bf16.msra.mxu0 0
      %2899 = vmatpush.bf16.msra.mxu0 0
      %2900 = vmatpush.bf16.msra.mxu0 %v2888
      %2901 = vmatpush.bf16.msra.mxu0 %v2887
      %2902 = vmatmul.bf16.gmra.mxu0 %v2892
      %v2903 = vpop.f32.mrf.mxu0
      %v2904 = vadd.f32 %v2877, %v2903
      %v2905 = vpop.f32.mrf.mxu0
      %2906 = vdwg.mxu0
      %s2907 = scalar_lea.vmem %s9, 48
      %v2908 = vld [vmem:[%s2907] sm:$0xf]
      %v2909 = vld [vmem:[%s2907 + $0x4] sm:$0xf]
      %v2910 = vld [vmem:[%s2907 + $0x8] sm:$0xf]
      %v2911 = vld [vmem:[%s2907 + $0xc] sm:$0xf]
      %s2912 = scalar_lea.vmem %s10, 3
      %v2913 = vld [vmem:[%s2912] sm:$0x1]
      %v2914 = vpack.c.bf16 %v2904, %v2904
      %2916 = vrot.lane.b32.xlu0 %v2914, 96
      %v2917 = vpop.permute.xlu0 %2916
      %v2919 = vsel %vm764, %v2914, 0
      %v2922 = vsel %vm764, %v2917, 0
      %2924 = vmatpush.bf16.xpose.msra.mxu0 0
      %2925 = vmatpush.bf16.xpose.msra.mxu0 0
      %2926 = vmatpush.bf16.xpose.msra.mxu0 0
      %2927 = vmatpush.bf16.xpose.msra.mxu0 0
      %2928 = vmatpush.bf16.xpose.msra.mxu0 0
      %2929 = vmatpush.bf16.xpose.msra.mxu0 0
      %2930 = vmatpush.bf16.xpose.msra.mxu0 0
      %2931 = vmatpush.bf16.xpose.msra.mxu0 %v2922
      %2932 = vmatmul.bf16.gmra.mxu0 %v2919
      %v2933 = vpop.f32.mrf.mxu0
      %v2934 = vadd.f32 0.0, %v2933
      %v2935 = vpop.f32.mrf.mxu0
      %2936 = vdwg.mxu0
      %v2937 = vmul.f32 %v2934, 0.35355338
      %v2938 = vadd.f32 %v2937, %v674
      %2939 = vrot.lane.b32.xlu0 %v2914, 120
      %v2940 = vpop.permute.xlu0 %2939
      %2941 = vrot.lane.b32.xlu0 %v2914, 88
      %v2942 = vpop.permute.xlu0 %2941
      %v2944 = vsel %vm764, %v2940, 0
      %v2947 = vsel %vm764, %v2942, 0
      %2949 = vmatpush.bf16.xpose.msra.mxu0 0
      %2950 = vmatpush.bf16.xpose.msra.mxu0 0
      %2951 = vmatpush.bf16.xpose.msra.mxu0 0
      %2952 = vmatpush.bf16.xpose.msra.mxu0 0
      %2953 = vmatpush.bf16.xpose.msra.mxu0 0
      %2954 = vmatpush.bf16.xpose.msra.mxu0 0
      %2955 = vmatpush.bf16.xpose.msra.mxu0 0
      %2956 = vmatpush.bf16.xpose.msra.mxu0 %v2947
      %2957 = vmatmul.bf16.gmra.mxu0 %v2944
      %v2958 = vpop.f32.mrf.mxu0
      %v2959 = vadd.f32 0.0, %v2958
      %v2960 = vpop.f32.mrf.mxu0
      %2961 = vdwg.mxu0
      %v2962 = vmul.f32 %v2959, 0.35355338
      %v2963 = vadd.f32 %v2962, %v674
      %2964 = vrot.lane.b32.xlu0 %v2914, 112
      %v2965 = vpop.permute.xlu0 %2964
      %2966 = vrot.lane.b32.xlu0 %v2914, 80
      %v2967 = vpop.permute.xlu0 %2966
      %v2969 = vsel %vm764, %v2965, 0
      %v2972 = vsel %vm764, %v2967, 0
      %2974 = vmatpush.bf16.xpose.msra.mxu0 0
      %2975 = vmatpush.bf16.xpose.msra.mxu0 0
      %2976 = vmatpush.bf16.xpose.msra.mxu0 0
      %2977 = vmatpush.bf16.xpose.msra.mxu0 0
      %2978 = vmatpush.bf16.xpose.msra.mxu0 0
      %2979 = vmatpush.bf16.xpose.msra.mxu0 0
      %2980 = vmatpush.bf16.xpose.msra.mxu0 0
      %2981 = vmatpush.bf16.xpose.msra.mxu0 %v2972
      %2982 = vmatmul.bf16.gmra.mxu0 %v2969
      %v2983 = vpop.f32.mrf.mxu0
      %v2984 = vadd.f32 0.0, %v2983
      %v2985 = vpop.f32.mrf.mxu0
      %2986 = vdwg.mxu0
      %v2987 = vmul.f32 %v2984, 0.35355338
      %v2988 = vadd.f32 %v2987, %v674
      %2989 = vrot.lane.b32.xlu0 %v2914, 104
      %v2990 = vpop.permute.xlu0 %2989
      %2991 = vrot.lane.b32.xlu0 %v2914, 72
      %v2992 = vpop.permute.xlu0 %2991
      %v2994 = vsel %vm764, %v2990, 0
      %v2997 = vsel %vm764, %v2992, 0
      %2999 = vmatpush.bf16.xpose.msra.mxu0 0
      %3000 = vmatpush.bf16.xpose.msra.mxu0 0
      %3001 = vmatpush.bf16.xpose.msra.mxu0 0
      %3002 = vmatpush.bf16.xpose.msra.mxu0 0
      %3003 = vmatpush.bf16.xpose.msra.mxu0 0
      %3004 = vmatpush.bf16.xpose.msra.mxu0 0
      %3005 = vmatpush.bf16.xpose.msra.mxu0 0
      %3006 = vmatpush.bf16.xpose.msra.mxu0 %v2997
      %3007 = vmatmul.bf16.gmra.mxu0 %v2994
      %v3008 = vpop.f32.mrf.mxu0
      %v3009 = vadd.f32 0.0, %v3008
      %v3010 = vpop.f32.mrf.mxu0
      %3011 = vdwg.mxu0
      %v3012 = vmul.f32 %v3009, 0.35355338
      %v3013 = vadd.f32 %v3012, %v674
      %v3014 = vsel %vm764, %v2938, -inf
      %3015 = vmax.xlane.f32.xlu0 %v3014
      %v3016 = vpop.xlane.xlu0 %3015
      %v3017 = vsel %vm764, %v2963, -inf
      %3018 = vmax.xlane.f32.xlu0 %v3017
      %v3019 = vpop.xlane.xlu0 %3018
      %v3020 = vsel %vm764, %v2988, -inf
      %3021 = vmax.xlane.f32.xlu0 %v3020
      %v3022 = vpop.xlane.xlu0 %3021
      %v3023 = vsel %vm764, %v3013, -inf
      %3024 = vmax.xlane.f32.xlu0 %v3023
      %v3025 = vpop.xlane.xlu0 %3024
      %v3026 = vsub.f32 %v2938, %v3016
      %v3027 = vsub.f32 %v2963, %v3019
      %v3028 = vsub.f32 %v2988, %v3022
      %v3029 = vsub.f32 %v3013, %v3025
      %v3030 = vmul.f32 %v3026, 1.442695
      %v3031 = vpow.pop %v3030
      %v3032 = vmul.f32 %v3027, 1.442695
      %v3033 = vpow.pop %v3032
      %v3034 = vmul.f32 %v3028, 1.442695
      %v3035 = vpow.pop %v3034
      %v3036 = vmul.f32 %v3029, 1.442695
      %v3037 = vpow.pop %v3036
      %v3038 = vsel %vm764, %v3031, 0.0
      %3039 = vadd.xlane.f32.xlu0 %v3038
      %v3040 = vpop.xlane.xlu0 %3039
      %v3041 = vsel %vm764, %v3033, 0.0
      %3042 = vadd.xlane.f32.xlu0 %v3041
      %v3043 = vpop.xlane.xlu0 %3042
      %v3044 = vsel %vm764, %v3035, 0.0
      %3045 = vadd.xlane.f32.xlu0 %v3044
      %v3046 = vpop.xlane.xlu0 %3045
      %v3047 = vsel %vm764, %v3037, 0.0
      %3048 = vadd.xlane.f32.xlu0 %v3047
      %v3049 = vpop.xlane.xlu0 %3048
      %v3050 = vrcp.pop %v3040
      %v3051 = vmul.f32 %v3040, %v3050
      %v3052 = vsub.f32 1.0, %v3051
      %v3053 = vmul.f32 %v3050, %v3052
      %v3054 = vadd.f32 %v3050, %v3053
      %vm3055 = vweird.f32 %v3040
      %vm3056 = vweird.f32 %v3050
      %vm3057 = vmor %vm3055, %vm3056
      %v3058 = vsel %vm3057, %v3050, %v3054
      %v3059 = vand.u32 2147483647, %v3040
      %vm3060 = vcmp.eq.f32.partialorder %v3059, 8.507059e+37
      %v3061 = vand.u32 %v3040, 2147483648
      %v3062 = vor.u32 1.1754944e-38, %v3061
      %v3063 = vsel %vm3060, %v3062, %v3058
      %v3064 = vmul.f32 %v3031, %v3063
      %v3065 = vrcp.pop %v3043
      %v3066 = vmul.f32 %v3043, %v3065
      %v3067 = vsub.f32 1.0, %v3066
      %v3068 = vmul.f32 %v3065, %v3067
      %v3069 = vadd.f32 %v3065, %v3068
      %vm3070 = vweird.f32 %v3043
      %vm3071 = vweird.f32 %v3065
      %vm3072 = vmor %vm3070, %vm3071
      %v3073 = vsel %vm3072, %v3065, %v3069
      %v3074 = vand.u32 2147483647, %v3043
      %vm3075 = vcmp.eq.f32.partialorder %v3074, 8.507059e+37
      %v3076 = vand.u32 %v3043, 2147483648
      %v3077 = vor.u32 1.1754944e-38, %v3076
      %v3078 = vsel %vm3075, %v3077, %v3073
      %v3079 = vmul.f32 %v3033, %v3078
      %v3080 = vrcp.pop %v3046
      %v3081 = vmul.f32 %v3046, %v3080
      %v3082 = vsub.f32 1.0, %v3081
      %v3083 = vmul.f32 %v3080, %v3082
      %v3084 = vadd.f32 %v3080, %v3083
      %vm3085 = vweird.f32 %v3046
      %vm3086 = vweird.f32 %v3080
      %vm3087 = vmor %vm3085, %vm3086
      %v3088 = vsel %vm3087, %v3080, %v3084
      %v3089 = vand.u32 2147483647, %v3046
      %vm3090 = vcmp.eq.f32.partialorder %v3089, 8.507059e+37
      %v3091 = vand.u32 %v3046, 2147483648
      %v3092 = vor.u32 1.1754944e-38, %v3091
      %v3093 = vsel %vm3090, %v3092, %v3088
      %v3094 = vmul.f32 %v3035, %v3093
      %v3095 = vrcp.pop %v3049
      %v3096 = vmul.f32 %v3049, %v3095
      %v3097 = vsub.f32 1.0, %v3096
      %v3098 = vmul.f32 %v3095, %v3097
      %v3099 = vadd.f32 %v3095, %v3098
      %vm3100 = vweird.f32 %v3049
      %vm3101 = vweird.f32 %v3095
      %vm3102 = vmor %vm3100, %vm3101
      %v3103 = vsel %vm3102, %v3095, %v3099
      %v3104 = vand.u32 2147483647, %v3049
      %vm3105 = vcmp.eq.f32.partialorder %v3104, 8.507059e+37
      %v3106 = vand.u32 %v3049, 2147483648
      %v3107 = vor.u32 1.1754944e-38, %v3106
      %v3108 = vsel %vm3105, %v3107, %v3103
      %v3109 = vmul.f32 %v3037, %v3108
      %v3110 = vpack.c.bf16 %v3064, %v3064
      %3111 = vrot.lane.b32.xlu0 %v2914, 64
      %v3112 = vpop.permute.xlu0 %3111
      %v3114 = vsel %vm764, %v3110, 0
      %v3117 = vsel %vm966, %v3112, 0
      %3119 = vmatpush.bf16.msra.mxu0 0
      %3120 = vmatpush.bf16.msra.mxu0 0
      %3121 = vmatpush.bf16.msra.mxu0 0
      %3122 = vmatpush.bf16.msra.mxu0 0
      %3123 = vmatpush.bf16.msra.mxu0 0
      %3124 = vmatpush.bf16.msra.mxu0 0
      %3125 = vmatpush.bf16.msra.mxu0 0
      %3126 = vmatpush.bf16.msra.mxu0 %v3117
      %3127 = vmatmul.bf16.gmra.mxu0 %v3114
      %v3128 = vpop.f32.mrf.mxu0
      %v3129 = vadd.f32 0.0, %v3128
      %v3130 = vpop.f32.mrf.mxu0
      %3131 = vdwg.mxu0
      %v3132 = vpack.c.bf16 %v3079, %v3079
      %3133 = vrot.lane.b32.xlu0 %v2914, 56
      %v3134 = vpop.permute.xlu0 %3133
      %v3136 = vsel %vm764, %v3132, 0
      %v3139 = vsel %vm966, %v3134, 0
      %3141 = vmatpush.bf16.msra.mxu0 0
      %3142 = vmatpush.bf16.msra.mxu0 0
      %3143 = vmatpush.bf16.msra.mxu0 0
      %3144 = vmatpush.bf16.msra.mxu0 0
      %3145 = vmatpush.bf16.msra.mxu0 0
      %3146 = vmatpush.bf16.msra.mxu0 0
      %3147 = vmatpush.bf16.msra.mxu0 0
      %3148 = vmatpush.bf16.msra.mxu0 %v3139
      %3149 = vmatmul.bf16.gmra.mxu0 %v3136
      %v3150 = vpop.f32.mrf.mxu0
      %v3151 = vadd.f32 0.0, %v3150
      %v3152 = vpop.f32.mrf.mxu0
      %3153 = vdwg.mxu0
      %v3154 = vpack.c.bf16 %v3094, %v3094
      %3155 = vrot.lane.b32.xlu0 %v2914, 48
      %v3156 = vpop.permute.xlu0 %3155
      %v3158 = vsel %vm764, %v3154, 0
      %v3161 = vsel %vm966, %v3156, 0
      %3163 = vmatpush.bf16.msra.mxu0 0
      %3164 = vmatpush.bf16.msra.mxu0 0
      %3165 = vmatpush.bf16.msra.mxu0 0
      %3166 = vmatpush.bf16.msra.mxu0 0
      %3167 = vmatpush.bf16.msra.mxu0 0
      %3168 = vmatpush.bf16.msra.mxu0 0
      %3169 = vmatpush.bf16.msra.mxu0 0
      %3170 = vmatpush.bf16.msra.mxu0 %v3161
      %3171 = vmatmul.bf16.gmra.mxu0 %v3158
      %v3172 = vpop.f32.mrf.mxu0
      %v3173 = vadd.f32 0.0, %v3172
      %v3174 = vpop.f32.mrf.mxu0
      %3175 = vdwg.mxu0
      %v3176 = vpack.c.bf16 %v3109, %v3109
      %3177 = vrot.lane.b32.xlu0 %v2914, 40
      %v3178 = vpop.permute.xlu0 %3177
      %v3180 = vsel %vm764, %v3176, 0
      %v3183 = vsel %vm966, %v3178, 0
      %3185 = vmatpush.bf16.msra.mxu0 0
      %3186 = vmatpush.bf16.msra.mxu0 0
      %3187 = vmatpush.bf16.msra.mxu0 0
      %3188 = vmatpush.bf16.msra.mxu0 0
      %3189 = vmatpush.bf16.msra.mxu0 0
      %3190 = vmatpush.bf16.msra.mxu0 0
      %3191 = vmatpush.bf16.msra.mxu0 0
      %3192 = vmatpush.bf16.msra.mxu0 %v3183
      %3193 = vmatmul.bf16.gmra.mxu0 %v3180
      %v3194 = vpop.f32.mrf.mxu0
      %v3195 = vadd.f32 0.0, %v3194
      %v3196 = vpop.f32.mrf.mxu0
      %3197 = vdwg.mxu0
      %3199 = vrot.lane.b32.xlu0 %v3151, 8
      %v3200 = vpop.permute.xlu0 %3199
      %3203 = vrot.lane.b32.xlu0 %v3173, 16
      %v3204 = vpop.permute.xlu0 %3203
      %3207 = vrot.lane.b32.xlu0 %v3195, 24
      %v3208 = vpop.permute.xlu0 %3207
      %v3210 = vsel %vm764, %v3129, %v3200
      %v3211 = vsel %vm1062, %v3210, %v3204
      %v3212 = vsel %vm1064, %v3211, %v3208
      %v3213 = vpack.c.bf16 %v3212, %v3212
      %v3215 = vperm.slane %v2913, 0
      %v3221 = vunpack.c.l.b16 %v2908
      %v3222 = vunpack.c.l.b16 %v2909
      %v3223 = vunpack.c.l.b16 %v2910
      %v3224 = vunpack.c.l.b16 %v2911
      %v3225 = vpack.c.b16 %v3222, %v3221
      %v3226 = vpack.c.b16 %v3224, %v3223
      %v3230 = vsel %vm678, %v3213, 0
      %3232 = vmatpush.bf16.msra.mxu0 0
      %3233 = vmatpush.bf16.msra.mxu0 0
      %3234 = vmatpush.bf16.msra.mxu0 0
      %3235 = vmatpush.bf16.msra.mxu0 0
      %3236 = vmatpush.bf16.msra.mxu0 0
      %3237 = vmatpush.bf16.msra.mxu0 0
      %3238 = vmatpush.bf16.msra.mxu0 %v3226
      %3239 = vmatpush.bf16.msra.mxu0 %v3225
      %3240 = vmatmul.bf16.gmra.mxu0 %v3230
      %v3241 = vpop.f32.mrf.mxu0
      %v3242 = vadd.f32 %v3215, %v3241
      %v3243 = vpop.f32.mrf.mxu0
      %3244 = vdwg.mxu0
      %v3245 = vadd.f32 %v2867, %v3242
      %s3246 = scalar_lea.vmem %s5, 9
      %v3247 = vld [vmem:[%s3246] sm:$0x1]
      %s3248 = scalar_lea.vmem %s6, 9
      %v3249 = vld [vmem:[%s3248] sm:$0x1]
      %v3250 = vsel %vm678, %v3245, 0.0
      %3251 = vadd.xlane.f32.xlu0 %v3250
      %v3252 = vpop.xlane.xlu0 %3251
      %v3253 = vmul.f32 %v3252, %v688
      %v3254 = vmul.f32 %v3245, %v3245
      %v3255 = vsel %vm678, %v3254, 0.0
      %3256 = vadd.xlane.f32.xlu0 %v3255
      %v3257 = vpop.xlane.xlu0 %3256
      %v3258 = vmul.f32 %v3257, %v688
      %v3259 = vmul.f32 %v3253, %v3253
      %v3260 = vsub.f32 %v3258, %v3259
      %v3261 = vsub.f32 %v3245, %v3253
      %v3262 = vadd.f32 %v3260, 1e-05
      %v3263 = vrsqrt.pop %v3262
      %v3264 = vmul.f32 %v3263, %v3262
      %v3265 = vmul.f32 %v3264, %v3263
      %v3266 = vmul.f32 0.5, %v3265
      %v3267 = vsub.f32 1.5, %v3266
      %v3268 = vmul.f32 %v3263, %v3267
      %vm3269 = vweird.f32 %v3262
      %vm3270 = vweird.f32 %v3263
      %vm3271 = vmor %vm3269, %vm3270
      %v3272 = vsel %vm3271, %v3263, %v3268
      %v3273 = vmul.f32 %v3261, %v3272
      %v3275 = vperm.slane %v3247, 0
      %v3277 = vmul.f32 %v3273, %v3275
      %v3279 = vperm.slane %v3249, 0
      %v3281 = vadd.f32 %v3277, %v3279
      %s3282 = scalar_lea.vmem %s9, 112
      %v3283 = vld [vmem:[%s3282] sm:$0xf]
      %v3284 = vld [vmem:[%s3282 + $0x4] sm:$0xf]
      %v3285 = vld [vmem:[%s3282 + $0x8] sm:$0xf]
      %v3286 = vld [vmem:[%s3282 + $0xc] sm:$0xf]
      %v3287 = vpack.c.bf16 %v3281, %v3281
      %s3288 = scalar_lea.vmem %s10, 7
      %v3289 = vld [vmem:[%s3288] sm:$0x1]
      %v3291 = vperm.slane %v3289, 0
      %v3297 = vunpack.c.l.b16 %v3283
      %v3298 = vunpack.c.l.b16 %v3284
      %v3299 = vunpack.c.l.b16 %v3285
      %v3300 = vunpack.c.l.b16 %v3286
      %v3301 = vpack.c.b16 %v3298, %v3297
      %v3302 = vpack.c.b16 %v3300, %v3299
      %v3306 = vsel %vm678, %v3287, 0
      %3308 = vmatpush.bf16.msra.mxu0 0
      %3309 = vmatpush.bf16.msra.mxu0 0
      %3310 = vmatpush.bf16.msra.mxu0 0
      %3311 = vmatpush.bf16.msra.mxu0 0
      %3312 = vmatpush.bf16.msra.mxu0 0
      %3313 = vmatpush.bf16.msra.mxu0 0
      %3314 = vmatpush.bf16.msra.mxu0 %v3302
      %3315 = vmatpush.bf16.msra.mxu0 %v3301
      %3316 = vmatmul.bf16.gmra.mxu0 %v3306
      %v3317 = vpop.f32.mrf.mxu0
      %v3318 = vadd.f32 %v3291, %v3317
      %v3319 = vpop.f32.mrf.mxu0
      %3320 = vdwg.mxu0
      %s3321 = scalar_lea.vmem %s11, 16
      %v3322 = vld [vmem:[%s3321] sm:$0xf]
      %v3323 = vld [vmem:[%s3321 + $0x4] sm:$0xf]
      %v3324 = vld [vmem:[%s3321 + $0x8] sm:$0xf]
      %v3325 = vld [vmem:[%s3321 + $0xc] sm:$0xf]
      %s3326 = scalar_lea.vmem %s12, 1
      %v3327 = vld [vmem:[%s3326] sm:$0x1]
      %v3329 = vperm.slane %v3327, 0
      %v3335 = vunpack.c.l.b16 %v3322
      %v3336 = vunpack.c.l.b16 %v3323
      %v3337 = vunpack.c.l.b16 %v3324
      %v3338 = vunpack.c.l.b16 %v3325
      %v3339 = vpack.c.b16 %v3336, %v3335
      %v3340 = vpack.c.b16 %v3338, %v3337
      %3343 = vmatpush.bf16.msra.mxu0 0
      %3344 = vmatpush.bf16.msra.mxu0 0
      %3345 = vmatpush.bf16.msra.mxu0 0
      %3346 = vmatpush.bf16.msra.mxu0 0
      %3347 = vmatpush.bf16.msra.mxu0 0
      %3348 = vmatpush.bf16.msra.mxu0 0
      %3349 = vmatpush.bf16.msra.mxu0 %v3340
      %3350 = vmatpush.bf16.msra.mxu0 %v3339
      %3351 = vmatmul.bf16.gmra.mxu0 %v2338
      %v3352 = vpop.f32.mrf.mxu0
      %v3353 = vadd.f32 %v3329, %v3352
      %v3354 = vpop.f32.mrf.mxu0
      %3355 = vdwg.mxu0
      %s3356 = scalar_lea.vmem %s9, 80
      %v3357 = vld [vmem:[%s3356] sm:$0xf]
      %v3358 = vld [vmem:[%s3356 + $0x4] sm:$0xf]
      %v3359 = vld [vmem:[%s3356 + $0x8] sm:$0xf]
      %v3360 = vld [vmem:[%s3356 + $0xc] sm:$0xf]
      %s3361 = scalar_lea.vmem %s10, 5
      %v3362 = vld [vmem:[%s3361] sm:$0x1]
      %v3363 = vpack.c.bf16 %v3318, %v3318
      %v3364 = vpack.c.bf16 %v3353, %v3353
      %v3366 = vsel %vm764, %v3363, 0
      %v3369 = vsel %vm764, %v3364, 0
      %3371 = vmatpush.bf16.xpose.msra.mxu0 0
      %3372 = vmatpush.bf16.xpose.msra.mxu0 0
      %3373 = vmatpush.bf16.xpose.msra.mxu0 0
      %3374 = vmatpush.bf16.xpose.msra.mxu0 0
      %3375 = vmatpush.bf16.xpose.msra.mxu0 0
      %3376 = vmatpush.bf16.xpose.msra.mxu0 0
      %3377 = vmatpush.bf16.xpose.msra.mxu0 0
      %3378 = vmatpush.bf16.xpose.msra.mxu0 %v3369
      %3379 = vmatmul.bf16.gmra.mxu0 %v3366
      %v3380 = vpop.f32.mrf.mxu0
      %v3381 = vadd.f32 0.0, %v3380
      %v3382 = vpop.f32.mrf.mxu0
      %3383 = vdwg.mxu0
      %v3384 = vmul.f32 %v3381, 0.35355338
      %v3385 = vadd.f32 %v3384, %v786
      %3387 = vrot.lane.b32.xlu0 %v3363, 120
      %v3388 = vpop.permute.xlu0 %3387
      %3390 = vrot.lane.b32.xlu0 %v3364, 120
      %v3391 = vpop.permute.xlu0 %3390
      %v3393 = vsel %vm764, %v3388, 0
      %v3396 = vsel %vm764, %v3391, 0
      %3398 = vmatpush.bf16.xpose.msra.mxu0 0
      %3399 = vmatpush.bf16.xpose.msra.mxu0 0
      %3400 = vmatpush.bf16.xpose.msra.mxu0 0
      %3401 = vmatpush.bf16.xpose.msra.mxu0 0
      %3402 = vmatpush.bf16.xpose.msra.mxu0 0
      %3403 = vmatpush.bf16.xpose.msra.mxu0 0
      %3404 = vmatpush.bf16.xpose.msra.mxu0 0
      %3405 = vmatpush.bf16.xpose.msra.mxu0 %v3396
      %3406 = vmatmul.bf16.gmra.mxu0 %v3393
      %v3407 = vpop.f32.mrf.mxu0
      %v3408 = vadd.f32 0.0, %v3407
      %v3409 = vpop.f32.mrf.mxu0
      %3410 = vdwg.mxu0
      %v3411 = vmul.f32 %v3408, 0.35355338
      %v3412 = vadd.f32 %v3411, %v786
      %3413 = vrot.lane.b32.xlu0 %v3363, 112
      %v3414 = vpop.permute.xlu0 %3413
      %3415 = vrot.lane.b32.xlu0 %v3364, 112
      %v3416 = vpop.permute.xlu0 %3415
      %v3418 = vsel %vm764, %v3414, 0
      %v3421 = vsel %vm764, %v3416, 0
      %3423 = vmatpush.bf16.xpose.msra.mxu0 0
      %3424 = vmatpush.bf16.xpose.msra.mxu0 0
      %3425 = vmatpush.bf16.xpose.msra.mxu0 0
      %3426 = vmatpush.bf16.xpose.msra.mxu0 0
      %3427 = vmatpush.bf16.xpose.msra.mxu0 0
      %3428 = vmatpush.bf16.xpose.msra.mxu0 0
      %3429 = vmatpush.bf16.xpose.msra.mxu0 0
      %3430 = vmatpush.bf16.xpose.msra.mxu0 %v3421
      %3431 = vmatmul.bf16.gmra.mxu0 %v3418
      %v3432 = vpop.f32.mrf.mxu0
      %v3433 = vadd.f32 0.0, %v3432
      %v3434 = vpop.f32.mrf.mxu0
      %3435 = vdwg.mxu0
      %v3436 = vmul.f32 %v3433, 0.35355338
      %v3437 = vadd.f32 %v3436, %v786
      %3438 = vrot.lane.b32.xlu0 %v3363, 104
      %v3439 = vpop.permute.xlu0 %3438
      %3440 = vrot.lane.b32.xlu0 %v3364, 104
      %v3441 = vpop.permute.xlu0 %3440
      %v3443 = vsel %vm764, %v3439, 0
      %v3446 = vsel %vm764, %v3441, 0
      %3448 = vmatpush.bf16.xpose.msra.mxu0 0
      %3449 = vmatpush.bf16.xpose.msra.mxu0 0
      %3450 = vmatpush.bf16.xpose.msra.mxu0 0
      %3451 = vmatpush.bf16.xpose.msra.mxu0 0
      %3452 = vmatpush.bf16.xpose.msra.mxu0 0
      %3453 = vmatpush.bf16.xpose.msra.mxu0 0
      %3454 = vmatpush.bf16.xpose.msra.mxu0 0
      %3455 = vmatpush.bf16.xpose.msra.mxu0 %v3446
      %3456 = vmatmul.bf16.gmra.mxu0 %v3443
      %v3457 = vpop.f32.mrf.mxu0
      %v3458 = vadd.f32 0.0, %v3457
      %v3459 = vpop.f32.mrf.mxu0
      %3460 = vdwg.mxu0
      %v3461 = vmul.f32 %v3458, 0.35355338
      %v3462 = vadd.f32 %v3461, %v786
      %v3463 = vsel %vm764, %v3385, -inf
      %3464 = vmax.xlane.f32.xlu0 %v3463
      %v3465 = vpop.xlane.xlu0 %3464
      %v3466 = vsel %vm764, %v3412, -inf
      %3467 = vmax.xlane.f32.xlu0 %v3466
      %v3468 = vpop.xlane.xlu0 %3467
      %v3469 = vsel %vm764, %v3437, -inf
      %3470 = vmax.xlane.f32.xlu0 %v3469
      %v3471 = vpop.xlane.xlu0 %3470
      %v3472 = vsel %vm764, %v3462, -inf
      %3473 = vmax.xlane.f32.xlu0 %v3472
      %v3474 = vpop.xlane.xlu0 %3473
      %v3475 = vsub.f32 %v3385, %v3465
      %v3476 = vsub.f32 %v3412, %v3468
      %v3477 = vsub.f32 %v3437, %v3471
      %v3478 = vsub.f32 %v3462, %v3474
      %v3479 = vmul.f32 %v3475, 1.442695
      %v3480 = vpow.pop %v3479
      %v3481 = vmul.f32 %v3476, 1.442695
      %v3482 = vpow.pop %v3481
      %v3483 = vmul.f32 %v3477, 1.442695
      %v3484 = vpow.pop %v3483
      %v3485 = vmul.f32 %v3478, 1.442695
      %v3486 = vpow.pop %v3485
      %v3487 = vsel %vm764, %v3480, 0.0
      %3488 = vadd.xlane.f32.xlu0 %v3487
      %v3489 = vpop.xlane.xlu0 %3488
      %v3490 = vsel %vm764, %v3482, 0.0
      %3491 = vadd.xlane.f32.xlu0 %v3490
      %v3492 = vpop.xlane.xlu0 %3491
      %v3493 = vsel %vm764, %v3484, 0.0
      %3494 = vadd.xlane.f32.xlu0 %v3493
      %v3495 = vpop.xlane.xlu0 %3494
      %v3496 = vsel %vm764, %v3486, 0.0
      %3497 = vadd.xlane.f32.xlu0 %v3496
      %v3498 = vpop.xlane.xlu0 %3497
      %v3499 = vrcp.pop %v3489
      %v3500 = vmul.f32 %v3489, %v3499
      %v3501 = vsub.f32 1.0, %v3500
      %v3502 = vmul.f32 %v3499, %v3501
      %v3503 = vadd.f32 %v3499, %v3502
      %vm3504 = vweird.f32 %v3489
      %vm3505 = vweird.f32 %v3499
      %vm3506 = vmor %vm3504, %vm3505
      %v3507 = vsel %vm3506, %v3499, %v3503
      %v3508 = vand.u32 2147483647, %v3489
      %vm3509 = vcmp.eq.f32.partialorder %v3508, 8.507059e+37
      %v3510 = vand.u32 %v3489, 2147483648
      %v3511 = vor.u32 1.1754944e-38, %v3510
      %v3512 = vsel %vm3509, %v3511, %v3507
      %v3513 = vmul.f32 %v3480, %v3512
      %v3514 = vrcp.pop %v3492
      %v3515 = vmul.f32 %v3492, %v3514
      %v3516 = vsub.f32 1.0, %v3515
      %v3517 = vmul.f32 %v3514, %v3516
      %v3518 = vadd.f32 %v3514, %v3517
      %vm3519 = vweird.f32 %v3492
      %vm3520 = vweird.f32 %v3514
      %vm3521 = vmor %vm3519, %vm3520
      %v3522 = vsel %vm3521, %v3514, %v3518
      %v3523 = vand.u32 2147483647, %v3492
      %vm3524 = vcmp.eq.f32.partialorder %v3523, 8.507059e+37
      %v3525 = vand.u32 %v3492, 2147483648
      %v3526 = vor.u32 1.1754944e-38, %v3525
      %v3527 = vsel %vm3524, %v3526, %v3522
      %v3528 = vmul.f32 %v3482, %v3527
      %v3529 = vrcp.pop %v3495
      %v3530 = vmul.f32 %v3495, %v3529
      %v3531 = vsub.f32 1.0, %v3530
      %v3532 = vmul.f32 %v3529, %v3531
      %v3533 = vadd.f32 %v3529, %v3532
      %vm3534 = vweird.f32 %v3495
      %vm3535 = vweird.f32 %v3529
      %vm3536 = vmor %vm3534, %vm3535
      %v3537 = vsel %vm3536, %v3529, %v3533
      %v3538 = vand.u32 2147483647, %v3495
      %vm3539 = vcmp.eq.f32.partialorder %v3538, 8.507059e+37
      %v3540 = vand.u32 %v3495, 2147483648
      %v3541 = vor.u32 1.1754944e-38, %v3540
      %v3542 = vsel %vm3539, %v3541, %v3537
      %v3543 = vmul.f32 %v3484, %v3542
      %v3544 = vrcp.pop %v3498
      %v3545 = vmul.f32 %v3498, %v3544
      %v3546 = vsub.f32 1.0, %v3545
      %v3547 = vmul.f32 %v3544, %v3546
      %v3548 = vadd.f32 %v3544, %v3547
      %vm3549 = vweird.f32 %v3498
      %vm3550 = vweird.f32 %v3544
      %vm3551 = vmor %vm3549, %vm3550
      %v3552 = vsel %vm3551, %v3544, %v3548
      %v3553 = vand.u32 2147483647, %v3498
      %vm3554 = vcmp.eq.f32.partialorder %v3553, 8.507059e+37
      %v3555 = vand.u32 %v3498, 2147483648
      %v3556 = vor.u32 1.1754944e-38, %v3555
      %v3557 = vsel %vm3554, %v3556, %v3552
      %v3558 = vmul.f32 %v3486, %v3557
      %v3559 = vpack.c.bf16 %v3513, %v3513
      %3560 = vrot.lane.b32.xlu0 %v3364, 96
      %v3561 = vpop.permute.xlu0 %3560
      %v3563 = vsel %vm764, %v3559, 0
      %v3566 = vsel %vm966, %v3561, 0
      %3568 = vmatpush.bf16.msra.mxu0 0
      %3569 = vmatpush.bf16.msra.mxu0 0
      %3570 = vmatpush.bf16.msra.mxu0 0
      %3571 = vmatpush.bf16.msra.mxu0 0
      %3572 = vmatpush.bf16.msra.mxu0 0
      %3573 = vmatpush.bf16.msra.mxu0 0
      %3574 = vmatpush.bf16.msra.mxu0 0
      %3575 = vmatpush.bf16.msra.mxu0 %v3566
      %3576 = vmatmul.bf16.gmra.mxu0 %v3563
      %v3577 = vpop.f32.mrf.mxu0
      %v3578 = vadd.f32 0.0, %v3577
      %v3579 = vpop.f32.mrf.mxu0
      %3580 = vdwg.mxu0
      %v3581 = vpack.c.bf16 %v3528, %v3528
      %3582 = vrot.lane.b32.xlu0 %v3364, 88
      %v3583 = vpop.permute.xlu0 %3582
      %v3585 = vsel %vm764, %v3581, 0
      %v3588 = vsel %vm966, %v3583, 0
      %3590 = vmatpush.bf16.msra.mxu0 0
      %3591 = vmatpush.bf16.msra.mxu0 0
      %3592 = vmatpush.bf16.msra.mxu0 0
      %3593 = vmatpush.bf16.msra.mxu0 0
      %3594 = vmatpush.bf16.msra.mxu0 0
      %3595 = vmatpush.bf16.msra.mxu0 0
      %3596 = vmatpush.bf16.msra.mxu0 0
      %3597 = vmatpush.bf16.msra.mxu0 %v3588
      %3598 = vmatmul.bf16.gmra.mxu0 %v3585
      %v3599 = vpop.f32.mrf.mxu0
      %v3600 = vadd.f32 0.0, %v3599
      %v3601 = vpop.f32.mrf.mxu0
      %3602 = vdwg.mxu0
      %v3603 = vpack.c.bf16 %v3543, %v3543
      %3604 = vrot.lane.b32.xlu0 %v3364, 80
      %v3605 = vpop.permute.xlu0 %3604
      %v3607 = vsel %vm764, %v3603, 0
      %v3610 = vsel %vm966, %v3605, 0
      %3612 = vmatpush.bf16.msra.mxu0 0
      %3613 = vmatpush.bf16.msra.mxu0 0
      %3614 = vmatpush.bf16.msra.mxu0 0
      %3615 = vmatpush.bf16.msra.mxu0 0
      %3616 = vmatpush.bf16.msra.mxu0 0
      %3617 = vmatpush.bf16.msra.mxu0 0
      %3618 = vmatpush.bf16.msra.mxu0 0
      %3619 = vmatpush.bf16.msra.mxu0 %v3610
      %3620 = vmatmul.bf16.gmra.mxu0 %v3607
      %v3621 = vpop.f32.mrf.mxu0
      %v3622 = vadd.f32 0.0, %v3621
      %v3623 = vpop.f32.mrf.mxu0
      %3624 = vdwg.mxu0
      %v3625 = vpack.c.bf16 %v3558, %v3558
      %3626 = vrot.lane.b32.xlu0 %v3364, 72
      %v3627 = vpop.permute.xlu0 %3626
      %v3629 = vsel %vm764, %v3625, 0
      %v3632 = vsel %vm966, %v3627, 0
      %3634 = vmatpush.bf16.msra.mxu0 0
      %3635 = vmatpush.bf16.msra.mxu0 0
      %3636 = vmatpush.bf16.msra.mxu0 0
      %3637 = vmatpush.bf16.msra.mxu0 0
      %3638 = vmatpush.bf16.msra.mxu0 0
      %3639 = vmatpush.bf16.msra.mxu0 0
      %3640 = vmatpush.bf16.msra.mxu0 0
      %3641 = vmatpush.bf16.msra.mxu0 %v3632
      %3642 = vmatmul.bf16.gmra.mxu0 %v3629
      %v3643 = vpop.f32.mrf.mxu0
      %v3644 = vadd.f32 0.0, %v3643
      %v3645 = vpop.f32.mrf.mxu0
      %3646 = vdwg.mxu0
      %3648 = vrot.lane.b32.xlu0 %v3600, 8
      %v3649 = vpop.permute.xlu0 %3648
      %3652 = vrot.lane.b32.xlu0 %v3622, 16
      %v3653 = vpop.permute.xlu0 %3652
      %3656 = vrot.lane.b32.xlu0 %v3644, 24
      %v3657 = vpop.permute.xlu0 %3656
      %v3659 = vsel %vm764, %v3578, %v3649
      %v3660 = vsel %vm1062, %v3659, %v3653
      %v3661 = vsel %vm1064, %v3660, %v3657
      %v3662 = vpack.c.bf16 %v3661, %v3661
      %v3664 = vperm.slane %v3362, 0
      %v3670 = vunpack.c.l.b16 %v3357
      %v3671 = vunpack.c.l.b16 %v3358
      %v3672 = vunpack.c.l.b16 %v3359
      %v3673 = vunpack.c.l.b16 %v3360
      %v3674 = vpack.c.b16 %v3671, %v3670
      %v3675 = vpack.c.b16 %v3673, %v3672
      %v3679 = vsel %vm678, %v3662, 0
      %3681 = vmatpush.bf16.msra.mxu0 0
      %3682 = vmatpush.bf16.msra.mxu0 0
      %3683 = vmatpush.bf16.msra.mxu0 0
      %3684 = vmatpush.bf16.msra.mxu0 0
      %3685 = vmatpush.bf16.msra.mxu0 0
      %3686 = vmatpush.bf16.msra.mxu0 0
      %3687 = vmatpush.bf16.msra.mxu0 %v3675
      %3688 = vmatpush.bf16.msra.mxu0 %v3674
      %3689 = vmatmul.bf16.gmra.mxu0 %v3679
      %v3690 = vpop.f32.mrf.mxu0
      %v3691 = vadd.f32 %v3664, %v3690
      %v3692 = vpop.f32.mrf.mxu0
      %3693 = vdwg.mxu0
      %v3694 = vadd.f32 %v3281, %v3691
      %s3695 = scalar_lea.vmem %s5, 10
      %v3696 = vld [vmem:[%s3695] sm:$0x1]
      %s3697 = scalar_lea.vmem %s6, 10
      %v3698 = vld [vmem:[%s3697] sm:$0x1]
      %v3699 = vsel %vm678, %v3694, 0.0
      %3700 = vadd.xlane.f32.xlu0 %v3699
      %v3701 = vpop.xlane.xlu0 %3700
      %v3702 = vmul.f32 %v3701, %v688
      %v3703 = vmul.f32 %v3694, %v3694
      %v3704 = vsel %vm678, %v3703, 0.0
      %3705 = vadd.xlane.f32.xlu0 %v3704
      %v3706 = vpop.xlane.xlu0 %3705
      %v3707 = vmul.f32 %v3706, %v688
      %v3708 = vmul.f32 %v3702, %v3702
      %v3709 = vsub.f32 %v3707, %v3708
      %v3710 = vsub.f32 %v3694, %v3702
      %v3711 = vadd.f32 %v3709, 1e-05
      %v3712 = vrsqrt.pop %v3711
      %v3713 = vmul.f32 %v3712, %v3711
      %v3714 = vmul.f32 %v3713, %v3712
      %v3715 = vmul.f32 0.5, %v3714
      %v3716 = vsub.f32 1.5, %v3715
      %v3717 = vmul.f32 %v3712, %v3716
      %vm3718 = vweird.f32 %v3711
      %vm3719 = vweird.f32 %v3712
      %vm3720 = vmor %vm3718, %vm3719
      %v3721 = vsel %vm3720, %v3712, %v3717
      %v3722 = vmul.f32 %v3710, %v3721
      %v3724 = vperm.slane %v3696, 0
      %v3726 = vmul.f32 %v3722, %v3724
      %v3728 = vperm.slane %v3698, 0
      %v3730 = vadd.f32 %v3726, %v3728
      %s3731 = scalar_lea.vmem %s13, 48
      %v3732 = vld [vmem:[%s3731] sm:$0xf]
      %v3733 = vld [vmem:[%s3731 + $0x4] sm:$0xf]
      %v3734 = vld [vmem:[%s3731 + $0x8] sm:$0xf]
      %v3735 = vld [vmem:[%s3731 + $0xc] sm:$0xf]
      %v3736 = vpack.c.bf16 %v3730, %v3730
      %s3737 = scalar_lea.vmem %s14, 3
      %v3738 = vld [vmem:[%s3737] sm:$0x1]
      %v3740 = vperm.slane %v3738, 0
      %v3746 = vunpack.c.l.b16 %v3732
      %v3747 = vunpack.c.l.b16 %v3733
      %v3748 = vunpack.c.l.b16 %v3734
      %v3749 = vunpack.c.l.b16 %v3735
      %v3750 = vpack.c.b16 %v3747, %v3746
      %v3751 = vpack.c.b16 %v3749, %v3748
      %v3755 = vsel %vm678, %v3736, 0
      %3757 = vmatpush.bf16.msra.mxu0 0
      %3758 = vmatpush.bf16.msra.mxu0 0
      %3759 = vmatpush.bf16.msra.mxu0 0
      %3760 = vmatpush.bf16.msra.mxu0 0
      %3761 = vmatpush.bf16.msra.mxu0 0
      %3762 = vmatpush.bf16.msra.mxu0 0
      %3763 = vmatpush.bf16.msra.mxu0 %v3751
      %3764 = vmatpush.bf16.msra.mxu0 %v3750
      %3765 = vmatmul.bf16.gmra.mxu0 %v3755
      %v3766 = vpop.f32.mrf.mxu0
      %v3767 = vadd.f32 %v3740, %v3766
      %v3768 = vpop.f32.mrf.mxu0
      %3769 = vdwg.mxu0
      %v3770 = vmul.f32 %v3767, %v3767
      %v3771 = vmul.f32 %v3767, %v3770
      %v3772 = vmul.f32 %v3771, 0.044715
      %v3773 = vadd.f32 %v3767, %v3772
      %v3774 = vmul.f32 %v3773, 0.7978846
      %v3775 = vtanh.pop %v3774
      %v3776 = vadd.f32 %v3775, 1.0
      %v3777 = vmul.f32 %v3776, 0.5
      %v3778 = vmul.f32 %v3767, %v3777
      %s3779 = scalar_lea.vmem %s15, 96
      %v3780 = vld [vmem:[%s3779] sm:$0xf]
      %v3781 = vld [vmem:[%s3779 + $0x4] sm:$0xf]
      %v3782 = vld [vmem:[%s3779 + $0x8] sm:$0xf]
      %v3783 = vld [vmem:[%s3779 + $0xc] sm:$0xf]
      %v3784 = vld [vmem:[%s3779 + $0x10] sm:$0xf]
      %v3785 = vld [vmem:[%s3779 + $0x14] sm:$0xf]
      %v3786 = vld [vmem:[%s3779 + $0x18] sm:$0xf]
      %v3787 = vld [vmem:[%s3779 + $0x1c] sm:$0xf]
      %v3788 = vpack.c.bf16 %v3778, %v3778
      %s3789 = scalar_lea.vmem %s16, 3
      %v3790 = vld [vmem:[%s3789] sm:$0x1]
      %v3792 = vperm.slane %v3790, 0
      %v3802 = vunpack.c.l.b16 %v3780
      %v3803 = vunpack.c.l.b16 %v3781
      %v3804 = vunpack.c.l.b16 %v3782
      %v3805 = vunpack.c.l.b16 %v3783
      %v3806 = vunpack.c.l.b16 %v3784
      %v3807 = vunpack.c.l.b16 %v3785
      %v3808 = vunpack.c.l.b16 %v3786
      %v3809 = vunpack.c.l.b16 %v3787
      %v3810 = vpack.c.b16 %v3803, %v3802
      %v3811 = vpack.c.b16 %v3805, %v3804
      %v3812 = vpack.c.b16 %v3807, %v3806
      %v3813 = vpack.c.b16 %v3809, %v3808
      %v3819 = vsel %vm1218, %v3788, 0
      %3821 = vmatpush.bf16.msra.mxu0 0
      %3822 = vmatpush.bf16.msra.mxu0 0
      %3823 = vmatpush.bf16.msra.mxu0 0
      %3824 = vmatpush.bf16.msra.mxu0 0
      %3825 = vmatpush.bf16.msra.mxu0 %v3813
      %3826 = vmatpush.bf16.msra.mxu0 %v3812
      %3827 = vmatpush.bf16.msra.mxu0 %v3811
      %3828 = vmatpush.bf16.msra.mxu0 %v3810
      %3829 = vmatmul.bf16.gmra.mxu0 %v3819
      %v3830 = vpop.f32.mrf.mxu0
      %v3831 = vadd.f32 %v3792, %v3830
      %v3832 = vpop.f32.mrf.mxu0
      %3833 = vdwg.mxu0
      %v3834 = vadd.f32 %v3730, %v3831
      %s3835 = scalar_lea.vmem %s5, 11
      %v3836 = vld [vmem:[%s3835] sm:$0x1]
      %s3837 = scalar_lea.vmem %s6, 11
      %v3838 = vld [vmem:[%s3837] sm:$0x1]
      %v3839 = vsel %vm678, %v3834, 0.0
      %3840 = vadd.xlane.f32.xlu0 %v3839
      %v3841 = vpop.xlane.xlu0 %3840
      %v3842 = vmul.f32 %v3841, %v688
      %v3843 = vmul.f32 %v3834, %v3834
      %v3844 = vsel %vm678, %v3843, 0.0
      %3845 = vadd.xlane.f32.xlu0 %v3844
      %v3846 = vpop.xlane.xlu0 %3845
      %v3847 = vmul.f32 %v3846, %v688
      %v3848 = vmul.f32 %v3842, %v3842
      %v3849 = vsub.f32 %v3847, %v3848
      %v3850 = vsub.f32 %v3834, %v3842
      %v3851 = vadd.f32 %v3849, 1e-05
      %v3852 = vrsqrt.pop %v3851
      %v3853 = vmul.f32 %v3852, %v3851
      %v3854 = vmul.f32 %v3853, %v3852
      %v3855 = vmul.f32 0.5, %v3854
      %v3856 = vsub.f32 1.5, %v3855
      %v3857 = vmul.f32 %v3852, %v3856
      %vm3858 = vweird.f32 %v3851
      %vm3859 = vweird.f32 %v3852
      %vm3860 = vmor %vm3858, %vm3859
      %v3861 = vsel %vm3860, %v3852, %v3857
      %v3862 = vmul.f32 %v3850, %v3861
      %v3864 = vperm.slane %v3836, 0
      %v3866 = vmul.f32 %v3862, %v3864
      %v3868 = vperm.slane %v3838, 0
      %v3870 = vadd.f32 %v3866, %v3868
      %v3871 = vld [vmem:[%s17] sm:$0xf]
      %v3872 = vld [vmem:[%s17 + $0x4] sm:$0xf]
      %v3873 = vld [vmem:[%s17 + $0x8] sm:$0xf]
      %v3874 = vld [vmem:[%s17 + $0xc] sm:$0xf]
      %v3875 = vld [vmem:[%s17 + $0x10] sm:$0xf]
      %v3876 = vld [vmem:[%s17 + $0x14] sm:$0xf]
      %v3877 = vld [vmem:[%s17 + $0x18] sm:$0xf]
      %v3878 = vld [vmem:[%s17 + $0x1c] sm:$0xf]
      %v3879 = vld [vmem:[%s17 + $0x20] sm:$0xf]
      %v3880 = vld [vmem:[%s17 + $0x24] sm:$0xf]
      %v3881 = vld [vmem:[%s17 + $0x28] sm:$0xf]
      %v3882 = vld [vmem:[%s17 + $0x2c] sm:$0xf]
      %v3883 = vld [vmem:[%s17 + $0x30] sm:$0xf]
      %v3884 = vld [vmem:[%s17 + $0x34] sm:$0xf]
      %v3885 = vld [vmem:[%s17 + $0x38] sm:$0xf]
      %v3886 = vld [vmem:[%s17 + $0x3c] sm:$0xf]
      %v3887 = vpack.c.bf16 %v3870, %v3870
      %v3888 = vld [vmem:[%s18] sm:$0x1]
      %v3890 = vperm.slane %v3888, 0
      %v3908 = vunpack.c.l.b16 %v3871
      %v3909 = vunpack.c.l.b16 %v3872
      %v3910 = vunpack.c.l.b16 %v3873
      %v3911 = vunpack.c.l.b16 %v3874
      %v3912 = vunpack.c.l.b16 %v3875
      %v3913 = vunpack.c.l.b16 %v3876
      %v3914 = vunpack.c.l.b16 %v3877
      %v3915 = vunpack.c.l.b16 %v3878
      %v3916 = vunpack.c.l.b16 %v3879
      %v3917 = vunpack.c.l.b16 %v3880
      %v3918 = vunpack.c.l.b16 %v3881
      %v3919 = vunpack.c.l.b16 %v3882
      %v3920 = vunpack.c.l.b16 %v3883
      %v3921 = vunpack.c.l.b16 %v3884
      %v3922 = vunpack.c.l.b16 %v3885
      %v3923 = vunpack.c.l.b16 %v3886
      %v3924 = vpack.c.b16 %v3909, %v3908
      %v3925 = vpack.c.b16 %v3911, %v3910
      %v3926 = vpack.c.b16 %v3913, %v3912
      %v3927 = vpack.c.b16 %v3915, %v3914
      %v3928 = vpack.c.b16 %v3917, %v3916
      %v3929 = vpack.c.b16 %v3919, %v3918
      %v3930 = vpack.c.b16 %v3921, %v3920
      %v3931 = vpack.c.b16 %v3923, %v3922
      %v3933 = vsel %vm678, %v3887, 0
      %v3936 = vsel %vm678, %v3924, 0
      %v3939 = vsel %vm678, %v3925, 0
      %v3942 = vsel %vm678, %v3926, 0
      %v3945 = vsel %vm678, %v3927, 0
      %v3948 = vsel %vm678, %v3928, 0
      %v3951 = vsel %vm678, %v3929, 0
      %v3954 = vsel %vm678, %v3930, 0
      %v3957 = vsel %vm678, %v3931, 0
      %3959 = vmatpush.bf16.xpose.msra.mxu0 %v3957
      %3960 = vmatpush.bf16.xpose.msra.mxu0 %v3954
      %3961 = vmatpush.bf16.xpose.msra.mxu0 %v3951
      %3962 = vmatpush.bf16.xpose.msra.mxu0 %v3948
      %3963 = vmatpush.bf16.xpose.msra.mxu0 %v3945
      %3964 = vmatpush.bf16.xpose.msra.mxu0 %v3942
      %3965 = vmatpush.bf16.xpose.msra.mxu0 %v3939
      %3966 = vmatpush.bf16.xpose.msra.mxu0 %v3936
      %3967 = vmatmul.bf16.gmra.mxu0 %v3933
      %v3968 = vpop.f32.mrf.mxu0
      %v3969 = vadd.f32 %v3890, %v3968
      %v3970 = vpop.f32.mrf.mxu0
      %3971 = vdwg.mxu0
      %v3972 = vld [vmem:[%s654] sm:$0xff]
      %3973 = vmax.xlane.f32.xlu0 %v3969
      %v3974 = vpop.xlane.xlu0 %3973
      %v3975 = vsub.f32 %v3969, %v3974
      %v3976 = vmul.f32 %v3975, 1.442695
      %v3977 = vpow.pop %v3976
      %3978 = vadd.xlane.f32.xlu0 %v3977
      %v3979 = vpop.xlane.xlu0 %3978
      %v3980 = vlog2.pop %v3979
      %v3981 = vmul.f32 %v3980, 0.6931472
      %v3982 = vadd.f32 %v3974, %v3981
      %3983 = vset.pattern.permute.xlu0 0
      %3984 = vperm.xlu0 %3983, %v3972
      %v3985 = vpop.permute.xlu0 %3984
      %vm3986 = vcmp.eq.s32.totalorder %v668, %v3985
      %v3987 = vsel %vm3986, %v3969, 0.0
      %3988 = vadd.xlane.f32.xlu0 %v3987
      %v3989 = vpop.xlane.xlu0 %3988
      %vm3990 = vcmp.ne.s32.totalorder %v3972, 4294967196
      %v3991 = vsel %vm3990, 1, 0
      %v3992 = vcvt.s32.f32 %v3991
      %v3993 = vsub.f32 %v3982, %v3989
      %v3994 = vmul.f32 %v3993, %v3992
      %vm3995 = vcmask 7168
      %v3996 = vsel %vm3995, %v3994, 0.0
      %3997 = vadd.xlane.f32.xlu0 %v3996
      %v3998 = vpop.xlane.xlu0 %3997
      %v3999 = vrot.slane %v3998, 4
      %v4000 = vadd.f32 %v3998, %v3999
      %v4001 = vrot.slane %v4000, 2
      %v4002 = vadd.f32 %v4000, %v4001
      %v4003 = vrot.slane %v4002, 1
      %v4004 = vadd.f32 %v4002, %v4003
      %s4005 = vtos %v4004
      %v4006 = vstv %s4005
      %vm4007 = vcmask 0
      %4008 = vst.msk [vmem:[%s657] sm:$0x1] %vm4007, %v4006
      %p4009 = scmp.lt.s32.totalorder %s30, 1
      %s4010 = scalar_select %p4009, %s30, 1
      %s4011 = scalar_lea.vmem %s19, %s4010
      // Predicated region
      $region97: #{bart_generation_loss.1} parent=95 // pred_check
        %p4012 = pneg %p472
      $region98: #{bart_generation_loss.1} parent=95 // pred_check_branch
        %4014 = sbr.rel (%p4012) target = $region100
      $region99: #{bart_generation_loss.1} parent=95 // pred_region
        _
      $region100: #{bart_generation_loss.1} parent=95 // pred_fallthru
        _
    $region96: #{bart_generation_loss.1} parent=5 // pred_fallthru
      _
    %p4015 = scmp.le.s32.totalorder 2, %s25
    // Predicated region
    $region101: #{bart_generation_loss.1} parent=5 // pred_check
      %p4016 = pneg %p4015
    $region102: #{bart_generation_loss.1} parent=5 // pred_check_branch
      %4018 = sbr.rel (%p4016) target = $region104
    $region103: #{bart_generation_loss.1} parent=5 // pred_region
      %s4019 = ssub.s32 %s25, 2
      // Predicated region
      $region105: #{bart_generation_loss.1} parent=103 // pred_check
        %p4020 = pneg %p478
      $region106: #{bart_generation_loss.1} parent=103 // pred_check_branch
        %4022 = sbr.rel (%p4020) target = $region108
      $region107: #{bart_generation_loss.1} parent=103 // pred_region
        %p4023 = scmp.lt.s32.totalorder %s31, 1
        %s4024 = scalar_select %p4023, %s31, 1
        %s4025 = scalar_lea.vmem %s19, %s4024
      $region108: #{bart_generation_loss.1} parent=103 // pred_fallthru
        _
    $region104: #{bart_generation_loss.1} parent=5 // pred_fallthru
      _
  $region6: #{bart_generation_loss.1} parent=0 // loop_footer
    %s29 = sadd.s32 1, %s25
  $region7: #{bart_generation_loss.1} parent=0 // loop_footer_branch
    %24 = sbr.rel target = $region3
  $region8: #{bart_generation_loss.1} parent=0 // loop_exit
    _

</llo_original>
